<compile_context>
chip_gen: v7x
topology: tpu7x:2x2x1
jax: 0.10.0
libtpu: 0.0.40
codegen_flags: <defaults>
</compile_context>

<pallas_src>
import jax
import jax.numpy as jnp
from jax.experimental import pallas as pl
from jax.experimental.pallas import tpu as pltpu


def _gelu(x):
    # TODO(synk): nn.GELU defaults to the erf-exact form; tanh approximation is
    # used for robust Mosaic lowering (difference is ~1e-3 relative).
    return jax.nn.gelu(x, approximate=True)


def _make_kernel(H, W, c_in, d_model, n_out_rows, pad_rows):
    """Build the per-image kernel closed over the static geometry."""
    Ho, Wo = H - 2, W - 2
    npix_in = H * W

    def kernel(x_ref, w1_ref, b1_ref, w2_ref, b2_ref,
               sew1_ref, seb1_ref, sew2_ref, seb2_ref,
               w3_ref, b3_ref, o_ref, h_ref):
        # ---- conv1 (1x1, BN1 folded) + GELU, computed ONCE over all H*W px ----
        x2d = x_ref[0]                                       # (H*W, Cin) f32
        if c_in <= 8:
            # Tiny contraction: VPU broadcast-MACs; keep MXU for the D x D work.
            h = jnp.zeros((npix_in, d_model), jnp.float32) + b1_ref[...]
            for c in range(c_in):
                h = h + x2d[:, c:c + 1] * w1_ref[c:c + 1, :]
        else:
            h = jnp.dot(x2d.astype(jnp.bfloat16),
                        w1_ref[...].astype(jnp.bfloat16),
                        preferred_element_type=jnp.float32) + b1_ref[...]
        h = _gelu(h)                                          # f32 (v5e-safe)
        h_ref[pl.ds(0, npix_in), :] = h
        # Zero the padded tail rows so the shifted tap reads stay finite.
        h_ref[pl.ds(npix_in, pad_rows), :] = jnp.zeros(
            (pad_rows, d_model), jnp.float32)

        # ---- 3x3 valid conv (BN2 folded): 9 row-shifted bf16 matmuls ----
        acc = jnp.zeros((n_out_rows, d_model), jnp.float32)
        for t in range(9):
            ky, kx = t // 3, t % 3
            off = ky * W + kx
            h_t = h_ref[pl.ds(off, n_out_rows), :].astype(jnp.bfloat16)
            acc = acc + jnp.dot(h_t, w2_ref[t],
                                preferred_element_type=jnp.float32)
        h2 = _gelu(acc + b2_ref[...])                         # (Ho*W, D) f32

        # ---- Squeeze-Excitation over the VALID Ho*Wo pixels only ----
        col = jax.lax.broadcasted_iota(jnp.int32, (n_out_rows, 1), 0) % W
        valid = col < Wo                                      # (Ho*W, 1)
        pooled = jnp.sum(jnp.where(valid, h2, 0.0), axis=0,
                         keepdims=True) * (1.0 / (Ho * Wo))   # (1, D)
        z = jnp.maximum(
            jnp.dot(pooled, sew1_ref[...],
                    preferred_element_type=jnp.float32) + seb1_ref[...], 0.0)
        gate = jax.nn.sigmoid(
            jnp.dot(z, sew2_ref[...],
                    preferred_element_type=jnp.float32) + seb2_ref[...])
        h2 = h2 * gate                                        # channel gating

        # ---- 1x1 projection, lane-dense (Cout padded to 128) output ----
        out = jnp.dot(h2.astype(jnp.bfloat16), w3_ref[...],
                      preferred_element_type=jnp.float32) + b3_ref[...]
        o_ref[0] = out.astype(o_ref.dtype)

    return kernel


def mbconv_forward(x_nchw, params, *, eps=1e-5):
    x = jnp.transpose(x_nchw, (0, 2, 3, 1)).astype(jnp.float32)   # NCHW -> NHWC
    B, H, W, c_in = x.shape
    d_model = params["w1"].shape[1]
    c_out = params["w3"].shape[1]
    d_se = params["se_w1"].shape[1]
    Ho, Wo = H - 2, W - 2
    npix_in = H * W
    n_out_rows = Ho * W                    # W-strided output rows (Wo valid/row)
    h_rows = ((npix_in + 2 + 7) // 8) * 8  # scratch rows (covers max tap shift)
    pad_rows = h_rows - npix_in
    c_out_pad = ((c_out + 127) // 128) * 128

    # --- fold BatchNorm (inference form) into the conv weights/biases ---
    s1 = params["bn1_gamma"] / jnp.sqrt(params["bn1_var"] + eps)
    t1 = params["bn1_beta"] - params["bn1_mean"] * s1
    s2 = params["bn2_gamma"] / jnp.sqrt(params["bn2_var"] + eps)
    t2 = params["bn2_beta"] - params["bn2_mean"] * s2

    w1f = (params["w1"] * s1[None, :]).astype(jnp.float32)            # (Cin, D)
    b1f = (params["b1"] * s1 + t1).reshape(1, d_model)
    w2f = (params["w2"] * s2[None, None, None, :]
           ).reshape(9, d_model, d_model).astype(jnp.bfloat16)        # (9, D, D)
    b2f = (params["b2"] * s2 + t2).reshape(1, d_model)

    w3p = jnp.zeros((d_model, c_out_pad), jnp.bfloat16
                    ).at[:, :c_out].set(params["w3"].astype(jnp.bfloat16))
    b3p = jnp.zeros((1, c_out_pad), jnp.float32).at[0, :c_out].set(params["b3"])

    x2d = x.reshape(B, npix_in, c_in)

    args = (
        x2d,
        w1f, b1f, w2f, b2f,
        params["se_w1"].astype(jnp.float32),
        params["se_b1"].reshape(1, d_se).astype(jnp.float32),
        params["se_w2"].astype(jnp.float32),
        params["se_b2"].reshape(1, d_model).astype(jnp.float32),
        w3p, b3p,
    )

    def const_spec(a):
        zeros = (0,) * a.ndim
        return pl.BlockSpec(a.shape, lambda b, _z=zeros: _z)

    in_specs = [pl.BlockSpec((1, npix_in, c_in), lambda b: (b, 0, 0))]
    in_specs += [const_spec(a) for a in args[1:]]
    out_specs = pl.BlockSpec((1, n_out_rows, c_out_pad), lambda b: (b, 0, 0))

    kernel = _make_kernel(H, W, c_in, d_model, n_out_rows, pad_rows)

    out_flat = pl.pallas_call(
        kernel,
        out_shape=jax.ShapeDtypeStruct((B, n_out_rows, c_out_pad), jnp.float32),
        grid=(B,),
        in_specs=in_specs,
        out_specs=out_specs,
        scratch_shapes=[pltpu.VMEM((h_rows, d_model), jnp.float32)],
        compiler_params=pltpu.CompilerParams(
            dimension_semantics=("parallel",)),
    )(*args)

    out = out_flat.reshape(B, Ho, W, c_out_pad)[:, :, :Wo, :c_out]
    return jnp.transpose(out, (0, 3, 1, 2))                           # -> NCHW


def mbconv_reference(x_nchw, params, *, eps=1e-5):
    """Plain-JAX f32 reference with identical semantics (correctness check)."""
    x = jnp.transpose(x_nchw, (0, 2, 3, 1)).astype(jnp.float32)
    h = jnp.einsum("bhwc,cd->bhwd", x, params["w1"]) + params["b1"]
    h = ((h - params["bn1_mean"]) / jnp.sqrt(params["bn1_var"] + eps)
         * params["bn1_gamma"] + params["bn1_beta"])
    h = _gelu(h)
    B, H, W, D = h.shape
    Ho, Wo = H - 2, W - 2
    acc = jnp.zeros((B, Ho, Wo, D), jnp.float32)
    for ky in range(3):
        for kx in range(3):
            acc = acc + jnp.einsum("bhwd,de->bhwe",
                                   h[:, ky:ky + Ho, kx:kx + Wo, :],
                                   params["w2"][ky, kx])
    h2 = acc + params["b2"]
    h2 = ((h2 - params["bn2_mean"]) / jnp.sqrt(params["bn2_var"] + eps)
          * params["bn2_gamma"] + params["bn2_beta"])
    h2 = _gelu(h2)
    pooled = jnp.mean(h2, axis=(1, 2))
    z = jnp.maximum(pooled @ params["se_w1"] + params["se_b1"], 0.0)
    gate = jax.nn.sigmoid(z @ params["se_w2"] + params["se_b2"])
    h2 = h2 * gate[:, None, None, :]
    out = jnp.einsum("bhwd,de->bhwe", h2, params["w3"]) + params["b3"]
    return jnp.transpose(out, (0, 3, 1, 2))


if __name__ == "__main__":
    # Small shapes consistent with the module: x is NCHW.
    B, in_dim, H, W = 2, 4, 16, 16
    d_model, out_dim, ratio = 32, 8, 16
    d_se = max(d_model // ratio, 1)

    key = jax.random.PRNGKey(0)
    ks = jax.random.split(key, 20)

    def nrm(k, shape, scale=0.1):
        return scale * jax.random.normal(k, shape, jnp.float32)

    params = dict(
        w1=nrm(ks[0], (in_dim, d_model)),
        b1=nrm(ks[1], (d_model,)),
        bn1_gamma=1.0 + nrm(ks[2], (d_model,)),
        bn1_beta=nrm(ks[3], (d_model,)),
        bn1_mean=nrm(ks[4], (d_model,)),
        bn1_var=1.0 + 0.2 * jax.random.uniform(ks[5], (d_model,), jnp.float32),
        w2=nrm(ks[6], (3, 3, d_model, d_model)),
        b2=nrm(ks[7], (d_model,)),
        bn2_gamma=1.0 + nrm(ks[8], (d_model,)),
        bn2_beta=nrm(ks[9], (d_model,)),
        bn2_mean=nrm(ks[10], (d_model,)),
        bn2_var=1.0 + 0.2 * jax.random.uniform(ks[11], (d_model,), jnp.float32),
        se_w1=nrm(ks[12], (d_model, d_se)),
        se_b1=nrm(ks[13], (d_se,)),
        se_w2=nrm(ks[14], (d_se, d_model)),
        se_b2=nrm(ks[15], (d_model,)),
        w3=nrm(ks[16], (d_model, out_dim)),
        b3=nrm(ks[17], (out_dim,)),
    )

    x = jax.random.normal(ks[18], (B, in_dim, H, W), jnp.float32)

    out = jax.block_until_ready(mbconv_forward(x, params))
    ref = mbconv_reference(x, params)

    assert out.shape == (B, out_dim, H - 2, W - 2), out.shape
    max_err = float(jnp.max(jnp.abs(out - ref)))
    # bf16 MXU operands (f32 accumulation) introduce ~1e-3-level deviations vs
    # the all-f32 reference; tolerance relaxed accordingly.
    assert jnp.allclose(out, ref, rtol=2e-2, atol=2e-2), f"max abs err {max_err}"

    print("KERNEL_OK")
</pallas_src>

<mosaic_0001>
module attributes {stable_mosaic.version = 11 : i64} {
  func.func @kernel(%arg0: i32, %arg1: memref<1x256x4xf32, #tpu.memory_space<vmem>>, %arg2: memref<4x32xf32, #tpu.memory_space<vmem>>, %arg3: memref<1x32xf32, #tpu.memory_space<vmem>>, %arg4: memref<9x32x32xbf16, #tpu.memory_space<vmem>>, %arg5: memref<1x32xf32, #tpu.memory_space<vmem>>, %arg6: memref<32x2xf32, #tpu.memory_space<vmem>>, %arg7: memref<1x2xf32, #tpu.memory_space<vmem>>, %arg8: memref<2x32xf32, #tpu.memory_space<vmem>>, %arg9: memref<1x32xf32, #tpu.memory_space<vmem>>, %arg10: memref<32x128xbf16, #tpu.memory_space<vmem>>, %arg11: memref<1x128xf32, #tpu.memory_space<vmem>>, %arg12: memref<1x224x128xf32, #tpu.memory_space<vmem>>, %arg13: memref<264x32xf32, #tpu.memory_space<vmem>>) attributes {dimension_semantics = [#tpu.dimension_semantics<parallel>], iteration_bounds = array<i64: 2>, scalar_prefetch = 0 : i64, scratch_operands = 1 : i64, tpu.core_type = #tpu.core_type<tc>, window_params = [{transform_indices = @transform_0, window_bounds = array<i64: 1, 256, 4>}, {pipeline_mode = #tpu.pipeline_mode<synchronous>, transform_indices = @transform_1, window_bounds = array<i64: 4, 32>}, {pipeline_mode = #tpu.pipeline_mode<synchronous>, transform_indices = @transform_2, window_bounds = array<i64: 1, 32>}, {pipeline_mode = #tpu.pipeline_mode<synchronous>, transform_indices = @transform_3, window_bounds = array<i64: 9, 32, 32>}, {pipeline_mode = #tpu.pipeline_mode<synchronous>, transform_indices = @transform_4, window_bounds = array<i64: 1, 32>}, {pipeline_mode = #tpu.pipeline_mode<synchronous>, transform_indices = @transform_5, window_bounds = array<i64: 32, 2>}, {pipeline_mode = #tpu.pipeline_mode<synchronous>, transform_indices = @transform_6, window_bounds = array<i64: 1, 2>}, {pipeline_mode = #tpu.pipeline_mode<synchronous>, transform_indices = @transform_7, window_bounds = array<i64: 2, 32>}, {pipeline_mode = #tpu.pipeline_mode<synchronous>, transform_indices = @transform_8, window_bounds = array<i64: 1, 32>}, {pipeline_mode = #tpu.pipeline_mode<synchronous>, transform_indices = @transform_9, window_bounds = array<i64: 32, 128>}, {pipeline_mode = #tpu.pipeline_mode<synchronous>, transform_indices = @transform_10, window_bounds = array<i64: 1, 128>}, {transform_indices = @transform_11, window_bounds = array<i64: 1, 224, 128>}]} {
    %c0 = arith.constant 0 : index
    %c0_0 = arith.constant 0 : index
    %c0_1 = arith.constant 0 : index
    %0 = vector.load %arg1[%c0, %c0_0, %c0_1] : memref<1x256x4xf32, #tpu.memory_space<vmem>>, vector<1x256x4xf32>
    %1 = vector.shape_cast %0 : vector<1x256x4xf32> to vector<256x4xf32>
    %cst = arith.constant 0.000000e+00 : f32
    %2 = vector.broadcast %cst : f32 to vector<256x32xf32>
    %c0_2 = arith.constant 0 : index
    %c0_3 = arith.constant 0 : index
    %3 = vector.load %arg3[%c0_2, %c0_3] : memref<1x32xf32, #tpu.memory_space<vmem>>, vector<1x32xf32>
    %4 = vector.broadcast %3 : vector<1x32xf32> to vector<256x32xf32>
    %5 = arith.addf %2, %4 : vector<256x32xf32>
    %6 = vector.extract_strided_slice %1 {offsets = [0, 0], sizes = [256, 1], strides = [1, 1]} : vector<256x4xf32> to vector<256x1xf32>
    %c0_4 = arith.constant 0 : index
    %c0_5 = arith.constant 0 : index
    %7 = vector.load %arg2[%c0_4, %c0_5] : memref<4x32xf32, #tpu.memory_space<vmem>>, vector<1x32xf32>
    %8 = vector.broadcast %6 : vector<256x1xf32> to vector<256x32xf32>
    %9 = vector.broadcast %7 : vector<1x32xf32> to vector<256x32xf32>
    %10 = arith.mulf %8, %9 : vector<256x32xf32>
    %11 = arith.addf %5, %10 : vector<256x32xf32>
    %12 = vector.extract_strided_slice %1 {offsets = [0, 1], sizes = [256, 1], strides = [1, 1]} : vector<256x4xf32> to vector<256x1xf32>
    %c1 = arith.constant 1 : index
    %c0_6 = arith.constant 0 : index
    %13 = vector.load %arg2[%c1, %c0_6] : memref<4x32xf32, #tpu.memory_space<vmem>>, vector<1x32xf32>
    %14 = vector.broadcast %12 : vector<256x1xf32> to vector<256x32xf32>
    %15 = vector.broadcast %13 : vector<1x32xf32> to vector<256x32xf32>
    %16 = arith.mulf %14, %15 : vector<256x32xf32>
    %17 = arith.addf %11, %16 : vector<256x32xf32>
    %18 = vector.extract_strided_slice %1 {offsets = [0, 2], sizes = [256, 1], strides = [1, 1]} : vector<256x4xf32> to vector<256x1xf32>
    %c2 = arith.constant 2 : index
    %c0_7 = arith.constant 0 : index
    %19 = vector.load %arg2[%c2, %c0_7] : memref<4x32xf32, #tpu.memory_space<vmem>>, vector<1x32xf32>
    %20 = vector.broadcast %18 : vector<256x1xf32> to vector<256x32xf32>
    %21 = vector.broadcast %19 : vector<1x32xf32> to vector<256x32xf32>
    %22 = arith.mulf %20, %21 : vector<256x32xf32>
    %23 = arith.addf %17, %22 : vector<256x32xf32>
    %24 = vector.extract_strided_slice %1 {offsets = [0, 3], sizes = [256, 1], strides = [1, 1]} : vector<256x4xf32> to vector<256x1xf32>
    %c3 = arith.constant 3 : index
    %c0_8 = arith.constant 0 : index
    %25 = vector.load %arg2[%c3, %c0_8] : memref<4x32xf32, #tpu.memory_space<vmem>>, vector<1x32xf32>
    %26 = vector.broadcast %24 : vector<256x1xf32> to vector<256x32xf32>
    %27 = vector.broadcast %25 : vector<1x32xf32> to vector<256x32xf32>
    %28 = arith.mulf %26, %27 : vector<256x32xf32>
    %29 = arith.addf %23, %28 : vector<256x32xf32>
    %30 = arith.mulf %29, %29 : vector<256x32xf32>
    %31 = arith.mulf %29, %30 : vector<256x32xf32>
    %cst_9 = arith.constant 4.471500e-02 : f32
    %32 = vector.broadcast %cst_9 : f32 to vector<256x32xf32>
    %33 = arith.mulf %32, %31 : vector<256x32xf32>
    %34 = arith.addf %29, %33 : vector<256x32xf32>
    %cst_10 = arith.constant 0.797884583 : f32
    %35 = vector.broadcast %cst_10 : f32 to vector<256x32xf32>
    %36 = arith.mulf %35, %34 : vector<256x32xf32>
    %37 = math.tanh %36 : vector<256x32xf32>
    %cst_11 = arith.constant 1.000000e+00 : f32
    %38 = vector.broadcast %cst_11 : f32 to vector<256x32xf32>
    %39 = arith.addf %38, %37 : vector<256x32xf32>
    %cst_12 = arith.constant 5.000000e-01 : f32
    %40 = vector.broadcast %cst_12 : f32 to vector<256x32xf32>
    %41 = arith.mulf %40, %39 : vector<256x32xf32>
    %42 = arith.mulf %29, %41 : vector<256x32xf32>
    %c0_13 = arith.constant 0 : index
    %c0_14 = arith.constant 0 : index
    %43 = vector.load %arg13[%c0_13, %c0_14] : memref<264x32xf32, #tpu.memory_space<vmem>>, vector<256x32xf32>
    tpu.vector_store %arg13[%c0_13, %c0_14], %42 {strides = array<i32>} : memref<264x32xf32, #tpu.memory_space<vmem>>, vector<256x32xf32>,
    %cst_15 = arith.constant 0.000000e+00 : f32
    %44 = vector.broadcast %cst_15 : f32 to vector<8x32xf32>
    %c256 = arith.constant 256 : index
    %c0_16 = arith.constant 0 : index
    %45 = vector.load %arg13[%c256, %c0_16] : memref<264x32xf32, #tpu.memory_space<vmem>>, vector<8x32xf32>
    tpu.vector_store %arg13[%c256, %c0_16], %44 {strides = array<i32>} : memref<264x32xf32, #tpu.memory_space<vmem>>, vector<8x32xf32>,
    %cst_17 = arith.constant 0.000000e+00 : f32
    %46 = vector.broadcast %cst_17 : f32 to vector<224x32xf32>
    %c0_18 = arith.constant 0 : index
    %c0_19 = arith.constant 0 : index
    %47 = vector.load %arg13[%c0_18, %c0_19] : memref<264x32xf32, #tpu.memory_space<vmem>>, vector<224x32xf32>
    %48 = arith.truncf %47 : vector<224x32xf32> to vector<224x32xbf16>
    %c0_20 = arith.constant 0 : index
    %c0_21 = arith.constant 0 : index
    %c0_22 = arith.constant 0 : index
    %49 = vector.load %arg4[%c0_20, %c0_21, %c0_22] : memref<9x32x32xbf16, #tpu.memory_space<vmem>>, vector<1x32x32xbf16>
    %50 = vector.shape_cast %49 : vector<1x32x32xbf16> to vector<32x32xbf16>
    %cst_23 = arith.constant dense<0.000000e+00> : vector<224x32xf32>
    %51 = tpu.matmul %48, %50, %cst_23 {dimension_numbers = #tpu.dot_dimension_numbers<[1], [0], [0], [1], [0, 0, 1, 1], [], []>} : vector<224x32xbf16>, vector<32x32xbf16>, vector<224x32xf32> -> vector<224x32xf32>
    %52 = arith.addf %46, %51 : vector<224x32xf32>
    %c1_24 = arith.constant 1 : index
    %c0_25 = arith.constant 0 : index
    %53 = vector.load %arg13[%c1_24, %c0_25] : memref<264x32xf32, #tpu.memory_space<vmem>>, vector<224x32xf32>
    %54 = arith.truncf %53 : vector<224x32xf32> to vector<224x32xbf16>
    %c1_26 = arith.constant 1 : index
    %c0_27 = arith.constant 0 : index
    %c0_28 = arith.constant 0 : index
    %55 = vector.load %arg4[%c1_26, %c0_27, %c0_28] : memref<9x32x32xbf16, #tpu.memory_space<vmem>>, vector<1x32x32xbf16>
    %56 = vector.shape_cast %55 : vector<1x32x32xbf16> to vector<32x32xbf16>
    %cst_29 = arith.constant dense<0.000000e+00> : vector<224x32xf32>
    %57 = tpu.matmul %54, %56, %cst_29 {dimension_numbers = #tpu.dot_dimension_numbers<[1], [0], [0], [1], [0, 0, 1, 1], [], []>} : vector<224x32xbf16>, vector<32x32xbf16>, vector<224x32xf32> -> vector<224x32xf32>
    %58 = arith.addf %52, %57 : vector<224x32xf32>
    %c2_30 = arith.constant 2 : index
    %c0_31 = arith.constant 0 : index
    %59 = vector.load %arg13[%c2_30, %c0_31] : memref<264x32xf32, #tpu.memory_space<vmem>>, vector<224x32xf32>
    %60 = arith.truncf %59 : vector<224x32xf32> to vector<224x32xbf16>
    %c2_32 = arith.constant 2 : index
    %c0_33 = arith.constant 0 : index
    %c0_34 = arith.constant 0 : index
    %61 = vector.load %arg4[%c2_32, %c0_33, %c0_34] : memref<9x32x32xbf16, #tpu.memory_space<vmem>>, vector<1x32x32xbf16>
    %62 = vector.shape_cast %61 : vector<1x32x32xbf16> to vector<32x32xbf16>
    %cst_35 = arith.constant dense<0.000000e+00> : vector<224x32xf32>
    %63 = tpu.matmul %60, %62, %cst_35 {dimension_numbers = #tpu.dot_dimension_numbers<[1], [0], [0], [1], [0, 0, 1, 1], [], []>} : vector<224x32xbf16>, vector<32x32xbf16>, vector<224x32xf32> -> vector<224x32xf32>
    %64 = arith.addf %58, %63 : vector<224x32xf32>
    %c16 = arith.constant 16 : index
    %c0_36 = arith.constant 0 : index
    %65 = vector.load %arg13[%c16, %c0_36] : memref<264x32xf32, #tpu.memory_space<vmem>>, vector<224x32xf32>
    %66 = arith.truncf %65 : vector<224x32xf32> to vector<224x32xbf16>
    %c3_37 = arith.constant 3 : index
    %c0_38 = arith.constant 0 : index
    %c0_39 = arith.constant 0 : index
    %67 = vector.load %arg4[%c3_37, %c0_38, %c0_39] : memref<9x32x32xbf16, #tpu.memory_space<vmem>>, vector<1x32x32xbf16>
    %68 = vector.shape_cast %67 : vector<1x32x32xbf16> to vector<32x32xbf16>
    %cst_40 = arith.constant dense<0.000000e+00> : vector<224x32xf32>
    %69 = tpu.matmul %66, %68, %cst_40 {dimension_numbers = #tpu.dot_dimension_numbers<[1], [0], [0], [1], [0, 0, 1, 1], [], []>} : vector<224x32xbf16>, vector<32x32xbf16>, vector<224x32xf32> -> vector<224x32xf32>
    %70 = arith.addf %64, %69 : vector<224x32xf32>
    %c17 = arith.constant 17 : index
    %c0_41 = arith.constant 0 : index
    %71 = vector.load %arg13[%c17, %c0_41] : memref<264x32xf32, #tpu.memory_space<vmem>>, vector<224x32xf32>
    %72 = arith.truncf %71 : vector<224x32xf32> to vector<224x32xbf16>
    %c4 = arith.constant 4 : index
    %c0_42 = arith.constant 0 : index
    %c0_43 = arith.constant 0 : index
    %73 = vector.load %arg4[%c4, %c0_42, %c0_43] : memref<9x32x32xbf16, #tpu.memory_space<vmem>>, vector<1x32x32xbf16>
    %74 = vector.shape_cast %73 : vector<1x32x32xbf16> to vector<32x32xbf16>
    %cst_44 = arith.constant dense<0.000000e+00> : vector<224x32xf32>
    %75 = tpu.matmul %72, %74, %cst_44 {dimension_numbers = #tpu.dot_dimension_numbers<[1], [0], [0], [1], [0, 0, 1, 1], [], []>} : vector<224x32xbf16>, vector<32x32xbf16>, vector<224x32xf32> -> vector<224x32xf32>
    %76 = arith.addf %70, %75 : vector<224x32xf32>
    %c18 = arith.constant 18 : index
    %c0_45 = arith.constant 0 : index
    %77 = vector.load %arg13[%c18, %c0_45] : memref<264x32xf32, #tpu.memory_space<vmem>>, vector<224x32xf32>
    %78 = arith.truncf %77 : vector<224x32xf32> to vector<224x32xbf16>
    %c5 = arith.constant 5 : index
    %c0_46 = arith.constant 0 : index
    %c0_47 = arith.constant 0 : index
    %79 = vector.load %arg4[%c5, %c0_46, %c0_47] : memref<9x32x32xbf16, #tpu.memory_space<vmem>>, vector<1x32x32xbf16>
    %80 = vector.shape_cast %79 : vector<1x32x32xbf16> to vector<32x32xbf16>
    %cst_48 = arith.constant dense<0.000000e+00> : vector<224x32xf32>
    %81 = tpu.matmul %78, %80, %cst_48 {dimension_numbers = #tpu.dot_dimension_numbers<[1], [0], [0], [1], [0, 0, 1, 1], [], []>} : vector<224x32xbf16>, vector<32x32xbf16>, vector<224x32xf32> -> vector<224x32xf32>
    %82 = arith.addf %76, %81 : vector<224x32xf32>
    %c32 = arith.constant 32 : index
    %c0_49 = arith.constant 0 : index
    %83 = vector.load %arg13[%c32, %c0_49] : memref<264x32xf32, #tpu.memory_space<vmem>>, vector<224x32xf32>
    %84 = arith.truncf %83 : vector<224x32xf32> to vector<224x32xbf16>
    %c6 = arith.constant 6 : index
    %c0_50 = arith.constant 0 : index
    %c0_51 = arith.constant 0 : index
    %85 = vector.load %arg4[%c6, %c0_50, %c0_51] : memref<9x32x32xbf16, #tpu.memory_space<vmem>>, vector<1x32x32xbf16>
    %86 = vector.shape_cast %85 : vector<1x32x32xbf16> to vector<32x32xbf16>
    %cst_52 = arith.constant dense<0.000000e+00> : vector<224x32xf32>
    %87 = tpu.matmul %84, %86, %cst_52 {dimension_numbers = #tpu.dot_dimension_numbers<[1], [0], [0], [1], [0, 0, 1, 1], [], []>} : vector<224x32xbf16>, vector<32x32xbf16>, vector<224x32xf32> -> vector<224x32xf32>
    %88 = arith.addf %82, %87 : vector<224x32xf32>
    %c33 = arith.constant 33 : index
    %c0_53 = arith.constant 0 : index
    %89 = vector.load %arg13[%c33, %c0_53] : memref<264x32xf32, #tpu.memory_space<vmem>>, vector<224x32xf32>
    %90 = arith.truncf %89 : vector<224x32xf32> to vector<224x32xbf16>
    %c7 = arith.constant 7 : index
    %c0_54 = arith.constant 0 : index
    %c0_55 = arith.constant 0 : index
    %91 = vector.load %arg4[%c7, %c0_54, %c0_55] : memref<9x32x32xbf16, #tpu.memory_space<vmem>>, vector<1x32x32xbf16>
    %92 = vector.shape_cast %91 : vector<1x32x32xbf16> to vector<32x32xbf16>
    %cst_56 = arith.constant dense<0.000000e+00> : vector<224x32xf32>
    %93 = tpu.matmul %90, %92, %cst_56 {dimension_numbers = #tpu.dot_dimension_numbers<[1], [0], [0], [1], [0, 0, 1, 1], [], []>} : vector<224x32xbf16>, vector<32x32xbf16>, vector<224x32xf32> -> vector<224x32xf32>
    %94 = arith.addf %88, %93 : vector<224x32xf32>
    %c34 = arith.constant 34 : index
    %c0_57 = arith.constant 0 : index
    %95 = vector.load %arg13[%c34, %c0_57] : memref<264x32xf32, #tpu.memory_space<vmem>>, vector<224x32xf32>
    %96 = arith.truncf %95 : vector<224x32xf32> to vector<224x32xbf16>
    %c8 = arith.constant 8 : index
    %c0_58 = arith.constant 0 : index
    %c0_59 = arith.constant 0 : index
    %97 = vector.load %arg4[%c8, %c0_58, %c0_59] : memref<9x32x32xbf16, #tpu.memory_space<vmem>>, vector<1x32x32xbf16>
    %98 = vector.shape_cast %97 : vector<1x32x32xbf16> to vector<32x32xbf16>
    %cst_60 = arith.constant dense<0.000000e+00> : vector<224x32xf32>
    %99 = tpu.matmul %96, %98, %cst_60 {dimension_numbers = #tpu.dot_dimension_numbers<[1], [0], [0], [1], [0, 0, 1, 1], [], []>} : vector<224x32xbf16>, vector<32x32xbf16>, vector<224x32xf32> -> vector<224x32xf32>
    %100 = arith.addf %94, %99 : vector<224x32xf32>
    %c0_61 = arith.constant 0 : index
    %c0_62 = arith.constant 0 : index
    %101 = vector.load %arg5[%c0_61, %c0_62] : memref<1x32xf32, #tpu.memory_space<vmem>>, vector<1x32xf32>
    %102 = vector.broadcast %101 : vector<1x32xf32> to vector<224x32xf32>
    %103 = arith.addf %100, %102 : vector<224x32xf32>
    %104 = arith.mulf %103, %103 : vector<224x32xf32>
    %105 = arith.mulf %103, %104 : vector<224x32xf32>
    %cst_63 = arith.constant 4.471500e-02 : f32
    %106 = vector.broadcast %cst_63 : f32 to vector<224x32xf32>
    %107 = arith.mulf %106, %105 : vector<224x32xf32>
    %108 = arith.addf %103, %107 : vector<224x32xf32>
    %cst_64 = arith.constant 0.797884583 : f32
    %109 = vector.broadcast %cst_64 : f32 to vector<224x32xf32>
    %110 = arith.mulf %109, %108 : vector<224x32xf32>
    %111 = math.tanh %110 : vector<224x32xf32>
    %cst_65 = arith.constant 1.000000e+00 : f32
    %112 = vector.broadcast %cst_65 : f32 to vector<224x32xf32>
    %113 = arith.addf %112, %111 : vector<224x32xf32>
    %cst_66 = arith.constant 5.000000e-01 : f32
    %114 = vector.broadcast %cst_66 : f32 to vector<224x32xf32>
    %115 = arith.mulf %114, %113 : vector<224x32xf32>
    %116 = arith.mulf %103, %115 : vector<224x32xf32>
    %117 = tpu.iota {dimensions = array<i32: 0>} : vector<224x1xi32>
    %c16_i32 = arith.constant 16 : i32
    %c0_i32 = arith.constant 0 : i32
    %118 = arith.cmpi eq, %c16_i32, %c0_i32 : i32
    %c1_i32 = arith.constant 1 : i32
    %119 = arith.select %118, %c1_i32, %c16_i32 : i32
    %120 = vector.broadcast %119 : i32 to vector<224x1xi32>
    %121 = arith.remsi %117, %120 : vector<224x1xi32>
    %c0_i32_67 = arith.constant 0 : i32
    %122 = vector.broadcast %c0_i32_67 : i32 to vector<224x1xi32>
    %123 = arith.cmpi ne, %121, %122 : vector<224x1xi32>
    %c0_i32_68 = arith.constant 0 : i32
    %124 = vector.broadcast %c0_i32_68 : i32 to vector<224x1xi32>
    %125 = arith.cmpi slt, %121, %124 : vector<224x1xi32>
    %c0_i32_69 = arith.constant 0 : i32
    %126 = arith.cmpi slt, %119, %c0_i32_69 : i32
    %127 = vector.broadcast %126 : i1 to vector<224x1xi1>
    %128 = vector.broadcast %127 : vector<224x1xi1> to vector<224x1xi1>
    %129 = arith.xori %125, %128 : vector<224x1xi1>
    %130 = arith.andi %129, %123 : vector<224x1xi1>
    %131 = vector.broadcast %119 : i32 to vector<224x1xi32>
    %132 = arith.addi %121, %131 : vector<224x1xi32>
    %133 = arith.select %130, %132, %121 : vector<224x1xi1>, vector<224x1xi32>
    %c14_i32 = arith.constant 14 : i32
    %134 = vector.broadcast %c14_i32 : i32 to vector<224x1xi32>
    %135 = arith.cmpi slt, %133, %134 : vector<224x1xi32>
    %cst_70 = arith.constant 0.000000e+00 : f32
    %136 = vector.shape_cast %135 : vector<224x1xi1> to vector<224x1xi1>
    %137 = vector.broadcast %136 : vector<224x1xi1> to vector<224x32xi1>
    %138 = vector.broadcast %cst_70 : f32 to vector<224x32xf32>
    %139 = arith.select %137, %116, %138 : vector<224x32xi1>, vector<224x32xf32>
    %cst_71 = arith.constant dense<0.000000e+00> : vector<32xf32>
    %140 = vector.multi_reduction <add>, %139, %cst_71 [0] : vector<224x32xf32> to vector<32xf32>
    %141 = vector.shape_cast %140 : vector<32xf32> to vector<1x32xf32>
    %cst_72 = arith.constant 0.00510204071 : f32
    %142 = vector.broadcast %cst_72 : f32 to vector<1x32xf32>
    %143 = arith.mulf %141, %142 : vector<1x32xf32>
    %c0_73 = arith.constant 0 : index
    %c0_74 = arith.constant 0 : index
    %144 = vector.load %arg6[%c0_73, %c0_74] : memref<32x2xf32, #tpu.memory_space<vmem>>, vector<32x2xf32>
    %cst_75 = arith.constant dense<0.000000e+00> : vector<1x2xf32>
    %145 = tpu.matmul %143, %144, %cst_75 {dimension_numbers = #tpu.dot_dimension_numbers<[1], [0], [0], [1], [0, 0, 1, 1], [], []>} : vector<1x32xf32>, vector<32x2xf32>, vector<1x2xf32> -> vector<1x2xf32>
    %c0_76 = arith.constant 0 : index
    %c0_77 = arith.constant 0 : index
    %146 = vector.load %arg7[%c0_76, %c0_77] : memref<1x2xf32, #tpu.memory_space<vmem>>, vector<1x2xf32>
    %147 = arith.addf %145, %146 : vector<1x2xf32>
    %cst_78 = arith.constant 0.000000e+00 : f32
    %148 = vector.broadcast %cst_78 : f32 to vector<1x2xf32>
    %149 = arith.maximumf %147, %148 : vector<1x2xf32>
    %c0_79 = arith.constant 0 : index
    %c0_80 = arith.constant 0 : index
    %150 = vector.load %arg8[%c0_79, %c0_80] : memref<2x32xf32, #tpu.memory_space<vmem>>, vector<2x32xf32>
    %cst_81 = arith.constant dense<0.000000e+00> : vector<1x32xf32>
    %151 = tpu.matmul %149, %150, %cst_81 {dimension_numbers = #tpu.dot_dimension_numbers<[1], [0], [0], [1], [0, 0, 1, 1], [], []>} : vector<1x2xf32>, vector<2x32xf32>, vector<1x32xf32> -> vector<1x32xf32>
    %c0_82 = arith.constant 0 : index
    %c0_83 = arith.constant 0 : index
    %152 = vector.load %arg9[%c0_82, %c0_83] : memref<1x32xf32, #tpu.memory_space<vmem>>, vector<1x32xf32>
    %153 = arith.addf %151, %152 : vector<1x32xf32>
    %154 = arith.negf %153 : vector<1x32xf32>
    %155 = math.exp %154 : vector<1x32xf32>
    %cst_84 = arith.constant 1.000000e+00 : f32
    %156 = vector.broadcast %cst_84 : f32 to vector<1x32xf32>
    %157 = arith.addf %156, %155 : vector<1x32xf32>
    %158 = arith.divf %156, %157 : vector<1x32xf32>
    %159 = vector.broadcast %158 : vector<1x32xf32> to vector<224x32xf32>
    %160 = arith.mulf %116, %159 : vector<224x32xf32>
    %161 = arith.truncf %160 : vector<224x32xf32> to vector<224x32xbf16>
    %c0_85 = arith.constant 0 : index
    %c0_86 = arith.constant 0 : index
    %162 = vector.load %arg10[%c0_85, %c0_86] : memref<32x128xbf16, #tpu.memory_space<vmem>>, vector<32x128xbf16>
    %cst_87 = arith.constant dense<0.000000e+00> : vector<224x128xf32>
    %163 = tpu.matmul %161, %162, %cst_87 {dimension_numbers = #tpu.dot_dimension_numbers<[1], [0], [0], [1], [0, 0, 1, 1], [], []>} : vector<224x32xbf16>, vector<32x128xbf16>, vector<224x128xf32> -> vector<224x128xf32>
    %c0_88 = arith.constant 0 : index
    %c0_89 = arith.constant 0 : index
    %164 = vector.load %arg11[%c0_88, %c0_89] : memref<1x128xf32, #tpu.memory_space<vmem>>, vector<1x128xf32>
    %165 = vector.broadcast %164 : vector<1x128xf32> to vector<224x128xf32>
    %166 = arith.addf %163, %165 : vector<224x128xf32>
    %c0_90 = arith.constant 0 : index
    %c0_91 = arith.constant 0 : index
    %c0_92 = arith.constant 0 : index
    %167 = vector.load %arg12[%c0_90, %c0_91, %c0_92] : memref<1x224x128xf32, #tpu.memory_space<vmem>>, vector<1x224x128xf32>
    %168 = vector.shape_cast %167 : vector<1x224x128xf32> to vector<224x128xf32>
    %169 = vector.shape_cast %166 : vector<224x128xf32> to vector<1x224x128xf32>
    tpu.vector_store %arg12[%c0_90, %c0_91, %c0_92], %169 {strides = array<i32>} : memref<1x224x128xf32, #tpu.memory_space<vmem>>, vector<1x224x128xf32>,
    return
  }
  func.func @transform_0(%arg0: i32) -> (i32, i32, i32) {
    %c0_i32 = arith.constant 0 : i32
    %c0_i32_0 = arith.constant 0 : i32
    %c0_i32_1 = arith.constant 0 : i32
    return %arg0, %c0_i32, %c0_i32_0 : i32, i32, i32
  }
  func.func @transform_1(%arg0: i32) -> (i32, i32) {
    %c0_i32 = arith.constant 0 : i32
    %c0_i32_0 = arith.constant 0 : i32
    %c0_i32_1 = arith.constant 0 : i32
    return %c0_i32, %c0_i32_0 : i32, i32
  }
  func.func @transform_2(%arg0: i32) -> (i32, i32) {
    %c0_i32 = arith.constant 0 : i32
    %c0_i32_0 = arith.constant 0 : i32
    %c0_i32_1 = arith.constant 0 : i32
    return %c0_i32, %c0_i32_0 : i32, i32
  }
  func.func @transform_3(%arg0: i32) -> (i32, i32, i32) {
    %c0_i32 = arith.constant 0 : i32
    %c0_i32_0 = arith.constant 0 : i32
    %c0_i32_1 = arith.constant 0 : i32
    %c0_i32_2 = arith.constant 0 : i32
    return %c0_i32, %c0_i32_0, %c0_i32_1 : i32, i32, i32
  }
  func.func @transform_4(%arg0: i32) -> (i32, i32) {
    %c0_i32 = arith.constant 0 : i32
    %c0_i32_0 = arith.constant 0 : i32
    %c0_i32_1 = arith.constant 0 : i32
    return %c0_i32, %c0_i32_0 : i32, i32
  }
  func.func @transform_5(%arg0: i32) -> (i32, i32) {
    %c0_i32 = arith.constant 0 : i32
    %c0_i32_0 = arith.constant 0 : i32
    %c0_i32_1 = arith.constant 0 : i32
    return %c0_i32, %c0_i32_0 : i32, i32
  }
  func.func @transform_6(%arg0: i32) -> (i32, i32) {
    %c0_i32 = arith.constant 0 : i32
    %c0_i32_0 = arith.constant 0 : i32
    %c0_i32_1 = arith.constant 0 : i32
    return %c0_i32, %c0_i32_0 : i32, i32
  }
  func.func @transform_7(%arg0: i32) -> (i32, i32) {
    %c0_i32 = arith.constant 0 : i32
    %c0_i32_0 = arith.constant 0 : i32
    %c0_i32_1 = arith.constant 0 : i32
    return %c0_i32, %c0_i32_0 : i32, i32
  }
  func.func @transform_8(%arg0: i32) -> (i32, i32) {
    %c0_i32 = arith.constant 0 : i32
    %c0_i32_0 = arith.constant 0 : i32
    %c0_i32_1 = arith.constant 0 : i32
    return %c0_i32, %c0_i32_0 : i32, i32
  }
  func.func @transform_9(%arg0: i32) -> (i32, i32) {
    %c0_i32 = arith.constant 0 : i32
    %c0_i32_0 = arith.constant 0 : i32
    %c0_i32_1 = arith.constant 0 : i32
    return %c0_i32, %c0_i32_0 : i32, i32
  }
  func.func @transform_10(%arg0: i32) -> (i32, i32) {
    %c0_i32 = arith.constant 0 : i32
    %c0_i32_0 = arith.constant 0 : i32
    %c0_i32_1 = arith.constant 0 : i32
    return %c0_i32, %c0_i32_0 : i32, i32
  }
  func.func @transform_11(%arg0: i32) -> (i32, i32, i32) {
    %c0_i32 = arith.constant 0 : i32
    %c0_i32_0 = arith.constant 0 : i32
    %c0_i32_1 = arith.constant 0 : i32
    return %arg0, %c0_i32, %c0_i32_0 : i32, i32, i32
  }
}

</mosaic_0001>

<llo_original>
// kernel: tpu_custom_call.1
$region0: #{tpu_custom_call.1}
  #allocation0 [shape = 'u32[]', space=smem, size = 0x4, offset = 0x4, fixed_abs, tag = 'smem constant byte address 0x4 - core index']
  #allocation1 [shape = 'u32[144,128]{1,0:T(1,128)}', space=vmem, size = 0x12000, scoped, tag = 'internal scratch']
  #allocation2 [shape = 'f32[264,32]{1,0:T(8,128)}', space=vmem, size = 0x21000, scoped, tag = 'scratch operand']
  %s0 = inlined_call_operand.vmem [shape: f32[2,256,4], index: 0, kind: input, shape index: {}]
  %s1 = inlined_call_operand.vmem [shape: f32[4,32], index: 1, kind: input, shape index: {}]
  %s2 = inlined_call_operand.vmem [shape: f32[1,32], index: 2, kind: input, shape index: {}]
  %s3 = inlined_call_operand.vmem [shape: bf16[9,32,32], index: 3, kind: input, shape index: {}]
  %s4 = inlined_call_operand.vmem [shape: f32[1,32], index: 4, kind: input, shape index: {}]
  %s5 = inlined_call_operand.vmem [shape: f32[32,2], index: 5, kind: input, shape index: {}]
  %s6 = inlined_call_operand.vmem [shape: f32[1,2], index: 6, kind: input, shape index: {}]
  %s7 = inlined_call_operand.vmem [shape: f32[2,32], index: 7, kind: input, shape index: {}]
  %s8 = inlined_call_operand.vmem [shape: f32[1,32], index: 8, kind: input, shape index: {}]
  %s9 = inlined_call_operand.vmem [shape: bf16[32,128], index: 9, kind: input, shape index: {}]
  %s10 = inlined_call_operand.vmem [shape: f32[1,128], index: 10, kind: input, shape index: {}]
  %s11 = inlined_call_operand.hbm [shape: f32[2,224,128], index: 11, kind: output, shape index: {}]
  %s12 = sld [smem:[#allocation0]]
  $region77: #{tpu_custom_call.1} parent=0
    _
  %s14 = ssub.s32 1, %s12
  %s15 = scalar_select 0, %s14, %s12
  $region1: #{tpu_custom_call.1} parent=0
    #allocation3 [shape = 'u8[229376]{0}', space=vmem, size = 0x38000, scoped, tag = 'output window, operand 0']
    #allocation4 [shape = 's32[2]{0}', space=sflag, size = 0x8, scoped, tag = 'scoped memory for tpu_custom_call.1']
    %16 = vsyncpa [#allocation4], 0
    %s17 = scalar_lea.sflag [#allocation4], 1
    %18 = vsyncpa %s17, 0
    loop: start=0, step=1, limit=4
    $region2: #{tpu_custom_call.1} parent=1 // loop_pre_header
      _
    $region3: #{tpu_custom_call.1} parent=1 // loop_header
      %s20 = sphi 0, %s24
      %p21 = scmp.ge.s32.totalorder %s20, 4
      %s30 = sphi 0, %s32
      %s33 = sphi 0, %s30
      %s34 = sphi 0, %s33
      %s50 = sphi 0, %s34
      %s54 = sphi 0, %s54
      %s56 = sphi 0, %s54
      %s57 = sphi 0, %s56
      %s71 = sphi 0, %s57
      %s75 = sphi 0, %s75
      %s77 = sphi 0, %s75
      %s78 = sphi 0, %s77
      %s92 = sphi 0, %s78
      %s96 = sphi 0, %s96
      %s98 = sphi 0, %s96
      %s99 = sphi 0, %s98
      %s113 = sphi 0, %s99
      %s117 = sphi 0, %s117
      %s119 = sphi 0, %s117
      %s120 = sphi 0, %s119
      %s134 = sphi 0, %s120
      %s138 = sphi 0, %s138
      %s140 = sphi 0, %s138
      %s141 = sphi 0, %s140
      %s155 = sphi 0, %s141
      %s159 = sphi 0, %s159
      %s161 = sphi 0, %s159
      %s162 = sphi 0, %s161
      %s176 = sphi 0, %s162
      %s180 = sphi 0, %s180
      %s182 = sphi 0, %s180
      %s183 = sphi 0, %s182
      %s197 = sphi 0, %s183
      %s201 = sphi 0, %s201
      %s203 = sphi 0, %s201
      %s204 = sphi 0, %s203
      %s218 = sphi 0, %s204
      %s222 = sphi 0, %s222
      %s224 = sphi 0, %s222
      %s225 = sphi 0, %s224
      %s239 = sphi 0, %s225
      %s243 = sphi 0, %s243
      %s245 = sphi 0, %s243
      %s246 = sphi 0, %s245
      %s260 = sphi 0, %s246
      %s266 = sphi 0, %s268
      %s269 = sphi 0, %s266
      %s270 = sphi 0, %s269
      %s286 = sphi 0, %s270
    $region4: #{tpu_custom_call.1} parent=1 // loop_header_branch
      %23 = sbr.rel (%p21) target = $region8
    $region5: #{tpu_custom_call.1} parent=1 // loop_body
      %s25 = ssub.s32 %s20, 1
      %s26 = ssub.s32 %s20, 2
      %s27 = sadd.s32 %s20, 1
      %s28 = ssub.s32 %s20, %s27
      %p29 = scmp.eq.s32.totalorder %s28, 0
      %s31 = sadd.s32 %s30, 1
      %s32 = scalar_select %p29, %s30, %s31
      %p35 = pneg %p29
      %p36 = scmp.eq.s32.totalorder %s20, 1
      %p37 = por %p35, %p36
      %p38 = scmp.ne.s32.totalorder %s30, %s33
      %p39 = scmp.eq.s32.totalorder %s20, 0
      %p40 = por %p38, %p39
      %p41 = scmp.ne.s32.totalorder %s30, %s33
      %p42 = scmp.eq.s32.totalorder %s25, 1
      %p43 = por %p41, %p42
      %p44 = scmp.ne.s32.totalorder %s33, %s34
      %p45 = scmp.eq.s32.totalorder %s25, 0
      %p46 = por %p44, %p45
      %p47 = scmp.ne.s32.totalorder %s33, %s34
      %p48 = scmp.eq.s32.totalorder %s26, 1
      %p49 = por %p47, %p48
      %p51 = scmp.ne.s32.totalorder %s34, %s50
      %p52 = scmp.eq.s32.totalorder %s26, 0
      %p53 = por %p51, %p52
      %s55 = sadd.s32 %s54, 1
      %p58 = scmp.eq.s32.totalorder %s20, 1
      %p59 = scmp.ne.s32.totalorder %s54, %s56
      %p60 = scmp.eq.s32.totalorder %s20, 0
      %p61 = por %p59, %p60
      %p62 = scmp.ne.s32.totalorder %s54, %s56
      %p63 = scmp.eq.s32.totalorder %s25, 1
      %p64 = por %p62, %p63
      %p65 = scmp.ne.s32.totalorder %s56, %s57
      %p66 = scmp.eq.s32.totalorder %s25, 0
      %p67 = por %p65, %p66
      %p68 = scmp.ne.s32.totalorder %s56, %s57
      %p69 = scmp.eq.s32.totalorder %s26, 1
      %p70 = por %p68, %p69
      %p72 = scmp.ne.s32.totalorder %s57, %s71
      %p73 = scmp.eq.s32.totalorder %s26, 0
      %p74 = por %p72, %p73
      %s76 = sadd.s32 %s75, 1
      %p79 = scmp.eq.s32.totalorder %s20, 1
      %p80 = scmp.ne.s32.totalorder %s75, %s77
      %p81 = scmp.eq.s32.totalorder %s20, 0
      %p82 = por %p80, %p81
      %p83 = scmp.ne.s32.totalorder %s75, %s77
      %p84 = scmp.eq.s32.totalorder %s25, 1
      %p85 = por %p83, %p84
      %p86 = scmp.ne.s32.totalorder %s77, %s78
      %p87 = scmp.eq.s32.totalorder %s25, 0
      %p88 = por %p86, %p87
      %p89 = scmp.ne.s32.totalorder %s77, %s78
      %p90 = scmp.eq.s32.totalorder %s26, 1
      %p91 = por %p89, %p90
      %p93 = scmp.ne.s32.totalorder %s78, %s92
      %p94 = scmp.eq.s32.totalorder %s26, 0
      %p95 = por %p93, %p94
      %s97 = sadd.s32 %s96, 1
      %p100 = scmp.eq.s32.totalorder %s20, 1
      %p101 = scmp.ne.s32.totalorder %s96, %s98
      %p102 = scmp.eq.s32.totalorder %s20, 0
      %p103 = por %p101, %p102
      %p104 = scmp.ne.s32.totalorder %s96, %s98
      %p105 = scmp.eq.s32.totalorder %s25, 1
      %p106 = por %p104, %p105
      %p107 = scmp.ne.s32.totalorder %s98, %s99
      %p108 = scmp.eq.s32.totalorder %s25, 0
      %p109 = por %p107, %p108
      %p110 = scmp.ne.s32.totalorder %s98, %s99
      %p111 = scmp.eq.s32.totalorder %s26, 1
      %p112 = por %p110, %p111
      %p114 = scmp.ne.s32.totalorder %s99, %s113
      %p115 = scmp.eq.s32.totalorder %s26, 0
      %p116 = por %p114, %p115
      %s118 = sadd.s32 %s117, 1
      %p121 = scmp.eq.s32.totalorder %s20, 1
      %p122 = scmp.ne.s32.totalorder %s117, %s119
      %p123 = scmp.eq.s32.totalorder %s20, 0
      %p124 = por %p122, %p123
      %p125 = scmp.ne.s32.totalorder %s117, %s119
      %p126 = scmp.eq.s32.totalorder %s25, 1
      %p127 = por %p125, %p126
      %p128 = scmp.ne.s32.totalorder %s119, %s120
      %p129 = scmp.eq.s32.totalorder %s25, 0
      %p130 = por %p128, %p129
      %p131 = scmp.ne.s32.totalorder %s119, %s120
      %p132 = scmp.eq.s32.totalorder %s26, 1
      %p133 = por %p131, %p132
      %p135 = scmp.ne.s32.totalorder %s120, %s134
      %p136 = scmp.eq.s32.totalorder %s26, 0
      %p137 = por %p135, %p136
      %s139 = sadd.s32 %s138, 1
      %p142 = scmp.eq.s32.totalorder %s20, 1
      %p143 = scmp.ne.s32.totalorder %s138, %s140
      %p144 = scmp.eq.s32.totalorder %s20, 0
      %p145 = por %p143, %p144
      %p146 = scmp.ne.s32.totalorder %s138, %s140
      %p147 = scmp.eq.s32.totalorder %s25, 1
      %p148 = por %p146, %p147
      %p149 = scmp.ne.s32.totalorder %s140, %s141
      %p150 = scmp.eq.s32.totalorder %s25, 0
      %p151 = por %p149, %p150
      %p152 = scmp.ne.s32.totalorder %s140, %s141
      %p153 = scmp.eq.s32.totalorder %s26, 1
      %p154 = por %p152, %p153
      %p156 = scmp.ne.s32.totalorder %s141, %s155
      %p157 = scmp.eq.s32.totalorder %s26, 0
      %p158 = por %p156, %p157
      %s160 = sadd.s32 %s159, 1
      %p163 = scmp.eq.s32.totalorder %s20, 1
      %p164 = scmp.ne.s32.totalorder %s159, %s161
      %p165 = scmp.eq.s32.totalorder %s20, 0
      %p166 = por %p164, %p165
      %p167 = scmp.ne.s32.totalorder %s159, %s161
      %p168 = scmp.eq.s32.totalorder %s25, 1
      %p169 = por %p167, %p168
      %p170 = scmp.ne.s32.totalorder %s161, %s162
      %p171 = scmp.eq.s32.totalorder %s25, 0
      %p172 = por %p170, %p171
      %p173 = scmp.ne.s32.totalorder %s161, %s162
      %p174 = scmp.eq.s32.totalorder %s26, 1
      %p175 = por %p173, %p174
      %p177 = scmp.ne.s32.totalorder %s162, %s176
      %p178 = scmp.eq.s32.totalorder %s26, 0
      %p179 = por %p177, %p178
      %s181 = sadd.s32 %s180, 1
      %p184 = scmp.eq.s32.totalorder %s20, 1
      %p185 = scmp.ne.s32.totalorder %s180, %s182
      %p186 = scmp.eq.s32.totalorder %s20, 0
      %p187 = por %p185, %p186
      %p188 = scmp.ne.s32.totalorder %s180, %s182
      %p189 = scmp.eq.s32.totalorder %s25, 1
      %p190 = por %p188, %p189
      %p191 = scmp.ne.s32.totalorder %s182, %s183
      %p192 = scmp.eq.s32.totalorder %s25, 0
      %p193 = por %p191, %p192
      %p194 = scmp.ne.s32.totalorder %s182, %s183
      %p195 = scmp.eq.s32.totalorder %s26, 1
      %p196 = por %p194, %p195
      %p198 = scmp.ne.s32.totalorder %s183, %s197
      %p199 = scmp.eq.s32.totalorder %s26, 0
      %p200 = por %p198, %p199
      %s202 = sadd.s32 %s201, 1
      %p205 = scmp.eq.s32.totalorder %s20, 1
      %p206 = scmp.ne.s32.totalorder %s201, %s203
      %p207 = scmp.eq.s32.totalorder %s20, 0
      %p208 = por %p206, %p207
      %p209 = scmp.ne.s32.totalorder %s201, %s203
      %p210 = scmp.eq.s32.totalorder %s25, 1
      %p211 = por %p209, %p210
      %p212 = scmp.ne.s32.totalorder %s203, %s204
      %p213 = scmp.eq.s32.totalorder %s25, 0
      %p214 = por %p212, %p213
      %p215 = scmp.ne.s32.totalorder %s203, %s204
      %p216 = scmp.eq.s32.totalorder %s26, 1
      %p217 = por %p215, %p216
      %p219 = scmp.ne.s32.totalorder %s204, %s218
      %p220 = scmp.eq.s32.totalorder %s26, 0
      %p221 = por %p219, %p220
      %s223 = sadd.s32 %s222, 1
      %p226 = scmp.eq.s32.totalorder %s20, 1
      %p227 = scmp.ne.s32.totalorder %s222, %s224
      %p228 = scmp.eq.s32.totalorder %s20, 0
      %p229 = por %p227, %p228
      %p230 = scmp.ne.s32.totalorder %s222, %s224
      %p231 = scmp.eq.s32.totalorder %s25, 1
      %p232 = por %p230, %p231
      %p233 = scmp.ne.s32.totalorder %s224, %s225
      %p234 = scmp.eq.s32.totalorder %s25, 0
      %p235 = por %p233, %p234
      %p236 = scmp.ne.s32.totalorder %s224, %s225
      %p237 = scmp.eq.s32.totalorder %s26, 1
      %p238 = por %p236, %p237
      %p240 = scmp.ne.s32.totalorder %s225, %s239
      %p241 = scmp.eq.s32.totalorder %s26, 0
      %p242 = por %p240, %p241
      %s244 = sadd.s32 %s243, 1
      %p247 = scmp.eq.s32.totalorder %s20, 1
      %p248 = scmp.ne.s32.totalorder %s243, %s245
      %p249 = scmp.eq.s32.totalorder %s20, 0
      %p250 = por %p248, %p249
      %p251 = scmp.ne.s32.totalorder %s243, %s245
      %p252 = scmp.eq.s32.totalorder %s25, 1
      %p253 = por %p251, %p252
      %p254 = scmp.ne.s32.totalorder %s245, %s246
      %p255 = scmp.eq.s32.totalorder %s25, 0
      %p256 = por %p254, %p255
      %p257 = scmp.ne.s32.totalorder %s245, %s246
      %p258 = scmp.eq.s32.totalorder %s26, 1
      %p259 = por %p257, %p258
      %p261 = scmp.ne.s32.totalorder %s246, %s260
      %p262 = scmp.eq.s32.totalorder %s26, 0
      %p263 = por %p261, %p262
      %s264 = ssub.s32 %s20, %s27
      %p265 = scmp.eq.s32.totalorder %s264, 0
      %s267 = sadd.s32 %s266, 1
      %s268 = scalar_select %p265, %s266, %s267
      %p271 = pneg %p265
      %p272 = scmp.eq.s32.totalorder %s20, 1
      %p273 = por %p271, %p272
      %p274 = scmp.ne.s32.totalorder %s266, %s269
      %p275 = scmp.eq.s32.totalorder %s20, 0
      %p276 = por %p274, %p275
      %p277 = scmp.ne.s32.totalorder %s266, %s269
      %p278 = scmp.eq.s32.totalorder %s25, 1
      %p279 = por %p277, %p278
      %p280 = scmp.ne.s32.totalorder %s269, %s270
      %p281 = scmp.eq.s32.totalorder %s25, 0
      %p282 = por %p280, %p281
      %p283 = scmp.ne.s32.totalorder %s269, %s270
      %p284 = scmp.eq.s32.totalorder %s26, 1
      %p285 = por %p283, %p284
      %p287 = scmp.ne.s32.totalorder %s270, %s286
      %p288 = scmp.eq.s32.totalorder %s26, 0
      %p289 = por %p287, %p288
      %p290 = scmp.le.s32.totalorder 1, %s20
      %p291 = scmp.lt.s32.totalorder %s20, 3
      %p292 = pnand %p290, %p291
      %p293 = pneg %p292
      // Predicated region
      $region9: #{tpu_custom_call.1} parent=5 // pred_check
        _
      $region10: #{tpu_custom_call.1} parent=5 // pred_check_branch
        %295 = sbr.rel (%p292) target = $region12
      $region11: #{tpu_custom_call.1} parent=5 // pred_region
        %s296 = ssub.s32 %s20, 1
        // Predicated region
        $region13: #{tpu_custom_call.1} parent=11 // pred_check
          %p297 = pneg %p67
        $region14: #{tpu_custom_call.1} parent=11 // pred_check_branch
          %299 = sbr.rel (%p297) target = $region16
        $region15: #{tpu_custom_call.1} parent=11 // pred_region
          _
        $region16: #{tpu_custom_call.1} parent=11 // pred_fallthru
          _
        // Predicated region
        $region17: #{tpu_custom_call.1} parent=11 // pred_check
          %p300 = pneg %p88
        $region18: #{tpu_custom_call.1} parent=11 // pred_check_branch
          %302 = sbr.rel (%p300) target = $region20
        $region19: #{tpu_custom_call.1} parent=11 // pred_region
          _
        $region20: #{tpu_custom_call.1} parent=11 // pred_fallthru
          _
        // Predicated region
        $region21: #{tpu_custom_call.1} parent=11 // pred_check
          %p303 = pneg %p109
        $region22: #{tpu_custom_call.1} parent=11 // pred_check_branch
          %305 = sbr.rel (%p303) target = $region24
        $region23: #{tpu_custom_call.1} parent=11 // pred_region
          _
        $region24: #{tpu_custom_call.1} parent=11 // pred_fallthru
          _
        // Predicated region
        $region25: #{tpu_custom_call.1} parent=11 // pred_check
          %p306 = pneg %p130
        $region26: #{tpu_custom_call.1} parent=11 // pred_check_branch
          %308 = sbr.rel (%p306) target = $region28
        $region27: #{tpu_custom_call.1} parent=11 // pred_region
          _
        $region28: #{tpu_custom_call.1} parent=11 // pred_fallthru
          _
        // Predicated region
        $region29: #{tpu_custom_call.1} parent=11 // pred_check
          %p309 = pneg %p151
        $region30: #{tpu_custom_call.1} parent=11 // pred_check_branch
          %311 = sbr.rel (%p309) target = $region32
        $region31: #{tpu_custom_call.1} parent=11 // pred_region
          _
        $region32: #{tpu_custom_call.1} parent=11 // pred_fallthru
          _
        // Predicated region
        $region33: #{tpu_custom_call.1} parent=11 // pred_check
          %p312 = pneg %p172
        $region34: #{tpu_custom_call.1} parent=11 // pred_check_branch
          %314 = sbr.rel (%p312) target = $region36
        $region35: #{tpu_custom_call.1} parent=11 // pred_region
          _
        $region36: #{tpu_custom_call.1} parent=11 // pred_fallthru
          _
        // Predicated region
        $region37: #{tpu_custom_call.1} parent=11 // pred_check
          %p315 = pneg %p193
        $region38: #{tpu_custom_call.1} parent=11 // pred_check_branch
          %317 = sbr.rel (%p315) target = $region40
        $region39: #{tpu_custom_call.1} parent=11 // pred_region
          _
        $region40: #{tpu_custom_call.1} parent=11 // pred_fallthru
          _
        // Predicated region
        $region41: #{tpu_custom_call.1} parent=11 // pred_check
          %p318 = pneg %p214
        $region42: #{tpu_custom_call.1} parent=11 // pred_check_branch
          %320 = sbr.rel (%p318) target = $region44
        $region43: #{tpu_custom_call.1} parent=11 // pred_region
          _
        $region44: #{tpu_custom_call.1} parent=11 // pred_fallthru
          _
        // Predicated region
        $region45: #{tpu_custom_call.1} parent=11 // pred_check
          %p321 = pneg %p235
        $region46: #{tpu_custom_call.1} parent=11 // pred_check_branch
          %323 = sbr.rel (%p321) target = $region48
        $region47: #{tpu_custom_call.1} parent=11 // pred_region
          _
        $region48: #{tpu_custom_call.1} parent=11 // pred_fallthru
          _
        // Predicated region
        $region49: #{tpu_custom_call.1} parent=11 // pred_check
          %p324 = pneg %p256
        $region50: #{tpu_custom_call.1} parent=11 // pred_check_branch
          %326 = sbr.rel (%p324) target = $region52
        $region51: #{tpu_custom_call.1} parent=11 // pred_region
          _
        $region52: #{tpu_custom_call.1} parent=11 // pred_fallthru
          _
      $region12: #{tpu_custom_call.1} parent=5 // pred_fallthru
        _
      %p327 = scmp.lt.s32.totalorder %s20, 2
      // Predicated region
      $region53: #{tpu_custom_call.1} parent=5 // pred_check
        %p328 = pneg %p327
      $region54: #{tpu_custom_call.1} parent=5 // pred_check_branch
        %330 = sbr.rel (%p328) target = $region56
      $region55: #{tpu_custom_call.1} parent=5 // pred_region
        // Predicated region
        $region57: #{tpu_custom_call.1} parent=55 // pred_check
          %p331 = pneg %p40
        $region58: #{tpu_custom_call.1} parent=55 // pred_check_branch
          %333 = sbr.rel (%p331) target = $region60
        $region59: #{tpu_custom_call.1} parent=55 // pred_region
          %p334 = scmp.lt.s32.totalorder %s20, 1
          %s335 = scalar_select %p334, %s20, 1
          %s336 = smul.addr %s335, 32
          %s337 = smul.addr %s336, 8
          %s338 = scalar_lea.vmem %s0, %s337
        $region60: #{tpu_custom_call.1} parent=55 // pred_fallthru
          _
      $region56: #{tpu_custom_call.1} parent=5 // pred_fallthru
        _
      %p339 = scmp.le.s32.totalorder 1, %s20
      %p340 = scmp.lt.s32.totalorder %s20, 3
      %p341 = pnand %p339, %p340
      %p342 = pneg %p341
      // Predicated region
      $region61: #{tpu_custom_call.1} parent=5 // pred_check
        _
      $region62: #{tpu_custom_call.1} parent=5 // pred_check_branch
        %344 = sbr.rel (%p341) target = $region64
      $region63: #{tpu_custom_call.1} parent=5 // pred_region
        %s345 = ssub.s32 %s20, 1
        %p346 = scmp.lt.s32.totalorder %s25, 1
        %s347 = scalar_select %p346, %s25, 1
        %s348 = smul.addr %s347, 32
        %s349 = smul.addr %s348, 8
        %s350 = scalar_lea.vmem %s0, %s349
        %p351 = pneg %p46
        %p352 = pneg %p43
        %p353 = pneg %p67
        %p354 = pneg %p64
        %p355 = pneg %p88
        %p356 = pneg %p85
        %p357 = pneg %p109
        %p358 = pneg %p106
        %p359 = pneg %p130
        %p360 = pneg %p127
        %p361 = pneg %p151
        %p362 = pneg %p148
        %p363 = pneg %p172
        %p364 = pneg %p169
        %p365 = pneg %p193
        %p366 = pneg %p190
        %p367 = pneg %p214
        %p368 = pneg %p211
        %p369 = pneg %p235
        %p370 = pneg %p232
        %p371 = pneg %p256
        %p372 = pneg %p253
        %p373 = pneg %p282
        %p374 = pneg %p279
        %s375 = sand.u32 %s269, 1
        %s376 = scalar_lea.sflag [#allocation4], %s375
        %s377 = sand.u32 %s269, 1
        %s378 = smul.addr %s377, 224
        %s379 = scalar_lea.vmem [#allocation3], %s378
        %p380 = scmp.lt.s32.totalorder %s25, 1
        %s381 = scalar_select %p380, %s25, 1
        %s382 = smul.addr %s381, 32
        %s383 = smul.addr %s382, 8
        %s384 = scalar_lea.vmem %s0, %s383
        %v386 = vld [vmem:[%s384] sm:$0xff]
        %v387 = vld [vmem:[%s384 + $0x8] sm:$0xff]
        %v388 = vld [vmem:[%s384 + $0x10] sm:$0xff]
        %v389 = vld [vmem:[%s384 + $0x18] sm:$0xff]
        %v390 = vld [vmem:[%s384 + $0x20] sm:$0xff]
        %v391 = vld [vmem:[%s384 + $0x28] sm:$0xff]
        %v392 = vld [vmem:[%s384 + $0x30] sm:$0xff]
        %v393 = vld [vmem:[%s384 + $0x38] sm:$0xff]
        %v394 = vld [vmem:[%s384 + $0x40] sm:$0xff]
        %v395 = vld [vmem:[%s384 + $0x48] sm:$0xff]
        %v396 = vld [vmem:[%s384 + $0x50] sm:$0xff]
        %v397 = vld [vmem:[%s384 + $0x58] sm:$0xff]
        %v398 = vld [vmem:[%s384 + $0x60] sm:$0xff]
        %v399 = vld [vmem:[%s384 + $0x68] sm:$0xff]
        %v400 = vld [vmem:[%s384 + $0x70] sm:$0xff]
        %v401 = vld [vmem:[%s384 + $0x78] sm:$0xff]
        %v402 = vld [vmem:[%s384 + $0x80] sm:$0xff]
        %v403 = vld [vmem:[%s384 + $0x88] sm:$0xff]
        %v404 = vld [vmem:[%s384 + $0x90] sm:$0xff]
        %v405 = vld [vmem:[%s384 + $0x98] sm:$0xff]
        %v406 = vld [vmem:[%s384 + $0xa0] sm:$0xff]
        %v407 = vld [vmem:[%s384 + $0xa8] sm:$0xff]
        %v408 = vld [vmem:[%s384 + $0xb0] sm:$0xff]
        %v409 = vld [vmem:[%s384 + $0xb8] sm:$0xff]
        %v410 = vld [vmem:[%s384 + $0xc0] sm:$0xff]
        %v411 = vld [vmem:[%s384 + $0xc8] sm:$0xff]
        %v412 = vld [vmem:[%s384 + $0xd0] sm:$0xff]
        %v413 = vld [vmem:[%s384 + $0xd8] sm:$0xff]
        %v414 = vld [vmem:[%s384 + $0xe0] sm:$0xff]
        %v415 = vld [vmem:[%s384 + $0xe8] sm:$0xff]
        %v416 = vld [vmem:[%s384 + $0xf0] sm:$0xff]
        %v417 = vld [vmem:[%s384 + $0xf8] sm:$0xff]
        %v418 = vld [vmem:[%s2] sm:$0x1]
        %v420 = vlaneseq
        %v421 = vshrl.u32 %v420, 7
        %v422 = vsub.s32 0, %v421
        %v423 = vrot.slane %v418, %v422
        %v425 = vadd.f32 %v423, 0.0
        %v426 = vld [vmem:[%s1] sm:$0x1]
        %428 = vset.pattern.permute.xlu0 0
        %429 = vperm.xlu0 %428, %v386
        %v430 = vpop.permute.xlu0 %429
        %433 = vset.pattern.permute.xlu0 0
        %434 = vperm.xlu0 %433, %v387
        %v435 = vpop.permute.xlu0 %434
        %438 = vset.pattern.permute.xlu0 0
        %439 = vperm.xlu0 %438, %v388
        %v440 = vpop.permute.xlu0 %439
        %443 = vset.pattern.permute.xlu0 0
        %444 = vperm.xlu0 %443, %v389
        %v445 = vpop.permute.xlu0 %444
        %448 = vset.pattern.permute.xlu0 0
        %449 = vperm.xlu0 %448, %v390
        %v450 = vpop.permute.xlu0 %449
        %453 = vset.pattern.permute.xlu0 0
        %454 = vperm.xlu0 %453, %v391
        %v455 = vpop.permute.xlu0 %454
        %458 = vset.pattern.permute.xlu0 0
        %459 = vperm.xlu0 %458, %v392
        %v460 = vpop.permute.xlu0 %459
        %463 = vset.pattern.permute.xlu0 0
        %464 = vperm.xlu0 %463, %v393
        %v465 = vpop.permute.xlu0 %464
        %468 = vset.pattern.permute.xlu0 0
        %469 = vperm.xlu0 %468, %v394
        %v470 = vpop.permute.xlu0 %469
        %473 = vset.pattern.permute.xlu0 0
        %474 = vperm.xlu0 %473, %v395
        %v475 = vpop.permute.xlu0 %474
        %478 = vset.pattern.permute.xlu0 0
        %479 = vperm.xlu0 %478, %v396
        %v480 = vpop.permute.xlu0 %479
        %483 = vset.pattern.permute.xlu0 0
        %484 = vperm.xlu0 %483, %v397
        %v485 = vpop.permute.xlu0 %484
        %488 = vset.pattern.permute.xlu0 0
        %489 = vperm.xlu0 %488, %v398
        %v490 = vpop.permute.xlu0 %489
        %493 = vset.pattern.permute.xlu0 0
        %494 = vperm.xlu0 %493, %v399
        %v495 = vpop.permute.xlu0 %494
        %498 = vset.pattern.permute.xlu0 0
        %499 = vperm.xlu0 %498, %v400
        %v500 = vpop.permute.xlu0 %499
        %503 = vset.pattern.permute.xlu0 0
        %504 = vperm.xlu0 %503, %v401
        %v505 = vpop.permute.xlu0 %504
        %508 = vset.pattern.permute.xlu0 0
        %509 = vperm.xlu0 %508, %v402
        %v510 = vpop.permute.xlu0 %509
        %513 = vset.pattern.permute.xlu0 0
        %514 = vperm.xlu0 %513, %v403
        %v515 = vpop.permute.xlu0 %514
        %518 = vset.pattern.permute.xlu0 0
        %519 = vperm.xlu0 %518, %v404
        %v520 = vpop.permute.xlu0 %519
        %523 = vset.pattern.permute.xlu0 0
        %524 = vperm.xlu0 %523, %v405
        %v525 = vpop.permute.xlu0 %524
        %528 = vset.pattern.permute.xlu0 0
        %529 = vperm.xlu0 %528, %v406
        %v530 = vpop.permute.xlu0 %529
        %533 = vset.pattern.permute.xlu0 0
        %534 = vperm.xlu0 %533, %v407
        %v535 = vpop.permute.xlu0 %534
        %538 = vset.pattern.permute.xlu0 0
        %539 = vperm.xlu0 %538, %v408
        %v540 = vpop.permute.xlu0 %539
        %543 = vset.pattern.permute.xlu0 0
        %544 = vperm.xlu0 %543, %v409
        %v545 = vpop.permute.xlu0 %544
        %548 = vset.pattern.permute.xlu0 0
        %549 = vperm.xlu0 %548, %v410
        %v550 = vpop.permute.xlu0 %549
        %553 = vset.pattern.permute.xlu0 0
        %554 = vperm.xlu0 %553, %v411
        %v555 = vpop.permute.xlu0 %554
        %558 = vset.pattern.permute.xlu0 0
        %559 = vperm.xlu0 %558, %v412
        %v560 = vpop.permute.xlu0 %559
        %563 = vset.pattern.permute.xlu0 0
        %564 = vperm.xlu0 %563, %v413
        %v565 = vpop.permute.xlu0 %564
        %568 = vset.pattern.permute.xlu0 0
        %569 = vperm.xlu0 %568, %v414
        %v570 = vpop.permute.xlu0 %569
        %573 = vset.pattern.permute.xlu0 0
        %574 = vperm.xlu0 %573, %v415
        %v575 = vpop.permute.xlu0 %574
        %578 = vset.pattern.permute.xlu0 0
        %579 = vperm.xlu0 %578, %v416
        %v580 = vpop.permute.xlu0 %579
        %583 = vset.pattern.permute.xlu0 0
        %584 = vperm.xlu0 %583, %v417
        %v585 = vpop.permute.xlu0 %584
        %v587 = vlaneseq
        %v588 = vshrl.u32 %v587, 7
        %v589 = vsub.s32 0, %v588
        %v590 = vrot.slane %v426, %v589
        %v591 = vmul.f32 %v430, %v590
        %v592 = vmul.f32 %v435, %v590
        %v593 = vmul.f32 %v440, %v590
        %v594 = vmul.f32 %v445, %v590
        %v595 = vmul.f32 %v450, %v590
        %v596 = vmul.f32 %v455, %v590
        %v597 = vmul.f32 %v460, %v590
        %v598 = vmul.f32 %v465, %v590
        %v599 = vmul.f32 %v470, %v590
        %v600 = vmul.f32 %v475, %v590
        %v601 = vmul.f32 %v480, %v590
        %v602 = vmul.f32 %v485, %v590
        %v603 = vmul.f32 %v490, %v590
        %v604 = vmul.f32 %v495, %v590
        %v605 = vmul.f32 %v500, %v590
        %v606 = vmul.f32 %v505, %v590
        %v607 = vmul.f32 %v510, %v590
        %v608 = vmul.f32 %v515, %v590
        %v609 = vmul.f32 %v520, %v590
        %v610 = vmul.f32 %v525, %v590
        %v611 = vmul.f32 %v530, %v590
        %v612 = vmul.f32 %v535, %v590
        %v613 = vmul.f32 %v540, %v590
        %v614 = vmul.f32 %v545, %v590
        %v615 = vmul.f32 %v550, %v590
        %v616 = vmul.f32 %v555, %v590
        %v617 = vmul.f32 %v560, %v590
        %v618 = vmul.f32 %v565, %v590
        %v619 = vmul.f32 %v570, %v590
        %v620 = vmul.f32 %v575, %v590
        %v621 = vmul.f32 %v580, %v590
        %v622 = vmul.f32 %v585, %v590
        %v623 = vadd.f32 %v425, %v591
        %v624 = vadd.f32 %v425, %v592
        %v625 = vadd.f32 %v425, %v593
        %v626 = vadd.f32 %v425, %v594
        %v627 = vadd.f32 %v425, %v595
        %v628 = vadd.f32 %v425, %v596
        %v629 = vadd.f32 %v425, %v597
        %v630 = vadd.f32 %v425, %v598
        %v631 = vadd.f32 %v425, %v599
        %v632 = vadd.f32 %v425, %v600
        %v633 = vadd.f32 %v425, %v601
        %v634 = vadd.f32 %v425, %v602
        %v635 = vadd.f32 %v425, %v603
        %v636 = vadd.f32 %v425, %v604
        %v637 = vadd.f32 %v425, %v605
        %v638 = vadd.f32 %v425, %v606
        %v639 = vadd.f32 %v425, %v607
        %v640 = vadd.f32 %v425, %v608
        %v641 = vadd.f32 %v425, %v609
        %v642 = vadd.f32 %v425, %v610
        %v643 = vadd.f32 %v425, %v611
        %v644 = vadd.f32 %v425, %v612
        %v645 = vadd.f32 %v425, %v613
        %v646 = vadd.f32 %v425, %v614
        %v647 = vadd.f32 %v425, %v615
        %v648 = vadd.f32 %v425, %v616
        %v649 = vadd.f32 %v425, %v617
        %v650 = vadd.f32 %v425, %v618
        %v651 = vadd.f32 %v425, %v619
        %v652 = vadd.f32 %v425, %v620
        %v653 = vadd.f32 %v425, %v621
        %v654 = vadd.f32 %v425, %v622
        %v655 = vld [vmem:[%s1 + $0x1] sm:$0x1]
        %656 = vset.pattern.permute.xlu0 1
        %657 = vperm.xlu0 %656, %v386
        %v658 = vpop.permute.xlu0 %657
        %660 = vset.pattern.permute.xlu0 1
        %661 = vperm.xlu0 %660, %v387
        %v662 = vpop.permute.xlu0 %661
        %664 = vset.pattern.permute.xlu0 1
        %665 = vperm.xlu0 %664, %v388
        %v666 = vpop.permute.xlu0 %665
        %668 = vset.pattern.permute.xlu0 1
        %669 = vperm.xlu0 %668, %v389
        %v670 = vpop.permute.xlu0 %669
        %672 = vset.pattern.permute.xlu0 1
        %673 = vperm.xlu0 %672, %v390
        %v674 = vpop.permute.xlu0 %673
        %676 = vset.pattern.permute.xlu0 1
        %677 = vperm.xlu0 %676, %v391
        %v678 = vpop.permute.xlu0 %677
        %680 = vset.pattern.permute.xlu0 1
        %681 = vperm.xlu0 %680, %v392
        %v682 = vpop.permute.xlu0 %681
        %684 = vset.pattern.permute.xlu0 1
        %685 = vperm.xlu0 %684, %v393
        %v686 = vpop.permute.xlu0 %685
        %688 = vset.pattern.permute.xlu0 1
        %689 = vperm.xlu0 %688, %v394
        %v690 = vpop.permute.xlu0 %689
        %692 = vset.pattern.permute.xlu0 1
        %693 = vperm.xlu0 %692, %v395
        %v694 = vpop.permute.xlu0 %693
        %696 = vset.pattern.permute.xlu0 1
        %697 = vperm.xlu0 %696, %v396
        %v698 = vpop.permute.xlu0 %697
        %700 = vset.pattern.permute.xlu0 1
        %701 = vperm.xlu0 %700, %v397
        %v702 = vpop.permute.xlu0 %701
        %704 = vset.pattern.permute.xlu0 1
        %705 = vperm.xlu0 %704, %v398
        %v706 = vpop.permute.xlu0 %705
        %708 = vset.pattern.permute.xlu0 1
        %709 = vperm.xlu0 %708, %v399
        %v710 = vpop.permute.xlu0 %709
        %712 = vset.pattern.permute.xlu0 1
        %713 = vperm.xlu0 %712, %v400
        %v714 = vpop.permute.xlu0 %713
        %716 = vset.pattern.permute.xlu0 1
        %717 = vperm.xlu0 %716, %v401
        %v718 = vpop.permute.xlu0 %717
        %720 = vset.pattern.permute.xlu0 1
        %721 = vperm.xlu0 %720, %v402
        %v722 = vpop.permute.xlu0 %721
        %724 = vset.pattern.permute.xlu0 1
        %725 = vperm.xlu0 %724, %v403
        %v726 = vpop.permute.xlu0 %725
        %728 = vset.pattern.permute.xlu0 1
        %729 = vperm.xlu0 %728, %v404
        %v730 = vpop.permute.xlu0 %729
        %732 = vset.pattern.permute.xlu0 1
        %733 = vperm.xlu0 %732, %v405
        %v734 = vpop.permute.xlu0 %733
        %736 = vset.pattern.permute.xlu0 1
        %737 = vperm.xlu0 %736, %v406
        %v738 = vpop.permute.xlu0 %737
        %740 = vset.pattern.permute.xlu0 1
        %741 = vperm.xlu0 %740, %v407
        %v742 = vpop.permute.xlu0 %741
        %744 = vset.pattern.permute.xlu0 1
        %745 = vperm.xlu0 %744, %v408
        %v746 = vpop.permute.xlu0 %745
        %748 = vset.pattern.permute.xlu0 1
        %749 = vperm.xlu0 %748, %v409
        %v750 = vpop.permute.xlu0 %749
        %752 = vset.pattern.permute.xlu0 1
        %753 = vperm.xlu0 %752, %v410
        %v754 = vpop.permute.xlu0 %753
        %756 = vset.pattern.permute.xlu0 1
        %757 = vperm.xlu0 %756, %v411
        %v758 = vpop.permute.xlu0 %757
        %760 = vset.pattern.permute.xlu0 1
        %761 = vperm.xlu0 %760, %v412
        %v762 = vpop.permute.xlu0 %761
        %764 = vset.pattern.permute.xlu0 1
        %765 = vperm.xlu0 %764, %v413
        %v766 = vpop.permute.xlu0 %765
        %768 = vset.pattern.permute.xlu0 1
        %769 = vperm.xlu0 %768, %v414
        %v770 = vpop.permute.xlu0 %769
        %772 = vset.pattern.permute.xlu0 1
        %773 = vperm.xlu0 %772, %v415
        %v774 = vpop.permute.xlu0 %773
        %776 = vset.pattern.permute.xlu0 1
        %777 = vperm.xlu0 %776, %v416
        %v778 = vpop.permute.xlu0 %777
        %780 = vset.pattern.permute.xlu0 1
        %781 = vperm.xlu0 %780, %v417
        %v782 = vpop.permute.xlu0 %781
        %v784 = vlaneseq
        %v785 = vshrl.u32 %v784, 7
        %v786 = vsub.s32 0, %v785
        %v787 = vrot.slane %v655, %v786
        %v788 = vmul.f32 %v658, %v787
        %v789 = vmul.f32 %v662, %v787
        %v790 = vmul.f32 %v666, %v787
        %v791 = vmul.f32 %v670, %v787
        %v792 = vmul.f32 %v674, %v787
        %v793 = vmul.f32 %v678, %v787
        %v794 = vmul.f32 %v682, %v787
        %v795 = vmul.f32 %v686, %v787
        %v796 = vmul.f32 %v690, %v787
        %v797 = vmul.f32 %v694, %v787
        %v798 = vmul.f32 %v698, %v787
        %v799 = vmul.f32 %v702, %v787
        %v800 = vmul.f32 %v706, %v787
        %v801 = vmul.f32 %v710, %v787
        %v802 = vmul.f32 %v714, %v787
        %v803 = vmul.f32 %v718, %v787
        %v804 = vmul.f32 %v722, %v787
        %v805 = vmul.f32 %v726, %v787
        %v806 = vmul.f32 %v730, %v787
        %v807 = vmul.f32 %v734, %v787
        %v808 = vmul.f32 %v738, %v787
        %v809 = vmul.f32 %v742, %v787
        %v810 = vmul.f32 %v746, %v787
        %v811 = vmul.f32 %v750, %v787
        %v812 = vmul.f32 %v754, %v787
        %v813 = vmul.f32 %v758, %v787
        %v814 = vmul.f32 %v762, %v787
        %v815 = vmul.f32 %v766, %v787
        %v816 = vmul.f32 %v770, %v787
        %v817 = vmul.f32 %v774, %v787
        %v818 = vmul.f32 %v778, %v787
        %v819 = vmul.f32 %v782, %v787
        %v820 = vadd.f32 %v623, %v788
        %v821 = vadd.f32 %v624, %v789
        %v822 = vadd.f32 %v625, %v790
        %v823 = vadd.f32 %v626, %v791
        %v824 = vadd.f32 %v627, %v792
        %v825 = vadd.f32 %v628, %v793
        %v826 = vadd.f32 %v629, %v794
        %v827 = vadd.f32 %v630, %v795
        %v828 = vadd.f32 %v631, %v796
        %v829 = vadd.f32 %v632, %v797
        %v830 = vadd.f32 %v633, %v798
        %v831 = vadd.f32 %v634, %v799
        %v832 = vadd.f32 %v635, %v800
        %v833 = vadd.f32 %v636, %v801
        %v834 = vadd.f32 %v637, %v802
        %v835 = vadd.f32 %v638, %v803
        %v836 = vadd.f32 %v639, %v804
        %v837 = vadd.f32 %v640, %v805
        %v838 = vadd.f32 %v641, %v806
        %v839 = vadd.f32 %v642, %v807
        %v840 = vadd.f32 %v643, %v808
        %v841 = vadd.f32 %v644, %v809
        %v842 = vadd.f32 %v645, %v810
        %v843 = vadd.f32 %v646, %v811
        %v844 = vadd.f32 %v647, %v812
        %v845 = vadd.f32 %v648, %v813
        %v846 = vadd.f32 %v649, %v814
        %v847 = vadd.f32 %v650, %v815
        %v848 = vadd.f32 %v651, %v816
        %v849 = vadd.f32 %v652, %v817
        %v850 = vadd.f32 %v653, %v818
        %v851 = vadd.f32 %v654, %v819
        %v852 = vld [vmem:[%s1 + $0x2] sm:$0x1]
        %853 = vset.pattern.permute.xlu0 2
        %854 = vperm.xlu0 %853, %v386
        %v855 = vpop.permute.xlu0 %854
        %857 = vset.pattern.permute.xlu0 2
        %858 = vperm.xlu0 %857, %v387
        %v859 = vpop.permute.xlu0 %858
        %861 = vset.pattern.permute.xlu0 2
        %862 = vperm.xlu0 %861, %v388
        %v863 = vpop.permute.xlu0 %862
        %865 = vset.pattern.permute.xlu0 2
        %866 = vperm.xlu0 %865, %v389
        %v867 = vpop.permute.xlu0 %866
        %869 = vset.pattern.permute.xlu0 2
        %870 = vperm.xlu0 %869, %v390
        %v871 = vpop.permute.xlu0 %870
        %873 = vset.pattern.permute.xlu0 2
        %874 = vperm.xlu0 %873, %v391
        %v875 = vpop.permute.xlu0 %874
        %877 = vset.pattern.permute.xlu0 2
        %878 = vperm.xlu0 %877, %v392
        %v879 = vpop.permute.xlu0 %878
        %881 = vset.pattern.permute.xlu0 2
        %882 = vperm.xlu0 %881, %v393
        %v883 = vpop.permute.xlu0 %882
        %885 = vset.pattern.permute.xlu0 2
        %886 = vperm.xlu0 %885, %v394
        %v887 = vpop.permute.xlu0 %886
        %889 = vset.pattern.permute.xlu0 2
        %890 = vperm.xlu0 %889, %v395
        %v891 = vpop.permute.xlu0 %890
        %893 = vset.pattern.permute.xlu0 2
        %894 = vperm.xlu0 %893, %v396
        %v895 = vpop.permute.xlu0 %894
        %897 = vset.pattern.permute.xlu0 2
        %898 = vperm.xlu0 %897, %v397
        %v899 = vpop.permute.xlu0 %898
        %901 = vset.pattern.permute.xlu0 2
        %902 = vperm.xlu0 %901, %v398
        %v903 = vpop.permute.xlu0 %902
        %905 = vset.pattern.permute.xlu0 2
        %906 = vperm.xlu0 %905, %v399
        %v907 = vpop.permute.xlu0 %906
        %909 = vset.pattern.permute.xlu0 2
        %910 = vperm.xlu0 %909, %v400
        %v911 = vpop.permute.xlu0 %910
        %913 = vset.pattern.permute.xlu0 2
        %914 = vperm.xlu0 %913, %v401
        %v915 = vpop.permute.xlu0 %914
        %917 = vset.pattern.permute.xlu0 2
        %918 = vperm.xlu0 %917, %v402
        %v919 = vpop.permute.xlu0 %918
        %921 = vset.pattern.permute.xlu0 2
        %922 = vperm.xlu0 %921, %v403
        %v923 = vpop.permute.xlu0 %922
        %925 = vset.pattern.permute.xlu0 2
        %926 = vperm.xlu0 %925, %v404
        %v927 = vpop.permute.xlu0 %926
        %929 = vset.pattern.permute.xlu0 2
        %930 = vperm.xlu0 %929, %v405
        %v931 = vpop.permute.xlu0 %930
        %933 = vset.pattern.permute.xlu0 2
        %934 = vperm.xlu0 %933, %v406
        %v935 = vpop.permute.xlu0 %934
        %937 = vset.pattern.permute.xlu0 2
        %938 = vperm.xlu0 %937, %v407
        %v939 = vpop.permute.xlu0 %938
        %941 = vset.pattern.permute.xlu0 2
        %942 = vperm.xlu0 %941, %v408
        %v943 = vpop.permute.xlu0 %942
        %945 = vset.pattern.permute.xlu0 2
        %946 = vperm.xlu0 %945, %v409
        %v947 = vpop.permute.xlu0 %946
        %949 = vset.pattern.permute.xlu0 2
        %950 = vperm.xlu0 %949, %v410
        %v951 = vpop.permute.xlu0 %950
        %953 = vset.pattern.permute.xlu0 2
        %954 = vperm.xlu0 %953, %v411
        %v955 = vpop.permute.xlu0 %954
        %957 = vset.pattern.permute.xlu0 2
        %958 = vperm.xlu0 %957, %v412
        %v959 = vpop.permute.xlu0 %958
        %961 = vset.pattern.permute.xlu0 2
        %962 = vperm.xlu0 %961, %v413
        %v963 = vpop.permute.xlu0 %962
        %965 = vset.pattern.permute.xlu0 2
        %966 = vperm.xlu0 %965, %v414
        %v967 = vpop.permute.xlu0 %966
        %969 = vset.pattern.permute.xlu0 2
        %970 = vperm.xlu0 %969, %v415
        %v971 = vpop.permute.xlu0 %970
        %973 = vset.pattern.permute.xlu0 2
        %974 = vperm.xlu0 %973, %v416
        %v975 = vpop.permute.xlu0 %974
        %977 = vset.pattern.permute.xlu0 2
        %978 = vperm.xlu0 %977, %v417
        %v979 = vpop.permute.xlu0 %978
        %v981 = vlaneseq
        %v982 = vshrl.u32 %v981, 7
        %v983 = vsub.s32 0, %v982
        %v984 = vrot.slane %v852, %v983
        %v985 = vmul.f32 %v855, %v984
        %v986 = vmul.f32 %v859, %v984
        %v987 = vmul.f32 %v863, %v984
        %v988 = vmul.f32 %v867, %v984
        %v989 = vmul.f32 %v871, %v984
        %v990 = vmul.f32 %v875, %v984
        %v991 = vmul.f32 %v879, %v984
        %v992 = vmul.f32 %v883, %v984
        %v993 = vmul.f32 %v887, %v984
        %v994 = vmul.f32 %v891, %v984
        %v995 = vmul.f32 %v895, %v984
        %v996 = vmul.f32 %v899, %v984
        %v997 = vmul.f32 %v903, %v984
        %v998 = vmul.f32 %v907, %v984
        %v999 = vmul.f32 %v911, %v984
        %v1000 = vmul.f32 %v915, %v984
        %v1001 = vmul.f32 %v919, %v984
        %v1002 = vmul.f32 %v923, %v984
        %v1003 = vmul.f32 %v927, %v984
        %v1004 = vmul.f32 %v931, %v984
        %v1005 = vmul.f32 %v935, %v984
        %v1006 = vmul.f32 %v939, %v984
        %v1007 = vmul.f32 %v943, %v984
        %v1008 = vmul.f32 %v947, %v984
        %v1009 = vmul.f32 %v951, %v984
        %v1010 = vmul.f32 %v955, %v984
        %v1011 = vmul.f32 %v959, %v984
        %v1012 = vmul.f32 %v963, %v984
        %v1013 = vmul.f32 %v967, %v984
        %v1014 = vmul.f32 %v971, %v984
        %v1015 = vmul.f32 %v975, %v984
        %v1016 = vmul.f32 %v979, %v984
        %v1017 = vadd.f32 %v820, %v985
        %v1018 = vadd.f32 %v821, %v986
        %v1019 = vadd.f32 %v822, %v987
        %v1020 = vadd.f32 %v823, %v988
        %v1021 = vadd.f32 %v824, %v989
        %v1022 = vadd.f32 %v825, %v990
        %v1023 = vadd.f32 %v826, %v991
        %v1024 = vadd.f32 %v827, %v992
        %v1025 = vadd.f32 %v828, %v993
        %v1026 = vadd.f32 %v829, %v994
        %v1027 = vadd.f32 %v830, %v995
        %v1028 = vadd.f32 %v831, %v996
        %v1029 = vadd.f32 %v832, %v997
        %v1030 = vadd.f32 %v833, %v998
        %v1031 = vadd.f32 %v834, %v999
        %v1032 = vadd.f32 %v835, %v1000
        %v1033 = vadd.f32 %v836, %v1001
        %v1034 = vadd.f32 %v837, %v1002
        %v1035 = vadd.f32 %v838, %v1003
        %v1036 = vadd.f32 %v839, %v1004
        %v1037 = vadd.f32 %v840, %v1005
        %v1038 = vadd.f32 %v841, %v1006
        %v1039 = vadd.f32 %v842, %v1007
        %v1040 = vadd.f32 %v843, %v1008
        %v1041 = vadd.f32 %v844, %v1009
        %v1042 = vadd.f32 %v845, %v1010
        %v1043 = vadd.f32 %v846, %v1011
        %v1044 = vadd.f32 %v847, %v1012
        %v1045 = vadd.f32 %v848, %v1013
        %v1046 = vadd.f32 %v849, %v1014
        %v1047 = vadd.f32 %v850, %v1015
        %v1048 = vadd.f32 %v851, %v1016
        %v1049 = vld [vmem:[%s1 + $0x3] sm:$0x1]
        %1050 = vset.pattern.permute.xlu0 3
        %1051 = vperm.xlu0 %1050, %v386
        %v1052 = vpop.permute.xlu0 %1051
        %1054 = vset.pattern.permute.xlu0 3
        %1055 = vperm.xlu0 %1054, %v387
        %v1056 = vpop.permute.xlu0 %1055
        %1058 = vset.pattern.permute.xlu0 3
        %1059 = vperm.xlu0 %1058, %v388
        %v1060 = vpop.permute.xlu0 %1059
        %1062 = vset.pattern.permute.xlu0 3
        %1063 = vperm.xlu0 %1062, %v389
        %v1064 = vpop.permute.xlu0 %1063
        %1066 = vset.pattern.permute.xlu0 3
        %1067 = vperm.xlu0 %1066, %v390
        %v1068 = vpop.permute.xlu0 %1067
        %1070 = vset.pattern.permute.xlu0 3
        %1071 = vperm.xlu0 %1070, %v391
        %v1072 = vpop.permute.xlu0 %1071
        %1074 = vset.pattern.permute.xlu0 3
        %1075 = vperm.xlu0 %1074, %v392
        %v1076 = vpop.permute.xlu0 %1075
        %1078 = vset.pattern.permute.xlu0 3
        %1079 = vperm.xlu0 %1078, %v393
        %v1080 = vpop.permute.xlu0 %1079
        %1082 = vset.pattern.permute.xlu0 3
        %1083 = vperm.xlu0 %1082, %v394
        %v1084 = vpop.permute.xlu0 %1083
        %1086 = vset.pattern.permute.xlu0 3
        %1087 = vperm.xlu0 %1086, %v395
        %v1088 = vpop.permute.xlu0 %1087
        %1090 = vset.pattern.permute.xlu0 3
        %1091 = vperm.xlu0 %1090, %v396
        %v1092 = vpop.permute.xlu0 %1091
        %1094 = vset.pattern.permute.xlu0 3
        %1095 = vperm.xlu0 %1094, %v397
        %v1096 = vpop.permute.xlu0 %1095
        %1098 = vset.pattern.permute.xlu0 3
        %1099 = vperm.xlu0 %1098, %v398
        %v1100 = vpop.permute.xlu0 %1099
        %1102 = vset.pattern.permute.xlu0 3
        %1103 = vperm.xlu0 %1102, %v399
        %v1104 = vpop.permute.xlu0 %1103
        %1106 = vset.pattern.permute.xlu0 3
        %1107 = vperm.xlu0 %1106, %v400
        %v1108 = vpop.permute.xlu0 %1107
        %1110 = vset.pattern.permute.xlu0 3
        %1111 = vperm.xlu0 %1110, %v401
        %v1112 = vpop.permute.xlu0 %1111
        %1114 = vset.pattern.permute.xlu0 3
        %1115 = vperm.xlu0 %1114, %v402
        %v1116 = vpop.permute.xlu0 %1115
        %1118 = vset.pattern.permute.xlu0 3
        %1119 = vperm.xlu0 %1118, %v403
        %v1120 = vpop.permute.xlu0 %1119
        %1122 = vset.pattern.permute.xlu0 3
        %1123 = vperm.xlu0 %1122, %v404
        %v1124 = vpop.permute.xlu0 %1123
        %1126 = vset.pattern.permute.xlu0 3
        %1127 = vperm.xlu0 %1126, %v405
        %v1128 = vpop.permute.xlu0 %1127
        %1130 = vset.pattern.permute.xlu0 3
        %1131 = vperm.xlu0 %1130, %v406
        %v1132 = vpop.permute.xlu0 %1131
        %1134 = vset.pattern.permute.xlu0 3
        %1135 = vperm.xlu0 %1134, %v407
        %v1136 = vpop.permute.xlu0 %1135
        %1138 = vset.pattern.permute.xlu0 3
        %1139 = vperm.xlu0 %1138, %v408
        %v1140 = vpop.permute.xlu0 %1139
        %1142 = vset.pattern.permute.xlu0 3
        %1143 = vperm.xlu0 %1142, %v409
        %v1144 = vpop.permute.xlu0 %1143
        %1146 = vset.pattern.permute.xlu0 3
        %1147 = vperm.xlu0 %1146, %v410
        %v1148 = vpop.permute.xlu0 %1147
        %1150 = vset.pattern.permute.xlu0 3
        %1151 = vperm.xlu0 %1150, %v411
        %v1152 = vpop.permute.xlu0 %1151
        %1154 = vset.pattern.permute.xlu0 3
        %1155 = vperm.xlu0 %1154, %v412
        %v1156 = vpop.permute.xlu0 %1155
        %1158 = vset.pattern.permute.xlu0 3
        %1159 = vperm.xlu0 %1158, %v413
        %v1160 = vpop.permute.xlu0 %1159
        %1162 = vset.pattern.permute.xlu0 3
        %1163 = vperm.xlu0 %1162, %v414
        %v1164 = vpop.permute.xlu0 %1163
        %1166 = vset.pattern.permute.xlu0 3
        %1167 = vperm.xlu0 %1166, %v415
        %v1168 = vpop.permute.xlu0 %1167
        %1170 = vset.pattern.permute.xlu0 3
        %1171 = vperm.xlu0 %1170, %v416
        %v1172 = vpop.permute.xlu0 %1171
        %1174 = vset.pattern.permute.xlu0 3
        %1175 = vperm.xlu0 %1174, %v417
        %v1176 = vpop.permute.xlu0 %1175
        %v1178 = vlaneseq
        %v1179 = vshrl.u32 %v1178, 7
        %v1180 = vsub.s32 0, %v1179
        %v1181 = vrot.slane %v1049, %v1180
        %v1182 = vmul.f32 %v1052, %v1181
        %v1183 = vmul.f32 %v1056, %v1181
        %v1184 = vmul.f32 %v1060, %v1181
        %v1185 = vmul.f32 %v1064, %v1181
        %v1186 = vmul.f32 %v1068, %v1181
        %v1187 = vmul.f32 %v1072, %v1181
        %v1188 = vmul.f32 %v1076, %v1181
        %v1189 = vmul.f32 %v1080, %v1181
        %v1190 = vmul.f32 %v1084, %v1181
        %v1191 = vmul.f32 %v1088, %v1181
        %v1192 = vmul.f32 %v1092, %v1181
        %v1193 = vmul.f32 %v1096, %v1181
        %v1194 = vmul.f32 %v1100, %v1181
        %v1195 = vmul.f32 %v1104, %v1181
        %v1196 = vmul.f32 %v1108, %v1181
        %v1197 = vmul.f32 %v1112, %v1181
        %v1198 = vmul.f32 %v1116, %v1181
        %v1199 = vmul.f32 %v1120, %v1181
        %v1200 = vmul.f32 %v1124, %v1181
        %v1201 = vmul.f32 %v1128, %v1181
        %v1202 = vmul.f32 %v1132, %v1181
        %v1203 = vmul.f32 %v1136, %v1181
        %v1204 = vmul.f32 %v1140, %v1181
        %v1205 = vmul.f32 %v1144, %v1181
        %v1206 = vmul.f32 %v1148, %v1181
        %v1207 = vmul.f32 %v1152, %v1181
        %v1208 = vmul.f32 %v1156, %v1181
        %v1209 = vmul.f32 %v1160, %v1181
        %v1210 = vmul.f32 %v1164, %v1181
        %v1211 = vmul.f32 %v1168, %v1181
        %v1212 = vmul.f32 %v1172, %v1181
        %v1213 = vmul.f32 %v1176, %v1181
        %v1214 = vadd.f32 %v1017, %v1182
        %v1215 = vadd.f32 %v1018, %v1183
        %v1216 = vadd.f32 %v1019, %v1184
        %v1217 = vadd.f32 %v1020, %v1185
        %v1218 = vadd.f32 %v1021, %v1186
        %v1219 = vadd.f32 %v1022, %v1187
        %v1220 = vadd.f32 %v1023, %v1188
        %v1221 = vadd.f32 %v1024, %v1189
        %v1222 = vadd.f32 %v1025, %v1190
        %v1223 = vadd.f32 %v1026, %v1191
        %v1224 = vadd.f32 %v1027, %v1192
        %v1225 = vadd.f32 %v1028, %v1193
        %v1226 = vadd.f32 %v1029, %v1194
        %v1227 = vadd.f32 %v1030, %v1195
        %v1228 = vadd.f32 %v1031, %v1196
        %v1229 = vadd.f32 %v1032, %v1197
        %v1230 = vadd.f32 %v1033, %v1198
        %v1231 = vadd.f32 %v1034, %v1199
        %v1232 = vadd.f32 %v1035, %v1200
        %v1233 = vadd.f32 %v1036, %v1201
        %v1234 = vadd.f32 %v1037, %v1202
        %v1235 = vadd.f32 %v1038, %v1203
        %v1236 = vadd.f32 %v1039, %v1204
        %v1237 = vadd.f32 %v1040, %v1205
        %v1238 = vadd.f32 %v1041, %v1206
        %v1239 = vadd.f32 %v1042, %v1207
        %v1240 = vadd.f32 %v1043, %v1208
        %v1241 = vadd.f32 %v1044, %v1209
        %v1242 = vadd.f32 %v1045, %v1210
        %v1243 = vadd.f32 %v1046, %v1211
        %v1244 = vadd.f32 %v1047, %v1212
        %v1245 = vadd.f32 %v1048, %v1213
        %v1246 = vmul.f32 %v1214, %v1214
        %v1247 = vmul.f32 %v1215, %v1215
        %v1248 = vmul.f32 %v1216, %v1216
        %v1249 = vmul.f32 %v1217, %v1217
        %v1250 = vmul.f32 %v1218, %v1218
        %v1251 = vmul.f32 %v1219, %v1219
        %v1252 = vmul.f32 %v1220, %v1220
        %v1253 = vmul.f32 %v1221, %v1221
        %v1254 = vmul.f32 %v1222, %v1222
        %v1255 = vmul.f32 %v1223, %v1223
        %v1256 = vmul.f32 %v1224, %v1224
        %v1257 = vmul.f32 %v1225, %v1225
        %v1258 = vmul.f32 %v1226, %v1226
        %v1259 = vmul.f32 %v1227, %v1227
        %v1260 = vmul.f32 %v1228, %v1228
        %v1261 = vmul.f32 %v1229, %v1229
        %v1262 = vmul.f32 %v1230, %v1230
        %v1263 = vmul.f32 %v1231, %v1231
        %v1264 = vmul.f32 %v1232, %v1232
        %v1265 = vmul.f32 %v1233, %v1233
        %v1266 = vmul.f32 %v1234, %v1234
        %v1267 = vmul.f32 %v1235, %v1235
        %v1268 = vmul.f32 %v1236, %v1236
        %v1269 = vmul.f32 %v1237, %v1237
        %v1270 = vmul.f32 %v1238, %v1238
        %v1271 = vmul.f32 %v1239, %v1239
        %v1272 = vmul.f32 %v1240, %v1240
        %v1273 = vmul.f32 %v1241, %v1241
        %v1274 = vmul.f32 %v1242, %v1242
        %v1275 = vmul.f32 %v1243, %v1243
        %v1276 = vmul.f32 %v1244, %v1244
        %v1277 = vmul.f32 %v1245, %v1245
        %v1278 = vmul.f32 %v1214, %v1246
        %v1279 = vmul.f32 %v1215, %v1247
        %v1280 = vmul.f32 %v1216, %v1248
        %v1281 = vmul.f32 %v1217, %v1249
        %v1282 = vmul.f32 %v1218, %v1250
        %v1283 = vmul.f32 %v1219, %v1251
        %v1284 = vmul.f32 %v1220, %v1252
        %v1285 = vmul.f32 %v1221, %v1253
        %v1286 = vmul.f32 %v1222, %v1254
        %v1287 = vmul.f32 %v1223, %v1255
        %v1288 = vmul.f32 %v1224, %v1256
        %v1289 = vmul.f32 %v1225, %v1257
        %v1290 = vmul.f32 %v1226, %v1258
        %v1291 = vmul.f32 %v1227, %v1259
        %v1292 = vmul.f32 %v1228, %v1260
        %v1293 = vmul.f32 %v1229, %v1261
        %v1294 = vmul.f32 %v1230, %v1262
        %v1295 = vmul.f32 %v1231, %v1263
        %v1296 = vmul.f32 %v1232, %v1264
        %v1297 = vmul.f32 %v1233, %v1265
        %v1298 = vmul.f32 %v1234, %v1266
        %v1299 = vmul.f32 %v1235, %v1267
        %v1300 = vmul.f32 %v1236, %v1268
        %v1301 = vmul.f32 %v1237, %v1269
        %v1302 = vmul.f32 %v1238, %v1270
        %v1303 = vmul.f32 %v1239, %v1271
        %v1304 = vmul.f32 %v1240, %v1272
        %v1305 = vmul.f32 %v1241, %v1273
        %v1306 = vmul.f32 %v1242, %v1274
        %v1307 = vmul.f32 %v1243, %v1275
        %v1308 = vmul.f32 %v1244, %v1276
        %v1309 = vmul.f32 %v1245, %v1277
        %v1310 = vmul.f32 %v1278, 0.044715
        %v1311 = vmul.f32 %v1279, 0.044715
        %v1312 = vmul.f32 %v1280, 0.044715
        %v1313 = vmul.f32 %v1281, 0.044715
        %v1314 = vmul.f32 %v1282, 0.044715
        %v1315 = vmul.f32 %v1283, 0.044715
        %v1316 = vmul.f32 %v1284, 0.044715
        %v1317 = vmul.f32 %v1285, 0.044715
        %v1318 = vmul.f32 %v1286, 0.044715
        %v1319 = vmul.f32 %v1287, 0.044715
        %v1320 = vmul.f32 %v1288, 0.044715
        %v1321 = vmul.f32 %v1289, 0.044715
        %v1322 = vmul.f32 %v1290, 0.044715
        %v1323 = vmul.f32 %v1291, 0.044715
        %v1324 = vmul.f32 %v1292, 0.044715
        %v1325 = vmul.f32 %v1293, 0.044715
        %v1326 = vmul.f32 %v1294, 0.044715
        %v1327 = vmul.f32 %v1295, 0.044715
        %v1328 = vmul.f32 %v1296, 0.044715
        %v1329 = vmul.f32 %v1297, 0.044715
        %v1330 = vmul.f32 %v1298, 0.044715
        %v1331 = vmul.f32 %v1299, 0.044715
        %v1332 = vmul.f32 %v1300, 0.044715
        %v1333 = vmul.f32 %v1301, 0.044715
        %v1334 = vmul.f32 %v1302, 0.044715
        %v1335 = vmul.f32 %v1303, 0.044715
        %v1336 = vmul.f32 %v1304, 0.044715
        %v1337 = vmul.f32 %v1305, 0.044715
        %v1338 = vmul.f32 %v1306, 0.044715
        %v1339 = vmul.f32 %v1307, 0.044715
        %v1340 = vmul.f32 %v1308, 0.044715
        %v1341 = vmul.f32 %v1309, 0.044715
        %v1342 = vadd.f32 %v1214, %v1310
        %v1343 = vadd.f32 %v1215, %v1311
        %v1344 = vadd.f32 %v1216, %v1312
        %v1345 = vadd.f32 %v1217, %v1313
        %v1346 = vadd.f32 %v1218, %v1314
        %v1347 = vadd.f32 %v1219, %v1315
        %v1348 = vadd.f32 %v1220, %v1316
        %v1349 = vadd.f32 %v1221, %v1317
        %v1350 = vadd.f32 %v1222, %v1318
        %v1351 = vadd.f32 %v1223, %v1319
        %v1352 = vadd.f32 %v1224, %v1320
        %v1353 = vadd.f32 %v1225, %v1321
        %v1354 = vadd.f32 %v1226, %v1322
        %v1355 = vadd.f32 %v1227, %v1323
        %v1356 = vadd.f32 %v1228, %v1324
        %v1357 = vadd.f32 %v1229, %v1325
        %v1358 = vadd.f32 %v1230, %v1326
        %v1359 = vadd.f32 %v1231, %v1327
        %v1360 = vadd.f32 %v1232, %v1328
        %v1361 = vadd.f32 %v1233, %v1329
        %v1362 = vadd.f32 %v1234, %v1330
        %v1363 = vadd.f32 %v1235, %v1331
        %v1364 = vadd.f32 %v1236, %v1332
        %v1365 = vadd.f32 %v1237, %v1333
        %v1366 = vadd.f32 %v1238, %v1334
        %v1367 = vadd.f32 %v1239, %v1335
        %v1368 = vadd.f32 %v1240, %v1336
        %v1369 = vadd.f32 %v1241, %v1337
        %v1370 = vadd.f32 %v1242, %v1338
        %v1371 = vadd.f32 %v1243, %v1339
        %v1372 = vadd.f32 %v1244, %v1340
        %v1373 = vadd.f32 %v1245, %v1341
        %v1374 = vmul.f32 %v1342, 0.7978846
        %v1375 = vmul.f32 %v1343, 0.7978846
        %v1376 = vmul.f32 %v1344, 0.7978846
        %v1377 = vmul.f32 %v1345, 0.7978846
        %v1378 = vmul.f32 %v1346, 0.7978846
        %v1379 = vmul.f32 %v1347, 0.7978846
        %v1380 = vmul.f32 %v1348, 0.7978846
        %v1381 = vmul.f32 %v1349, 0.7978846
        %v1382 = vmul.f32 %v1350, 0.7978846
        %v1383 = vmul.f32 %v1351, 0.7978846
        %v1384 = vmul.f32 %v1352, 0.7978846
        %v1385 = vmul.f32 %v1353, 0.7978846
        %v1386 = vmul.f32 %v1354, 0.7978846
        %v1387 = vmul.f32 %v1355, 0.7978846
        %v1388 = vmul.f32 %v1356, 0.7978846
        %v1389 = vmul.f32 %v1357, 0.7978846
        %v1390 = vmul.f32 %v1358, 0.7978846
        %v1391 = vmul.f32 %v1359, 0.7978846
        %v1392 = vmul.f32 %v1360, 0.7978846
        %v1393 = vmul.f32 %v1361, 0.7978846
        %v1394 = vmul.f32 %v1362, 0.7978846
        %v1395 = vmul.f32 %v1363, 0.7978846
        %v1396 = vmul.f32 %v1364, 0.7978846
        %v1397 = vmul.f32 %v1365, 0.7978846
        %v1398 = vmul.f32 %v1366, 0.7978846
        %v1399 = vmul.f32 %v1367, 0.7978846
        %v1400 = vmul.f32 %v1368, 0.7978846
        %v1401 = vmul.f32 %v1369, 0.7978846
        %v1402 = vmul.f32 %v1370, 0.7978846
        %v1403 = vmul.f32 %v1371, 0.7978846
        %v1404 = vmul.f32 %v1372, 0.7978846
        %v1405 = vmul.f32 %v1373, 0.7978846
        %v1406 = vtanh.pop %v1374
        %v1407 = vtanh.pop %v1375
        %v1408 = vtanh.pop %v1376
        %v1409 = vtanh.pop %v1377
        %v1410 = vtanh.pop %v1378
        %v1411 = vtanh.pop %v1379
        %v1412 = vtanh.pop %v1380
        %v1413 = vtanh.pop %v1381
        %v1414 = vtanh.pop %v1382
        %v1415 = vtanh.pop %v1383
        %v1416 = vtanh.pop %v1384
        %v1417 = vtanh.pop %v1385
        %v1418 = vtanh.pop %v1386
        %v1419 = vtanh.pop %v1387
        %v1420 = vtanh.pop %v1388
        %v1421 = vtanh.pop %v1389
        %v1422 = vtanh.pop %v1390
        %v1423 = vtanh.pop %v1391
        %v1424 = vtanh.pop %v1392
        %v1425 = vtanh.pop %v1393
        %v1426 = vtanh.pop %v1394
        %v1427 = vtanh.pop %v1395
        %v1428 = vtanh.pop %v1396
        %v1429 = vtanh.pop %v1397
        %v1430 = vtanh.pop %v1398
        %v1431 = vtanh.pop %v1399
        %v1432 = vtanh.pop %v1400
        %v1433 = vtanh.pop %v1401
        %v1434 = vtanh.pop %v1402
        %v1435 = vtanh.pop %v1403
        %v1436 = vtanh.pop %v1404
        %v1437 = vtanh.pop %v1405
        %v1438 = vadd.f32 %v1406, 1.0
        %v1439 = vadd.f32 %v1407, 1.0
        %v1440 = vadd.f32 %v1408, 1.0
        %v1441 = vadd.f32 %v1409, 1.0
        %v1442 = vadd.f32 %v1410, 1.0
        %v1443 = vadd.f32 %v1411, 1.0
        %v1444 = vadd.f32 %v1412, 1.0
        %v1445 = vadd.f32 %v1413, 1.0
        %v1446 = vadd.f32 %v1414, 1.0
        %v1447 = vadd.f32 %v1415, 1.0
        %v1448 = vadd.f32 %v1416, 1.0
        %v1449 = vadd.f32 %v1417, 1.0
        %v1450 = vadd.f32 %v1418, 1.0
        %v1451 = vadd.f32 %v1419, 1.0
        %v1452 = vadd.f32 %v1420, 1.0
        %v1453 = vadd.f32 %v1421, 1.0
        %v1454 = vadd.f32 %v1422, 1.0
        %v1455 = vadd.f32 %v1423, 1.0
        %v1456 = vadd.f32 %v1424, 1.0
        %v1457 = vadd.f32 %v1425, 1.0
        %v1458 = vadd.f32 %v1426, 1.0
        %v1459 = vadd.f32 %v1427, 1.0
        %v1460 = vadd.f32 %v1428, 1.0
        %v1461 = vadd.f32 %v1429, 1.0
        %v1462 = vadd.f32 %v1430, 1.0
        %v1463 = vadd.f32 %v1431, 1.0
        %v1464 = vadd.f32 %v1432, 1.0
        %v1465 = vadd.f32 %v1433, 1.0
        %v1466 = vadd.f32 %v1434, 1.0
        %v1467 = vadd.f32 %v1435, 1.0
        %v1468 = vadd.f32 %v1436, 1.0
        %v1469 = vadd.f32 %v1437, 1.0
        %v1470 = vmul.f32 %v1438, 0.5
        %v1471 = vmul.f32 %v1439, 0.5
        %v1472 = vmul.f32 %v1440, 0.5
        %v1473 = vmul.f32 %v1441, 0.5
        %v1474 = vmul.f32 %v1442, 0.5
        %v1475 = vmul.f32 %v1443, 0.5
        %v1476 = vmul.f32 %v1444, 0.5
        %v1477 = vmul.f32 %v1445, 0.5
        %v1478 = vmul.f32 %v1446, 0.5
        %v1479 = vmul.f32 %v1447, 0.5
        %v1480 = vmul.f32 %v1448, 0.5
        %v1481 = vmul.f32 %v1449, 0.5
        %v1482 = vmul.f32 %v1450, 0.5
        %v1483 = vmul.f32 %v1451, 0.5
        %v1484 = vmul.f32 %v1452, 0.5
        %v1485 = vmul.f32 %v1453, 0.5
        %v1486 = vmul.f32 %v1454, 0.5
        %v1487 = vmul.f32 %v1455, 0.5
        %v1488 = vmul.f32 %v1456, 0.5
        %v1489 = vmul.f32 %v1457, 0.5
        %v1490 = vmul.f32 %v1458, 0.5
        %v1491 = vmul.f32 %v1459, 0.5
        %v1492 = vmul.f32 %v1460, 0.5
        %v1493 = vmul.f32 %v1461, 0.5
        %v1494 = vmul.f32 %v1462, 0.5
        %v1495 = vmul.f32 %v1463, 0.5
        %v1496 = vmul.f32 %v1464, 0.5
        %v1497 = vmul.f32 %v1465, 0.5
        %v1498 = vmul.f32 %v1466, 0.5
        %v1499 = vmul.f32 %v1467, 0.5
        %v1500 = vmul.f32 %v1468, 0.5
        %v1501 = vmul.f32 %v1469, 0.5
        %v1502 = vmul.f32 %v1214, %v1470
        %v1503 = vmul.f32 %v1215, %v1471
        %v1504 = vmul.f32 %v1216, %v1472
        %v1505 = vmul.f32 %v1217, %v1473
        %v1506 = vmul.f32 %v1218, %v1474
        %v1507 = vmul.f32 %v1219, %v1475
        %v1508 = vmul.f32 %v1220, %v1476
        %v1509 = vmul.f32 %v1221, %v1477
        %v1510 = vmul.f32 %v1222, %v1478
        %v1511 = vmul.f32 %v1223, %v1479
        %v1512 = vmul.f32 %v1224, %v1480
        %v1513 = vmul.f32 %v1225, %v1481
        %v1514 = vmul.f32 %v1226, %v1482
        %v1515 = vmul.f32 %v1227, %v1483
        %v1516 = vmul.f32 %v1228, %v1484
        %v1517 = vmul.f32 %v1229, %v1485
        %v1518 = vmul.f32 %v1230, %v1486
        %v1519 = vmul.f32 %v1231, %v1487
        %v1520 = vmul.f32 %v1232, %v1488
        %v1521 = vmul.f32 %v1233, %v1489
        %v1522 = vmul.f32 %v1234, %v1490
        %v1523 = vmul.f32 %v1235, %v1491
        %v1524 = vmul.f32 %v1236, %v1492
        %v1525 = vmul.f32 %v1237, %v1493
        %v1526 = vmul.f32 %v1238, %v1494
        %v1527 = vmul.f32 %v1239, %v1495
        %v1528 = vmul.f32 %v1240, %v1496
        %v1529 = vmul.f32 %v1241, %v1497
        %v1530 = vmul.f32 %v1242, %v1498
        %v1531 = vmul.f32 %v1243, %v1499
        %v1532 = vmul.f32 %v1244, %v1500
        %v1533 = vmul.f32 %v1245, %v1501
        %vm1534 = vcmask 261120
        %1535 = vst.msk [vmem:[#allocation2] sm:$0xff] %vm1534, %v1502
        %1536 = vst.msk [vmem:[#allocation2 + $0x8] sm:$0xff] %vm1534, %v1503
        %1537 = vst.msk [vmem:[#allocation2 + $0x10] sm:$0xff] %vm1534, %v1504
        %1538 = vst.msk [vmem:[#allocation2 + $0x18] sm:$0xff] %vm1534, %v1505
        %1539 = vst.msk [vmem:[#allocation2 + $0x20] sm:$0xff] %vm1534, %v1506
        %1540 = vst.msk [vmem:[#allocation2 + $0x28] sm:$0xff] %vm1534, %v1507
        %1541 = vst.msk [vmem:[#allocation2 + $0x30] sm:$0xff] %vm1534, %v1508
        %1542 = vst.msk [vmem:[#allocation2 + $0x38] sm:$0xff] %vm1534, %v1509
        %1543 = vst.msk [vmem:[#allocation2 + $0x40] sm:$0xff] %vm1534, %v1510
        %1544 = vst.msk [vmem:[#allocation2 + $0x48] sm:$0xff] %vm1534, %v1511
        %1545 = vst.msk [vmem:[#allocation2 + $0x50] sm:$0xff] %vm1534, %v1512
        %1546 = vst.msk [vmem:[#allocation2 + $0x58] sm:$0xff] %vm1534, %v1513
        %1547 = vst.msk [vmem:[#allocation2 + $0x60] sm:$0xff] %vm1534, %v1514
        %1548 = vst.msk [vmem:[#allocation2 + $0x68] sm:$0xff] %vm1534, %v1515
        %1549 = vst.msk [vmem:[#allocation2 + $0x70] sm:$0xff] %vm1534, %v1516
        %1550 = vst.msk [vmem:[#allocation2 + $0x78] sm:$0xff] %vm1534, %v1517
        %1551 = vst.msk [vmem:[#allocation2 + $0x80] sm:$0xff] %vm1534, %v1518
        %1552 = vst.msk [vmem:[#allocation2 + $0x88] sm:$0xff] %vm1534, %v1519
        %1553 = vst.msk [vmem:[#allocation2 + $0x90] sm:$0xff] %vm1534, %v1520
        %1554 = vst.msk [vmem:[#allocation2 + $0x98] sm:$0xff] %vm1534, %v1521
        %1555 = vst.msk [vmem:[#allocation2 + $0xa0] sm:$0xff] %vm1534, %v1522
        %1556 = vst.msk [vmem:[#allocation2 + $0xa8] sm:$0xff] %vm1534, %v1523
        %1557 = vst.msk [vmem:[#allocation2 + $0xb0] sm:$0xff] %vm1534, %v1524
        %1558 = vst.msk [vmem:[#allocation2 + $0xb8] sm:$0xff] %vm1534, %v1525
        %1559 = vst.msk [vmem:[#allocation2 + $0xc0] sm:$0xff] %vm1534, %v1526
        %1560 = vst.msk [vmem:[#allocation2 + $0xc8] sm:$0xff] %vm1534, %v1527
        %1561 = vst.msk [vmem:[#allocation2 + $0xd0] sm:$0xff] %vm1534, %v1528
        %1562 = vst.msk [vmem:[#allocation2 + $0xd8] sm:$0xff] %vm1534, %v1529
        %1563 = vst.msk [vmem:[#allocation2 + $0xe0] sm:$0xff] %vm1534, %v1530
        %1564 = vst.msk [vmem:[#allocation2 + $0xe8] sm:$0xff] %vm1534, %v1531
        %1565 = vst.msk [vmem:[#allocation2 + $0xf0] sm:$0xff] %vm1534, %v1532
        %1566 = vst.msk [vmem:[#allocation2 + $0xf8] sm:$0xff] %vm1534, %v1533
        %1567 = vst.msk [vmem:[#allocation2 + $0x100] sm:$0xff] %vm1534, 0.0
        %v1568 = vld [vmem:[#allocation2] sm:$0xff]
        %v1569 = vld [vmem:[#allocation2 + $0x8] sm:$0xff]
        %v1570 = vld [vmem:[#allocation2 + $0x10] sm:$0xff]
        %v1571 = vld [vmem:[#allocation2 + $0x18] sm:$0xff]
        %v1572 = vld [vmem:[#allocation2 + $0x20] sm:$0xff]
        %v1573 = vld [vmem:[#allocation2 + $0x28] sm:$0xff]
        %v1574 = vld [vmem:[#allocation2 + $0x30] sm:$0xff]
        %v1575 = vld [vmem:[#allocation2 + $0x38] sm:$0xff]
        %v1576 = vld [vmem:[#allocation2 + $0x40] sm:$0xff]
        %v1577 = vld [vmem:[#allocation2 + $0x48] sm:$0xff]
        %v1578 = vld [vmem:[#allocation2 + $0x50] sm:$0xff]
        %v1579 = vld [vmem:[#allocation2 + $0x58] sm:$0xff]
        %v1580 = vld [vmem:[#allocation2 + $0x60] sm:$0xff]
        %v1581 = vld [vmem:[#allocation2 + $0x68] sm:$0xff]
        %v1582 = vld [vmem:[#allocation2 + $0x70] sm:$0xff]
        %v1583 = vld [vmem:[#allocation2 + $0x78] sm:$0xff]
        %v1584 = vld [vmem:[#allocation2 + $0x80] sm:$0xff]
        %v1585 = vld [vmem:[#allocation2 + $0x88] sm:$0xff]
        %v1586 = vld [vmem:[#allocation2 + $0x90] sm:$0xff]
        %v1587 = vld [vmem:[#allocation2 + $0x98] sm:$0xff]
        %v1588 = vld [vmem:[#allocation2 + $0xa0] sm:$0xff]
        %v1589 = vld [vmem:[#allocation2 + $0xa8] sm:$0xff]
        %v1590 = vld [vmem:[#allocation2 + $0xb0] sm:$0xff]
        %v1591 = vld [vmem:[#allocation2 + $0xb8] sm:$0xff]
        %v1592 = vld [vmem:[#allocation2 + $0xc0] sm:$0xff]
        %v1593 = vld [vmem:[#allocation2 + $0xc8] sm:$0xff]
        %v1594 = vld [vmem:[#allocation2 + $0xd0] sm:$0xff]
        %v1595 = vld [vmem:[#allocation2 + $0xd8] sm:$0xff]
        %v1596 = vpack.c.bf16 %v1569, %v1568
        %v1597 = vpack.c.bf16 %v1571, %v1570
        %v1598 = vpack.c.bf16 %v1573, %v1572
        %v1599 = vpack.c.bf16 %v1575, %v1574
        %v1600 = vpack.c.bf16 %v1577, %v1576
        %v1601 = vpack.c.bf16 %v1579, %v1578
        %v1602 = vpack.c.bf16 %v1581, %v1580
        %v1603 = vpack.c.bf16 %v1583, %v1582
        %v1604 = vpack.c.bf16 %v1585, %v1584
        %v1605 = vpack.c.bf16 %v1587, %v1586
        %v1606 = vpack.c.bf16 %v1589, %v1588
        %v1607 = vpack.c.bf16 %v1591, %v1590
        %v1608 = vpack.c.bf16 %v1593, %v1592
        %v1609 = vpack.c.bf16 %v1595, %v1594
        %v1610 = vld [vmem:[%s3] sm:$0xf]
        %v1611 = vld [vmem:[%s3 + $0x4] sm:$0xf]
        %v1612 = vld [vmem:[%s3 + $0x8] sm:$0xf]
        %v1613 = vld [vmem:[%s3 + $0xc] sm:$0xf]
        %v1614 = vld [vmem:[#allocation2 + $0x1] sm:$0xff]
        %v1615 = vld [vmem:[#allocation2 + $0x9] sm:$0xff]
        %v1616 = vld [vmem:[#allocation2 + $0x11] sm:$0xff]
        %v1617 = vld [vmem:[#allocation2 + $0x19] sm:$0xff]
        %v1618 = vld [vmem:[#allocation2 + $0x21] sm:$0xff]
        %v1619 = vld [vmem:[#allocation2 + $0x29] sm:$0xff]
        %v1620 = vld [vmem:[#allocation2 + $0x31] sm:$0xff]
        %v1621 = vld [vmem:[#allocation2 + $0x39] sm:$0xff]
        %v1622 = vld [vmem:[#allocation2 + $0x41] sm:$0xff]
        %v1623 = vld [vmem:[#allocation2 + $0x49] sm:$0xff]
        %v1624 = vld [vmem:[#allocation2 + $0x51] sm:$0xff]
        %v1625 = vld [vmem:[#allocation2 + $0x59] sm:$0xff]
        %v1626 = vld [vmem:[#allocation2 + $0x61] sm:$0xff]
        %v1627 = vld [vmem:[#allocation2 + $0x69] sm:$0xff]
        %v1628 = vld [vmem:[#allocation2 + $0x71] sm:$0xff]
        %v1629 = vld [vmem:[#allocation2 + $0x79] sm:$0xff]
        %v1630 = vld [vmem:[#allocation2 + $0x81] sm:$0xff]
        %v1631 = vld [vmem:[#allocation2 + $0x89] sm:$0xff]
        %v1632 = vld [vmem:[#allocation2 + $0x91] sm:$0xff]
        %v1633 = vld [vmem:[#allocation2 + $0x99] sm:$0xff]
        %v1634 = vld [vmem:[#allocation2 + $0xa1] sm:$0xff]
        %v1635 = vld [vmem:[#allocation2 + $0xa9] sm:$0xff]
        %v1636 = vld [vmem:[#allocation2 + $0xb1] sm:$0xff]
        %v1637 = vld [vmem:[#allocation2 + $0xb9] sm:$0xff]
        %v1638 = vld [vmem:[#allocation2 + $0xc1] sm:$0xff]
        %v1639 = vld [vmem:[#allocation2 + $0xc9] sm:$0xff]
        %v1640 = vld [vmem:[#allocation2 + $0xd1] sm:$0xff]
        %v1641 = vld [vmem:[#allocation2 + $0xd9] sm:$0xff]
        %v1642 = vpack.c.bf16 %v1615, %v1614
        %v1643 = vpack.c.bf16 %v1617, %v1616
        %v1644 = vpack.c.bf16 %v1619, %v1618
        %v1645 = vpack.c.bf16 %v1621, %v1620
        %v1646 = vpack.c.bf16 %v1623, %v1622
        %v1647 = vpack.c.bf16 %v1625, %v1624
        %v1648 = vpack.c.bf16 %v1627, %v1626
        %v1649 = vpack.c.bf16 %v1629, %v1628
        %v1650 = vpack.c.bf16 %v1631, %v1630
        %v1651 = vpack.c.bf16 %v1633, %v1632
        %v1652 = vpack.c.bf16 %v1635, %v1634
        %v1653 = vpack.c.bf16 %v1637, %v1636
        %v1654 = vpack.c.bf16 %v1639, %v1638
        %v1655 = vpack.c.bf16 %v1641, %v1640
        %s1656 = scalar_lea.vmem %s3, 16
        %v1657 = vld [vmem:[%s1656] sm:$0xf]
        %v1658 = vld [vmem:[%s1656 + $0x4] sm:$0xf]
        %v1659 = vld [vmem:[%s1656 + $0x8] sm:$0xf]
        %v1660 = vld [vmem:[%s1656 + $0xc] sm:$0xf]
        %v1665 = vunpack.c.l.b16 %v1657
        %v1666 = vunpack.c.l.b16 %v1658
        %v1667 = vunpack.c.l.b16 %v1659
        %v1668 = vunpack.c.l.b16 %v1660
        %v1669 = vpack.c.b16 %v1666, %v1665
        %v1670 = vpack.c.b16 %v1668, %v1667
        %v1674 = vsel %vm1534, %v1642, 0
        %v1677 = vsel %vm1534, %v1643, 0
        %v1680 = vsel %vm1534, %v1644, 0
        %v1683 = vsel %vm1534, %v1645, 0
        %v1686 = vsel %vm1534, %v1646, 0
        %v1689 = vsel %vm1534, %v1647, 0
        %v1692 = vsel %vm1534, %v1648, 0
        %v1695 = vsel %vm1534, %v1649, 0
        %v1698 = vsel %vm1534, %v1650, 0
        %v1701 = vsel %vm1534, %v1651, 0
        %v1704 = vsel %vm1534, %v1652, 0
        %v1707 = vsel %vm1534, %v1653, 0
        %v1710 = vsel %vm1534, %v1654, 0
        %v1713 = vsel %vm1534, %v1655, 0
        %1715 = vmatprep.subr.bf16.mxu0 0
        %1716 = vmatpush1.bf16.msra.mxu0 %v1669
        %1717 = vmatprep.subr.bf16.mxu0 0
        %1718 = vmatpush1.bf16.msra.mxu0 %v1670
        %1719 = vmatprep.subr.bf16.mxu0 0
        %1720 = vmatpush1.bf16.msra.mxu0 0
        %1721 = vmatprep.subr.bf16.mxu0 0
        %1722 = vmatpush1.bf16.msra.mxu0 0
        %1723 = vmatprep.subr.bf16.mxu0 0
        %1724 = vmatpush1.bf16.msra.mxu0 0
        %1725 = vmatprep.subr.bf16.mxu0 0
        %1726 = vmatpush1.bf16.msra.mxu0 0
        %1727 = vmatprep.subr.bf16.mxu0 0
        %1728 = vmatpush1.bf16.msra.mxu0 0
        %1729 = vmatprep.subr.bf16.mxu0 0
        %1730 = vmatpush1.bf16.msra.mxu0 0
        %1731 = vmatprep.subr.bf16.mxu0 0
        %1732 = vmatpush1.bf16.msra.mxu0 0
        %1733 = vmatprep.subr.bf16.mxu0 0
        %1734 = vmatpush1.bf16.msra.mxu0 0
        %1735 = vmatprep.subr.bf16.mxu0 0
        %1736 = vmatpush1.bf16.msra.mxu0 0
        %1737 = vmatprep.subr.bf16.mxu0 0
        %1738 = vmatpush1.bf16.msra.mxu0 0
        %1739 = vmatprep.subr.bf16.mxu0 0
        %1740 = vmatpush1.bf16.msra.mxu0 0
        %1741 = vmatprep.subr.bf16.mxu0 0
        %1742 = vmatpush1.bf16.msra.mxu0 0
        %1743 = vmatprep.subr.bf16.mxu0 0
        %1744 = vmatpush1.bf16.msra.mxu0 0
        %1745 = vmatprep.subr.bf16.mxu0 0
        %1746 = vmatpush1.bf16.msra.mxu0 0
        %1747 = vmatprep.mubr.bf16.mxu0 0
        %1748 = vmatmul.mubr.bf16.gmra.mrb[0].mxu0 %v1674
        %v1749 = vpop.f32.mrb[0].mxu0
        %v1750 = vadd.f32 0.0, %v1749
        %v1751 = vpop.f32.mrb[0].mxu0
        %v1752 = vpop.f32.mrb[0].mxu0
        %v1753 = vadd.f32 0.0, %v1752
        %v1754 = vpop.f32.mrb[0].mxu0
        %1755 = vmatprep.mubr.bf16.mxu0 0
        %1756 = vmatmul.mubr.bf16.gmra.mrb[0].mxu0 %v1677
        %v1757 = vpop.f32.mrb[0].mxu0
        %v1758 = vadd.f32 0.0, %v1757
        %v1759 = vpop.f32.mrb[0].mxu0
        %v1760 = vpop.f32.mrb[0].mxu0
        %v1761 = vadd.f32 0.0, %v1760
        %v1762 = vpop.f32.mrb[0].mxu0
        %1763 = vmatprep.mubr.bf16.mxu0 0
        %1764 = vmatmul.mubr.bf16.gmra.mrb[0].mxu0 %v1680
        %v1765 = vpop.f32.mrb[0].mxu0
        %v1766 = vadd.f32 0.0, %v1765
        %v1767 = vpop.f32.mrb[0].mxu0
        %v1768 = vpop.f32.mrb[0].mxu0
        %v1769 = vadd.f32 0.0, %v1768
        %v1770 = vpop.f32.mrb[0].mxu0
        %1771 = vmatprep.mubr.bf16.mxu0 0
        %1772 = vmatmul.mubr.bf16.gmra.mrb[0].mxu0 %v1683
        %v1773 = vpop.f32.mrb[0].mxu0
        %v1774 = vadd.f32 0.0, %v1773
        %v1775 = vpop.f32.mrb[0].mxu0
        %v1776 = vpop.f32.mrb[0].mxu0
        %v1777 = vadd.f32 0.0, %v1776
        %v1778 = vpop.f32.mrb[0].mxu0
        %1779 = vmatprep.mubr.bf16.mxu0 0
        %1780 = vmatmul.mubr.bf16.gmra.mrb[0].mxu0 %v1686
        %v1781 = vpop.f32.mrb[0].mxu0
        %v1782 = vadd.f32 0.0, %v1781
        %v1783 = vpop.f32.mrb[0].mxu0
        %v1784 = vpop.f32.mrb[0].mxu0
        %v1785 = vadd.f32 0.0, %v1784
        %v1786 = vpop.f32.mrb[0].mxu0
        %1787 = vmatprep.mubr.bf16.mxu0 0
        %1788 = vmatmul.mubr.bf16.gmra.mrb[0].mxu0 %v1689
        %v1789 = vpop.f32.mrb[0].mxu0
        %v1790 = vadd.f32 0.0, %v1789
        %v1791 = vpop.f32.mrb[0].mxu0
        %v1792 = vpop.f32.mrb[0].mxu0
        %v1793 = vadd.f32 0.0, %v1792
        %v1794 = vpop.f32.mrb[0].mxu0
        %1795 = vmatprep.mubr.bf16.mxu0 0
        %1796 = vmatmul.mubr.bf16.gmra.mrb[0].mxu0 %v1692
        %v1797 = vpop.f32.mrb[0].mxu0
        %v1798 = vadd.f32 0.0, %v1797
        %v1799 = vpop.f32.mrb[0].mxu0
        %v1800 = vpop.f32.mrb[0].mxu0
        %v1801 = vadd.f32 0.0, %v1800
        %v1802 = vpop.f32.mrb[0].mxu0
        %1803 = vmatprep.mubr.bf16.mxu0 0
        %1804 = vmatmul.mubr.bf16.gmra.mrb[0].mxu0 %v1695
        %v1805 = vpop.f32.mrb[0].mxu0
        %v1806 = vadd.f32 0.0, %v1805
        %v1807 = vpop.f32.mrb[0].mxu0
        %v1808 = vpop.f32.mrb[0].mxu0
        %v1809 = vadd.f32 0.0, %v1808
        %v1810 = vpop.f32.mrb[0].mxu0
        %1811 = vmatprep.mubr.bf16.mxu0 0
        %1812 = vmatmul.mubr.bf16.gmra.mrb[0].mxu0 %v1698
        %v1813 = vpop.f32.mrb[0].mxu0
        %v1814 = vadd.f32 0.0, %v1813
        %v1815 = vpop.f32.mrb[0].mxu0
        %v1816 = vpop.f32.mrb[0].mxu0
        %v1817 = vadd.f32 0.0, %v1816
        %v1818 = vpop.f32.mrb[0].mxu0
        %1819 = vmatprep.mubr.bf16.mxu0 0
        %1820 = vmatmul.mubr.bf16.gmra.mrb[0].mxu0 %v1701
        %v1821 = vpop.f32.mrb[0].mxu0
        %v1822 = vadd.f32 0.0, %v1821
        %v1823 = vpop.f32.mrb[0].mxu0
        %v1824 = vpop.f32.mrb[0].mxu0
        %v1825 = vadd.f32 0.0, %v1824
        %v1826 = vpop.f32.mrb[0].mxu0
        %1827 = vmatprep.mubr.bf16.mxu0 0
        %1828 = vmatmul.mubr.bf16.gmra.mrb[0].mxu0 %v1704
        %v1829 = vpop.f32.mrb[0].mxu0
        %v1830 = vadd.f32 0.0, %v1829
        %v1831 = vpop.f32.mrb[0].mxu0
        %v1832 = vpop.f32.mrb[0].mxu0
        %v1833 = vadd.f32 0.0, %v1832
        %v1834 = vpop.f32.mrb[0].mxu0
        %1835 = vmatprep.mubr.bf16.mxu0 0
        %1836 = vmatmul.mubr.bf16.gmra.mrb[0].mxu0 %v1707
        %v1837 = vpop.f32.mrb[0].mxu0
        %v1838 = vadd.f32 0.0, %v1837
        %v1839 = vpop.f32.mrb[0].mxu0
        %v1840 = vpop.f32.mrb[0].mxu0
        %v1841 = vadd.f32 0.0, %v1840
        %v1842 = vpop.f32.mrb[0].mxu0
        %1843 = vmatprep.mubr.bf16.mxu0 0
        %1844 = vmatmul.mubr.bf16.gmra.mrb[0].mxu0 %v1710
        %v1845 = vpop.f32.mrb[0].mxu0
        %v1846 = vadd.f32 0.0, %v1845
        %v1847 = vpop.f32.mrb[0].mxu0
        %v1848 = vpop.f32.mrb[0].mxu0
        %v1849 = vadd.f32 0.0, %v1848
        %v1850 = vpop.f32.mrb[0].mxu0
        %1851 = vmatprep.mubr.bf16.mxu0 0
        %1852 = vmatmul.mubr.bf16.gmra.mrb[0].mxu0 %v1713
        %v1853 = vpop.f32.mrb[0].mxu0
        %v1854 = vadd.f32 0.0, %v1853
        %v1855 = vpop.f32.mrb[0].mxu0
        %v1856 = vpop.f32.mrb[0].mxu0
        %v1857 = vadd.f32 0.0, %v1856
        %v1858 = vpop.f32.mrb[0].mxu0
        %1859 = vdwg.mxu0
        %v1864 = vunpack.c.l.b16 %v1610
        %v1865 = vunpack.c.l.b16 %v1611
        %v1866 = vunpack.c.l.b16 %v1612
        %v1867 = vunpack.c.l.b16 %v1613
        %v1868 = vpack.c.b16 %v1865, %v1864
        %v1869 = vpack.c.b16 %v1867, %v1866
        %v1873 = vsel %vm1534, %v1596, 0
        %v1876 = vsel %vm1534, %v1597, 0
        %v1879 = vsel %vm1534, %v1598, 0
        %v1882 = vsel %vm1534, %v1599, 0
        %v1885 = vsel %vm1534, %v1600, 0
        %v1888 = vsel %vm1534, %v1601, 0
        %v1891 = vsel %vm1534, %v1602, 0
        %v1894 = vsel %vm1534, %v1603, 0
        %v1897 = vsel %vm1534, %v1604, 0
        %v1900 = vsel %vm1534, %v1605, 0
        %v1903 = vsel %vm1534, %v1606, 0
        %v1906 = vsel %vm1534, %v1607, 0
        %v1909 = vsel %vm1534, %v1608, 0
        %v1912 = vsel %vm1534, %v1609, 0
        %1914 = vmatprep.subr.bf16.mxu0 0
        %1915 = vmatpush1.bf16.msra.mxu0 %v1868
        %1916 = vmatprep.subr.bf16.mxu0 0
        %1917 = vmatpush1.bf16.msra.mxu0 %v1869
        %1918 = vmatprep.subr.bf16.mxu0 0
        %1919 = vmatpush1.bf16.msra.mxu0 0
        %1920 = vmatprep.subr.bf16.mxu0 0
        %1921 = vmatpush1.bf16.msra.mxu0 0
        %1922 = vmatprep.subr.bf16.mxu0 0
        %1923 = vmatpush1.bf16.msra.mxu0 0
        %1924 = vmatprep.subr.bf16.mxu0 0
        %1925 = vmatpush1.bf16.msra.mxu0 0
        %1926 = vmatprep.subr.bf16.mxu0 0
        %1927 = vmatpush1.bf16.msra.mxu0 0
        %1928 = vmatprep.subr.bf16.mxu0 0
        %1929 = vmatpush1.bf16.msra.mxu0 0
        %1930 = vmatprep.subr.bf16.mxu0 0
        %1931 = vmatpush1.bf16.msra.mxu0 0
        %1932 = vmatprep.subr.bf16.mxu0 0
        %1933 = vmatpush1.bf16.msra.mxu0 0
        %1934 = vmatprep.subr.bf16.mxu0 0
        %1935 = vmatpush1.bf16.msra.mxu0 0
        %1936 = vmatprep.subr.bf16.mxu0 0
        %1937 = vmatpush1.bf16.msra.mxu0 0
        %1938 = vmatprep.subr.bf16.mxu0 0
        %1939 = vmatpush1.bf16.msra.mxu0 0
        %1940 = vmatprep.subr.bf16.mxu0 0
        %1941 = vmatpush1.bf16.msra.mxu0 0
        %1942 = vmatprep.subr.bf16.mxu0 0
        %1943 = vmatpush1.bf16.msra.mxu0 0
        %1944 = vmatprep.subr.bf16.mxu0 0
        %1945 = vmatpush1.bf16.msra.mxu0 0
        %1946 = vmatprep.mubr.bf16.mxu0 0
        %1947 = vmatmul.mubr.bf16.gmra.mrb[0].mxu0 %v1873
        %v1948 = vpop.f32.mrb[0].mxu0
        %v1949 = vadd.f32 %v1750, %v1948
        %v1950 = vpop.f32.mrb[0].mxu0
        %v1951 = vpop.f32.mrb[0].mxu0
        %v1952 = vadd.f32 %v1753, %v1951
        %v1953 = vpop.f32.mrb[0].mxu0
        %1954 = vmatprep.mubr.bf16.mxu0 0
        %1955 = vmatmul.mubr.bf16.gmra.mrb[0].mxu0 %v1876
        %v1956 = vpop.f32.mrb[0].mxu0
        %v1957 = vadd.f32 %v1758, %v1956
        %v1958 = vpop.f32.mrb[0].mxu0
        %v1959 = vpop.f32.mrb[0].mxu0
        %v1960 = vadd.f32 %v1761, %v1959
        %v1961 = vpop.f32.mrb[0].mxu0
        %1962 = vmatprep.mubr.bf16.mxu0 0
        %1963 = vmatmul.mubr.bf16.gmra.mrb[0].mxu0 %v1879
        %v1964 = vpop.f32.mrb[0].mxu0
        %v1965 = vadd.f32 %v1766, %v1964
        %v1966 = vpop.f32.mrb[0].mxu0
        %v1967 = vpop.f32.mrb[0].mxu0
        %v1968 = vadd.f32 %v1769, %v1967
        %v1969 = vpop.f32.mrb[0].mxu0
        %1970 = vmatprep.mubr.bf16.mxu0 0
        %1971 = vmatmul.mubr.bf16.gmra.mrb[0].mxu0 %v1882
        %v1972 = vpop.f32.mrb[0].mxu0
        %v1973 = vadd.f32 %v1774, %v1972
        %v1974 = vpop.f32.mrb[0].mxu0
        %v1975 = vpop.f32.mrb[0].mxu0
        %v1976 = vadd.f32 %v1777, %v1975
        %v1977 = vpop.f32.mrb[0].mxu0
        %1978 = vmatprep.mubr.bf16.mxu0 0
        %1979 = vmatmul.mubr.bf16.gmra.mrb[0].mxu0 %v1885
        %v1980 = vpop.f32.mrb[0].mxu0
        %v1981 = vadd.f32 %v1782, %v1980
        %v1982 = vpop.f32.mrb[0].mxu0
        %v1983 = vpop.f32.mrb[0].mxu0
        %v1984 = vadd.f32 %v1785, %v1983
        %v1985 = vpop.f32.mrb[0].mxu0
        %1986 = vmatprep.mubr.bf16.mxu0 0
        %1987 = vmatmul.mubr.bf16.gmra.mrb[0].mxu0 %v1888
        %v1988 = vpop.f32.mrb[0].mxu0
        %v1989 = vadd.f32 %v1790, %v1988
        %v1990 = vpop.f32.mrb[0].mxu0
        %v1991 = vpop.f32.mrb[0].mxu0
        %v1992 = vadd.f32 %v1793, %v1991
        %v1993 = vpop.f32.mrb[0].mxu0
        %1994 = vmatprep.mubr.bf16.mxu0 0
        %1995 = vmatmul.mubr.bf16.gmra.mrb[0].mxu0 %v1891
        %v1996 = vpop.f32.mrb[0].mxu0
        %v1997 = vadd.f32 %v1798, %v1996
        %v1998 = vpop.f32.mrb[0].mxu0
        %v1999 = vpop.f32.mrb[0].mxu0
        %v2000 = vadd.f32 %v1801, %v1999
        %v2001 = vpop.f32.mrb[0].mxu0
        %2002 = vmatprep.mubr.bf16.mxu0 0
        %2003 = vmatmul.mubr.bf16.gmra.mrb[0].mxu0 %v1894
        %v2004 = vpop.f32.mrb[0].mxu0
        %v2005 = vadd.f32 %v1806, %v2004
        %v2006 = vpop.f32.mrb[0].mxu0
        %v2007 = vpop.f32.mrb[0].mxu0
        %v2008 = vadd.f32 %v1809, %v2007
        %v2009 = vpop.f32.mrb[0].mxu0
        %2010 = vmatprep.mubr.bf16.mxu0 0
        %2011 = vmatmul.mubr.bf16.gmra.mrb[0].mxu0 %v1897
        %v2012 = vpop.f32.mrb[0].mxu0
        %v2013 = vadd.f32 %v1814, %v2012
        %v2014 = vpop.f32.mrb[0].mxu0
        %v2015 = vpop.f32.mrb[0].mxu0
        %v2016 = vadd.f32 %v1817, %v2015
        %v2017 = vpop.f32.mrb[0].mxu0
        %2018 = vmatprep.mubr.bf16.mxu0 0
        %2019 = vmatmul.mubr.bf16.gmra.mrb[0].mxu0 %v1900
        %v2020 = vpop.f32.mrb[0].mxu0
        %v2021 = vadd.f32 %v1822, %v2020
        %v2022 = vpop.f32.mrb[0].mxu0
        %v2023 = vpop.f32.mrb[0].mxu0
        %v2024 = vadd.f32 %v1825, %v2023
        %v2025 = vpop.f32.mrb[0].mxu0
        %2026 = vmatprep.mubr.bf16.mxu0 0
        %2027 = vmatmul.mubr.bf16.gmra.mrb[0].mxu0 %v1903
        %v2028 = vpop.f32.mrb[0].mxu0
        %v2029 = vadd.f32 %v1830, %v2028
        %v2030 = vpop.f32.mrb[0].mxu0
        %v2031 = vpop.f32.mrb[0].mxu0
        %v2032 = vadd.f32 %v1833, %v2031
        %v2033 = vpop.f32.mrb[0].mxu0
        %2034 = vmatprep.mubr.bf16.mxu0 0
        %2035 = vmatmul.mubr.bf16.gmra.mrb[0].mxu0 %v1906
        %v2036 = vpop.f32.mrb[0].mxu0
        %v2037 = vadd.f32 %v1838, %v2036
        %v2038 = vpop.f32.mrb[0].mxu0
        %v2039 = vpop.f32.mrb[0].mxu0
        %v2040 = vadd.f32 %v1841, %v2039
        %v2041 = vpop.f32.mrb[0].mxu0
        %2042 = vmatprep.mubr.bf16.mxu0 0
        %2043 = vmatmul.mubr.bf16.gmra.mrb[0].mxu0 %v1909
        %v2044 = vpop.f32.mrb[0].mxu0
        %v2045 = vadd.f32 %v1846, %v2044
        %v2046 = vpop.f32.mrb[0].mxu0
        %v2047 = vpop.f32.mrb[0].mxu0
        %v2048 = vadd.f32 %v1849, %v2047
        %v2049 = vpop.f32.mrb[0].mxu0
        %2050 = vmatprep.mubr.bf16.mxu0 0
        %2051 = vmatmul.mubr.bf16.gmra.mrb[0].mxu0 %v1912
        %v2052 = vpop.f32.mrb[0].mxu0
        %v2053 = vadd.f32 %v1854, %v2052
        %v2054 = vpop.f32.mrb[0].mxu0
        %v2055 = vpop.f32.mrb[0].mxu0
        %v2056 = vadd.f32 %v1857, %v2055
        %v2057 = vpop.f32.mrb[0].mxu0
        %2058 = vdwg.mxu0
        %v2059 = vld [vmem:[#allocation2 + $0x2] sm:$0xff]
        %v2060 = vld [vmem:[#allocation2 + $0xa] sm:$0xff]
        %v2061 = vld [vmem:[#allocation2 + $0x12] sm:$0xff]
        %v2062 = vld [vmem:[#allocation2 + $0x1a] sm:$0xff]
        %v2063 = vld [vmem:[#allocation2 + $0x22] sm:$0xff]
        %v2064 = vld [vmem:[#allocation2 + $0x2a] sm:$0xff]
        %v2065 = vld [vmem:[#allocation2 + $0x32] sm:$0xff]
        %v2066 = vld [vmem:[#allocation2 + $0x3a] sm:$0xff]
        %v2067 = vld [vmem:[#allocation2 + $0x42] sm:$0xff]
        %v2068 = vld [vmem:[#allocation2 + $0x4a] sm:$0xff]
        %v2069 = vld [vmem:[#allocation2 + $0x52] sm:$0xff]
        %v2070 = vld [vmem:[#allocation2 + $0x5a] sm:$0xff]
        %v2071 = vld [vmem:[#allocation2 + $0x62] sm:$0xff]
        %v2072 = vld [vmem:[#allocation2 + $0x6a] sm:$0xff]
        %v2073 = vld [vmem:[#allocation2 + $0x72] sm:$0xff]
        %v2074 = vld [vmem:[#allocation2 + $0x7a] sm:$0xff]
        %v2075 = vld [vmem:[#allocation2 + $0x82] sm:$0xff]
        %v2076 = vld [vmem:[#allocation2 + $0x8a] sm:$0xff]
        %v2077 = vld [vmem:[#allocation2 + $0x92] sm:$0xff]
        %v2078 = vld [vmem:[#allocation2 + $0x9a] sm:$0xff]
        %v2079 = vld [vmem:[#allocation2 + $0xa2] sm:$0xff]
        %v2080 = vld [vmem:[#allocation2 + $0xaa] sm:$0xff]
        %v2081 = vld [vmem:[#allocation2 + $0xb2] sm:$0xff]
        %v2082 = vld [vmem:[#allocation2 + $0xba] sm:$0xff]
        %v2083 = vld [vmem:[#allocation2 + $0xc2] sm:$0xff]
        %v2084 = vld [vmem:[#allocation2 + $0xca] sm:$0xff]
        %v2085 = vld [vmem:[#allocation2 + $0xd2] sm:$0xff]
        %v2086 = vld [vmem:[#allocation2 + $0xda] sm:$0xff]
        %v2087 = vpack.c.bf16 %v2060, %v2059
        %v2088 = vpack.c.bf16 %v2062, %v2061
        %v2089 = vpack.c.bf16 %v2064, %v2063
        %v2090 = vpack.c.bf16 %v2066, %v2065
        %v2091 = vpack.c.bf16 %v2068, %v2067
        %v2092 = vpack.c.bf16 %v2070, %v2069
        %v2093 = vpack.c.bf16 %v2072, %v2071
        %v2094 = vpack.c.bf16 %v2074, %v2073
        %v2095 = vpack.c.bf16 %v2076, %v2075
        %v2096 = vpack.c.bf16 %v2078, %v2077
        %v2097 = vpack.c.bf16 %v2080, %v2079
        %v2098 = vpack.c.bf16 %v2082, %v2081
        %v2099 = vpack.c.bf16 %v2084, %v2083
        %v2100 = vpack.c.bf16 %v2086, %v2085
        %s2101 = scalar_lea.vmem %s3, 32
        %v2102 = vld [vmem:[%s2101] sm:$0xf]
        %v2103 = vld [vmem:[%s2101 + $0x4] sm:$0xf]
        %v2104 = vld [vmem:[%s2101 + $0x8] sm:$0xf]
        %v2105 = vld [vmem:[%s2101 + $0xc] sm:$0xf]
        %v2110 = vunpack.c.l.b16 %v2102
        %v2111 = vunpack.c.l.b16 %v2103
        %v2112 = vunpack.c.l.b16 %v2104
        %v2113 = vunpack.c.l.b16 %v2105
        %v2114 = vpack.c.b16 %v2111, %v2110
        %v2115 = vpack.c.b16 %v2113, %v2112
        %v2119 = vsel %vm1534, %v2087, 0
        %v2122 = vsel %vm1534, %v2088, 0
        %v2125 = vsel %vm1534, %v2089, 0
        %v2128 = vsel %vm1534, %v2090, 0
        %v2131 = vsel %vm1534, %v2091, 0
        %v2134 = vsel %vm1534, %v2092, 0
        %v2137 = vsel %vm1534, %v2093, 0
        %v2140 = vsel %vm1534, %v2094, 0
        %v2143 = vsel %vm1534, %v2095, 0
        %v2146 = vsel %vm1534, %v2096, 0
        %v2149 = vsel %vm1534, %v2097, 0
        %v2152 = vsel %vm1534, %v2098, 0
        %v2155 = vsel %vm1534, %v2099, 0
        %v2158 = vsel %vm1534, %v2100, 0
        %2160 = vmatprep.subr.bf16.mxu0 0
        %2161 = vmatpush1.bf16.msra.mxu0 %v2114
        %2162 = vmatprep.subr.bf16.mxu0 0
        %2163 = vmatpush1.bf16.msra.mxu0 %v2115
        %2164 = vmatprep.subr.bf16.mxu0 0
        %2165 = vmatpush1.bf16.msra.mxu0 0
        %2166 = vmatprep.subr.bf16.mxu0 0
        %2167 = vmatpush1.bf16.msra.mxu0 0
        %2168 = vmatprep.subr.bf16.mxu0 0
        %2169 = vmatpush1.bf16.msra.mxu0 0
        %2170 = vmatprep.subr.bf16.mxu0 0
        %2171 = vmatpush1.bf16.msra.mxu0 0
        %2172 = vmatprep.subr.bf16.mxu0 0
        %2173 = vmatpush1.bf16.msra.mxu0 0
        %2174 = vmatprep.subr.bf16.mxu0 0
        %2175 = vmatpush1.bf16.msra.mxu0 0
        %2176 = vmatprep.subr.bf16.mxu0 0
        %2177 = vmatpush1.bf16.msra.mxu0 0
        %2178 = vmatprep.subr.bf16.mxu0 0
        %2179 = vmatpush1.bf16.msra.mxu0 0
        %2180 = vmatprep.subr.bf16.mxu0 0
        %2181 = vmatpush1.bf16.msra.mxu0 0
        %2182 = vmatprep.subr.bf16.mxu0 0
        %2183 = vmatpush1.bf16.msra.mxu0 0
        %2184 = vmatprep.subr.bf16.mxu0 0
        %2185 = vmatpush1.bf16.msra.mxu0 0
        %2186 = vmatprep.subr.bf16.mxu0 0
        %2187 = vmatpush1.bf16.msra.mxu0 0
        %2188 = vmatprep.subr.bf16.mxu0 0
        %2189 = vmatpush1.bf16.msra.mxu0 0
        %2190 = vmatprep.subr.bf16.mxu0 0
        %2191 = vmatpush1.bf16.msra.mxu0 0
        %2192 = vmatprep.mubr.bf16.mxu0 0
        %2193 = vmatmul.mubr.bf16.gmra.mrb[0].mxu0 %v2119
        %v2194 = vpop.f32.mrb[0].mxu0
        %v2195 = vadd.f32 0.0, %v2194
        %v2196 = vpop.f32.mrb[0].mxu0
        %v2197 = vpop.f32.mrb[0].mxu0
        %v2198 = vadd.f32 0.0, %v2197
        %v2199 = vpop.f32.mrb[0].mxu0
        %2200 = vmatprep.mubr.bf16.mxu0 0
        %2201 = vmatmul.mubr.bf16.gmra.mrb[0].mxu0 %v2122
        %v2202 = vpop.f32.mrb[0].mxu0
        %v2203 = vadd.f32 0.0, %v2202
        %v2204 = vpop.f32.mrb[0].mxu0
        %v2205 = vpop.f32.mrb[0].mxu0
        %v2206 = vadd.f32 0.0, %v2205
        %v2207 = vpop.f32.mrb[0].mxu0
        %2208 = vmatprep.mubr.bf16.mxu0 0
        %2209 = vmatmul.mubr.bf16.gmra.mrb[0].mxu0 %v2125
        %v2210 = vpop.f32.mrb[0].mxu0
        %v2211 = vadd.f32 0.0, %v2210
        %v2212 = vpop.f32.mrb[0].mxu0
        %v2213 = vpop.f32.mrb[0].mxu0
        %v2214 = vadd.f32 0.0, %v2213
        %v2215 = vpop.f32.mrb[0].mxu0
        %2216 = vmatprep.mubr.bf16.mxu0 0
        %2217 = vmatmul.mubr.bf16.gmra.mrb[0].mxu0 %v2128
        %v2218 = vpop.f32.mrb[0].mxu0
        %v2219 = vadd.f32 0.0, %v2218
        %v2220 = vpop.f32.mrb[0].mxu0
        %v2221 = vpop.f32.mrb[0].mxu0
        %v2222 = vadd.f32 0.0, %v2221
        %v2223 = vpop.f32.mrb[0].mxu0
        %2224 = vmatprep.mubr.bf16.mxu0 0
        %2225 = vmatmul.mubr.bf16.gmra.mrb[0].mxu0 %v2131
        %v2226 = vpop.f32.mrb[0].mxu0
        %v2227 = vadd.f32 0.0, %v2226
        %v2228 = vpop.f32.mrb[0].mxu0
        %v2229 = vpop.f32.mrb[0].mxu0
        %v2230 = vadd.f32 0.0, %v2229
        %v2231 = vpop.f32.mrb[0].mxu0
        %2232 = vmatprep.mubr.bf16.mxu0 0
        %2233 = vmatmul.mubr.bf16.gmra.mrb[0].mxu0 %v2134
        %v2234 = vpop.f32.mrb[0].mxu0
        %v2235 = vadd.f32 0.0, %v2234
        %v2236 = vpop.f32.mrb[0].mxu0
        %v2237 = vpop.f32.mrb[0].mxu0
        %v2238 = vadd.f32 0.0, %v2237
        %v2239 = vpop.f32.mrb[0].mxu0
        %2240 = vmatprep.mubr.bf16.mxu0 0
        %2241 = vmatmul.mubr.bf16.gmra.mrb[0].mxu0 %v2137
        %v2242 = vpop.f32.mrb[0].mxu0
        %v2243 = vadd.f32 0.0, %v2242
        %v2244 = vpop.f32.mrb[0].mxu0
        %v2245 = vpop.f32.mrb[0].mxu0
        %v2246 = vadd.f32 0.0, %v2245
        %v2247 = vpop.f32.mrb[0].mxu0
        %2248 = vmatprep.mubr.bf16.mxu0 0
        %2249 = vmatmul.mubr.bf16.gmra.mrb[0].mxu0 %v2140
        %v2250 = vpop.f32.mrb[0].mxu0
        %v2251 = vadd.f32 0.0, %v2250
        %v2252 = vpop.f32.mrb[0].mxu0
        %v2253 = vpop.f32.mrb[0].mxu0
        %v2254 = vadd.f32 0.0, %v2253
        %v2255 = vpop.f32.mrb[0].mxu0
        %2256 = vmatprep.mubr.bf16.mxu0 0
        %2257 = vmatmul.mubr.bf16.gmra.mrb[0].mxu0 %v2143
        %v2258 = vpop.f32.mrb[0].mxu0
        %v2259 = vadd.f32 0.0, %v2258
        %v2260 = vpop.f32.mrb[0].mxu0
        %v2261 = vpop.f32.mrb[0].mxu0
        %v2262 = vadd.f32 0.0, %v2261
        %v2263 = vpop.f32.mrb[0].mxu0
        %2264 = vmatprep.mubr.bf16.mxu0 0
        %2265 = vmatmul.mubr.bf16.gmra.mrb[0].mxu0 %v2146
        %v2266 = vpop.f32.mrb[0].mxu0
        %v2267 = vadd.f32 0.0, %v2266
        %v2268 = vpop.f32.mrb[0].mxu0
        %v2269 = vpop.f32.mrb[0].mxu0
        %v2270 = vadd.f32 0.0, %v2269
        %v2271 = vpop.f32.mrb[0].mxu0
        %2272 = vmatprep.mubr.bf16.mxu0 0
        %2273 = vmatmul.mubr.bf16.gmra.mrb[0].mxu0 %v2149
        %v2274 = vpop.f32.mrb[0].mxu0
        %v2275 = vadd.f32 0.0, %v2274
        %v2276 = vpop.f32.mrb[0].mxu0
        %v2277 = vpop.f32.mrb[0].mxu0
        %v2278 = vadd.f32 0.0, %v2277
        %v2279 = vpop.f32.mrb[0].mxu0
        %2280 = vmatprep.mubr.bf16.mxu0 0
        %2281 = vmatmul.mubr.bf16.gmra.mrb[0].mxu0 %v2152
        %v2282 = vpop.f32.mrb[0].mxu0
        %v2283 = vadd.f32 0.0, %v2282
        %v2284 = vpop.f32.mrb[0].mxu0
        %v2285 = vpop.f32.mrb[0].mxu0
        %v2286 = vadd.f32 0.0, %v2285
        %v2287 = vpop.f32.mrb[0].mxu0
        %2288 = vmatprep.mubr.bf16.mxu0 0
        %2289 = vmatmul.mubr.bf16.gmra.mrb[0].mxu0 %v2155
        %v2290 = vpop.f32.mrb[0].mxu0
        %v2291 = vadd.f32 0.0, %v2290
        %v2292 = vpop.f32.mrb[0].mxu0
        %v2293 = vpop.f32.mrb[0].mxu0
        %v2294 = vadd.f32 0.0, %v2293
        %v2295 = vpop.f32.mrb[0].mxu0
        %2296 = vmatprep.mubr.bf16.mxu0 0
        %2297 = vmatmul.mubr.bf16.gmra.mrb[0].mxu0 %v2158
        %v2298 = vpop.f32.mrb[0].mxu0
        %v2299 = vadd.f32 0.0, %v2298
        %v2300 = vpop.f32.mrb[0].mxu0
        %v2301 = vpop.f32.mrb[0].mxu0
        %v2302 = vadd.f32 0.0, %v2301
        %v2303 = vpop.f32.mrb[0].mxu0
        %2304 = vdwg.mxu0
        %v2305 = vadd.f32 %v1949, %v2195
        %v2306 = vadd.f32 %v1952, %v2198
        %v2307 = vadd.f32 %v1957, %v2203
        %v2308 = vadd.f32 %v1960, %v2206
        %v2309 = vadd.f32 %v1965, %v2211
        %v2310 = vadd.f32 %v1968, %v2214
        %v2311 = vadd.f32 %v1973, %v2219
        %v2312 = vadd.f32 %v1976, %v2222
        %v2313 = vadd.f32 %v1981, %v2227
        %v2314 = vadd.f32 %v1984, %v2230
        %v2315 = vadd.f32 %v1989, %v2235
        %v2316 = vadd.f32 %v1992, %v2238
        %v2317 = vadd.f32 %v1997, %v2243
        %v2318 = vadd.f32 %v2000, %v2246
        %v2319 = vadd.f32 %v2005, %v2251
        %v2320 = vadd.f32 %v2008, %v2254
        %v2321 = vadd.f32 %v2013, %v2259
        %v2322 = vadd.f32 %v2016, %v2262
        %v2323 = vadd.f32 %v2021, %v2267
        %v2324 = vadd.f32 %v2024, %v2270
        %v2325 = vadd.f32 %v2029, %v2275
        %v2326 = vadd.f32 %v2032, %v2278
        %v2327 = vadd.f32 %v2037, %v2283
        %v2328 = vadd.f32 %v2040, %v2286
        %v2329 = vadd.f32 %v2045, %v2291
        %v2330 = vadd.f32 %v2048, %v2294
        %v2331 = vadd.f32 %v2053, %v2299
        %v2332 = vadd.f32 %v2056, %v2302
        %v2333 = vld [vmem:[#allocation2 + $0x10] sm:$0xff]
        %v2334 = vld [vmem:[#allocation2 + $0x18] sm:$0xff]
        %v2335 = vld [vmem:[#allocation2 + $0x20] sm:$0xff]
        %v2336 = vld [vmem:[#allocation2 + $0x28] sm:$0xff]
        %v2337 = vld [vmem:[#allocation2 + $0x30] sm:$0xff]
        %v2338 = vld [vmem:[#allocation2 + $0x38] sm:$0xff]
        %v2339 = vld [vmem:[#allocation2 + $0x40] sm:$0xff]
        %v2340 = vld [vmem:[#allocation2 + $0x48] sm:$0xff]
        %v2341 = vld [vmem:[#allocation2 + $0x50] sm:$0xff]
        %v2342 = vld [vmem:[#allocation2 + $0x58] sm:$0xff]
        %v2343 = vld [vmem:[#allocation2 + $0x60] sm:$0xff]
        %v2344 = vld [vmem:[#allocation2 + $0x68] sm:$0xff]
        %v2345 = vld [vmem:[#allocation2 + $0x70] sm:$0xff]
        %v2346 = vld [vmem:[#allocation2 + $0x78] sm:$0xff]
        %v2347 = vld [vmem:[#allocation2 + $0x80] sm:$0xff]
        %v2348 = vld [vmem:[#allocation2 + $0x88] sm:$0xff]
        %v2349 = vld [vmem:[#allocation2 + $0x90] sm:$0xff]
        %v2350 = vld [vmem:[#allocation2 + $0x98] sm:$0xff]
        %v2351 = vld [vmem:[#allocation2 + $0xa0] sm:$0xff]
        %v2352 = vld [vmem:[#allocation2 + $0xa8] sm:$0xff]
        %v2353 = vld [vmem:[#allocation2 + $0xb0] sm:$0xff]
        %v2354 = vld [vmem:[#allocation2 + $0xb8] sm:$0xff]
        %v2355 = vld [vmem:[#allocation2 + $0xc0] sm:$0xff]
        %v2356 = vld [vmem:[#allocation2 + $0xc8] sm:$0xff]
        %v2357 = vld [vmem:[#allocation2 + $0xd0] sm:$0xff]
        %v2358 = vld [vmem:[#allocation2 + $0xd8] sm:$0xff]
        %v2359 = vld [vmem:[#allocation2 + $0xe0] sm:$0xff]
        %v2360 = vld [vmem:[#allocation2 + $0xe8] sm:$0xff]
        %v2361 = vpack.c.bf16 %v2334, %v2333
        %v2362 = vpack.c.bf16 %v2336, %v2335
        %v2363 = vpack.c.bf16 %v2338, %v2337
        %v2364 = vpack.c.bf16 %v2340, %v2339
        %v2365 = vpack.c.bf16 %v2342, %v2341
        %v2366 = vpack.c.bf16 %v2344, %v2343
        %v2367 = vpack.c.bf16 %v2346, %v2345
        %v2368 = vpack.c.bf16 %v2348, %v2347
        %v2369 = vpack.c.bf16 %v2350, %v2349
        %v2370 = vpack.c.bf16 %v2352, %v2351
        %v2371 = vpack.c.bf16 %v2354, %v2353
        %v2372 = vpack.c.bf16 %v2356, %v2355
        %v2373 = vpack.c.bf16 %v2358, %v2357
        %v2374 = vpack.c.bf16 %v2360, %v2359
        %s2375 = scalar_lea.vmem %s3, 48
        %v2376 = vld [vmem:[%s2375] sm:$0xf]
        %v2377 = vld [vmem:[%s2375 + $0x4] sm:$0xf]
        %v2378 = vld [vmem:[%s2375 + $0x8] sm:$0xf]
        %v2379 = vld [vmem:[%s2375 + $0xc] sm:$0xf]
        %v2384 = vunpack.c.l.b16 %v2376
        %v2385 = vunpack.c.l.b16 %v2377
        %v2386 = vunpack.c.l.b16 %v2378
        %v2387 = vunpack.c.l.b16 %v2379
        %v2388 = vpack.c.b16 %v2385, %v2384
        %v2389 = vpack.c.b16 %v2387, %v2386
        %v2393 = vsel %vm1534, %v2361, 0
        %v2396 = vsel %vm1534, %v2362, 0
        %v2399 = vsel %vm1534, %v2363, 0
        %v2402 = vsel %vm1534, %v2364, 0
        %v2405 = vsel %vm1534, %v2365, 0
        %v2408 = vsel %vm1534, %v2366, 0
        %v2411 = vsel %vm1534, %v2367, 0
        %v2414 = vsel %vm1534, %v2368, 0
        %v2417 = vsel %vm1534, %v2369, 0
        %v2420 = vsel %vm1534, %v2370, 0
        %v2423 = vsel %vm1534, %v2371, 0
        %v2426 = vsel %vm1534, %v2372, 0
        %v2429 = vsel %vm1534, %v2373, 0
        %v2432 = vsel %vm1534, %v2374, 0
        %2434 = vmatprep.subr.bf16.mxu0 0
        %2435 = vmatpush1.bf16.msra.mxu0 %v2388
        %2436 = vmatprep.subr.bf16.mxu0 0
        %2437 = vmatpush1.bf16.msra.mxu0 %v2389
        %2438 = vmatprep.subr.bf16.mxu0 0
        %2439 = vmatpush1.bf16.msra.mxu0 0
        %2440 = vmatprep.subr.bf16.mxu0 0
        %2441 = vmatpush1.bf16.msra.mxu0 0
        %2442 = vmatprep.subr.bf16.mxu0 0
        %2443 = vmatpush1.bf16.msra.mxu0 0
        %2444 = vmatprep.subr.bf16.mxu0 0
        %2445 = vmatpush1.bf16.msra.mxu0 0
        %2446 = vmatprep.subr.bf16.mxu0 0
        %2447 = vmatpush1.bf16.msra.mxu0 0
        %2448 = vmatprep.subr.bf16.mxu0 0
        %2449 = vmatpush1.bf16.msra.mxu0 0
        %2450 = vmatprep.subr.bf16.mxu0 0
        %2451 = vmatpush1.bf16.msra.mxu0 0
        %2452 = vmatprep.subr.bf16.mxu0 0
        %2453 = vmatpush1.bf16.msra.mxu0 0
        %2454 = vmatprep.subr.bf16.mxu0 0
        %2455 = vmatpush1.bf16.msra.mxu0 0
        %2456 = vmatprep.subr.bf16.mxu0 0
        %2457 = vmatpush1.bf16.msra.mxu0 0
        %2458 = vmatprep.subr.bf16.mxu0 0
        %2459 = vmatpush1.bf16.msra.mxu0 0
        %2460 = vmatprep.subr.bf16.mxu0 0
        %2461 = vmatpush1.bf16.msra.mxu0 0
        %2462 = vmatprep.subr.bf16.mxu0 0
        %2463 = vmatpush1.bf16.msra.mxu0 0
        %2464 = vmatprep.subr.bf16.mxu0 0
        %2465 = vmatpush1.bf16.msra.mxu0 0
        %2466 = vmatprep.mubr.bf16.mxu0 0
        %2467 = vmatmul.mubr.bf16.gmra.mrb[0].mxu0 %v2393
        %v2468 = vpop.f32.mrb[0].mxu0
        %v2469 = vadd.f32 0.0, %v2468
        %v2470 = vpop.f32.mrb[0].mxu0
        %v2471 = vpop.f32.mrb[0].mxu0
        %v2472 = vadd.f32 0.0, %v2471
        %v2473 = vpop.f32.mrb[0].mxu0
        %2474 = vmatprep.mubr.bf16.mxu0 0
        %2475 = vmatmul.mubr.bf16.gmra.mrb[0].mxu0 %v2396
        %v2476 = vpop.f32.mrb[0].mxu0
        %v2477 = vadd.f32 0.0, %v2476
        %v2478 = vpop.f32.mrb[0].mxu0
        %v2479 = vpop.f32.mrb[0].mxu0
        %v2480 = vadd.f32 0.0, %v2479
        %v2481 = vpop.f32.mrb[0].mxu0
        %2482 = vmatprep.mubr.bf16.mxu0 0
        %2483 = vmatmul.mubr.bf16.gmra.mrb[0].mxu0 %v2399
        %v2484 = vpop.f32.mrb[0].mxu0
        %v2485 = vadd.f32 0.0, %v2484
        %v2486 = vpop.f32.mrb[0].mxu0
        %v2487 = vpop.f32.mrb[0].mxu0
        %v2488 = vadd.f32 0.0, %v2487
        %v2489 = vpop.f32.mrb[0].mxu0
        %2490 = vmatprep.mubr.bf16.mxu0 0
        %2491 = vmatmul.mubr.bf16.gmra.mrb[0].mxu0 %v2402
        %v2492 = vpop.f32.mrb[0].mxu0
        %v2493 = vadd.f32 0.0, %v2492
        %v2494 = vpop.f32.mrb[0].mxu0
        %v2495 = vpop.f32.mrb[0].mxu0
        %v2496 = vadd.f32 0.0, %v2495
        %v2497 = vpop.f32.mrb[0].mxu0
        %2498 = vmatprep.mubr.bf16.mxu0 0
        %2499 = vmatmul.mubr.bf16.gmra.mrb[0].mxu0 %v2405
        %v2500 = vpop.f32.mrb[0].mxu0
        %v2501 = vadd.f32 0.0, %v2500
        %v2502 = vpop.f32.mrb[0].mxu0
        %v2503 = vpop.f32.mrb[0].mxu0
        %v2504 = vadd.f32 0.0, %v2503
        %v2505 = vpop.f32.mrb[0].mxu0
        %2506 = vmatprep.mubr.bf16.mxu0 0
        %2507 = vmatmul.mubr.bf16.gmra.mrb[0].mxu0 %v2408
        %v2508 = vpop.f32.mrb[0].mxu0
        %v2509 = vadd.f32 0.0, %v2508
        %v2510 = vpop.f32.mrb[0].mxu0
        %v2511 = vpop.f32.mrb[0].mxu0
        %v2512 = vadd.f32 0.0, %v2511
        %v2513 = vpop.f32.mrb[0].mxu0
        %2514 = vmatprep.mubr.bf16.mxu0 0
        %2515 = vmatmul.mubr.bf16.gmra.mrb[0].mxu0 %v2411
        %v2516 = vpop.f32.mrb[0].mxu0
        %v2517 = vadd.f32 0.0, %v2516
        %v2518 = vpop.f32.mrb[0].mxu0
        %v2519 = vpop.f32.mrb[0].mxu0
        %v2520 = vadd.f32 0.0, %v2519
        %v2521 = vpop.f32.mrb[0].mxu0
        %2522 = vmatprep.mubr.bf16.mxu0 0
        %2523 = vmatmul.mubr.bf16.gmra.mrb[0].mxu0 %v2414
        %v2524 = vpop.f32.mrb[0].mxu0
        %v2525 = vadd.f32 0.0, %v2524
        %v2526 = vpop.f32.mrb[0].mxu0
        %v2527 = vpop.f32.mrb[0].mxu0
        %v2528 = vadd.f32 0.0, %v2527
        %v2529 = vpop.f32.mrb[0].mxu0
        %2530 = vmatprep.mubr.bf16.mxu0 0
        %2531 = vmatmul.mubr.bf16.gmra.mrb[0].mxu0 %v2417
        %v2532 = vpop.f32.mrb[0].mxu0
        %v2533 = vadd.f32 0.0, %v2532
        %v2534 = vpop.f32.mrb[0].mxu0
        %v2535 = vpop.f32.mrb[0].mxu0
        %v2536 = vadd.f32 0.0, %v2535
        %v2537 = vpop.f32.mrb[0].mxu0
        %2538 = vmatprep.mubr.bf16.mxu0 0
        %2539 = vmatmul.mubr.bf16.gmra.mrb[0].mxu0 %v2420
        %v2540 = vpop.f32.mrb[0].mxu0
        %v2541 = vadd.f32 0.0, %v2540
        %v2542 = vpop.f32.mrb[0].mxu0
        %v2543 = vpop.f32.mrb[0].mxu0
        %v2544 = vadd.f32 0.0, %v2543
        %v2545 = vpop.f32.mrb[0].mxu0
        %2546 = vmatprep.mubr.bf16.mxu0 0
        %2547 = vmatmul.mubr.bf16.gmra.mrb[0].mxu0 %v2423
        %v2548 = vpop.f32.mrb[0].mxu0
        %v2549 = vadd.f32 0.0, %v2548
        %v2550 = vpop.f32.mrb[0].mxu0
        %v2551 = vpop.f32.mrb[0].mxu0
        %v2552 = vadd.f32 0.0, %v2551
        %v2553 = vpop.f32.mrb[0].mxu0
        %2554 = vmatprep.mubr.bf16.mxu0 0
        %2555 = vmatmul.mubr.bf16.gmra.mrb[0].mxu0 %v2426
        %v2556 = vpop.f32.mrb[0].mxu0
        %v2557 = vadd.f32 0.0, %v2556
        %v2558 = vpop.f32.mrb[0].mxu0
        %v2559 = vpop.f32.mrb[0].mxu0
        %v2560 = vadd.f32 0.0, %v2559
        %v2561 = vpop.f32.mrb[0].mxu0
        %2562 = vmatprep.mubr.bf16.mxu0 0
        %2563 = vmatmul.mubr.bf16.gmra.mrb[0].mxu0 %v2429
        %v2564 = vpop.f32.mrb[0].mxu0
        %v2565 = vadd.f32 0.0, %v2564
        %v2566 = vpop.f32.mrb[0].mxu0
        %v2567 = vpop.f32.mrb[0].mxu0
        %v2568 = vadd.f32 0.0, %v2567
        %v2569 = vpop.f32.mrb[0].mxu0
        %2570 = vmatprep.mubr.bf16.mxu0 0
        %2571 = vmatmul.mubr.bf16.gmra.mrb[0].mxu0 %v2432
        %v2572 = vpop.f32.mrb[0].mxu0
        %v2573 = vadd.f32 0.0, %v2572
        %v2574 = vpop.f32.mrb[0].mxu0
        %v2575 = vpop.f32.mrb[0].mxu0
        %v2576 = vadd.f32 0.0, %v2575
        %v2577 = vpop.f32.mrb[0].mxu0
        %2578 = vdwg.mxu0
        %v2579 = vadd.f32 %v2305, %v2469
        %v2580 = vadd.f32 %v2306, %v2472
        %v2581 = vadd.f32 %v2307, %v2477
        %v2582 = vadd.f32 %v2308, %v2480
        %v2583 = vadd.f32 %v2309, %v2485
        %v2584 = vadd.f32 %v2310, %v2488
        %v2585 = vadd.f32 %v2311, %v2493
        %v2586 = vadd.f32 %v2312, %v2496
        %v2587 = vadd.f32 %v2313, %v2501
        %v2588 = vadd.f32 %v2314, %v2504
        %v2589 = vadd.f32 %v2315, %v2509
        %v2590 = vadd.f32 %v2316, %v2512
        %v2591 = vadd.f32 %v2317, %v2517
        %v2592 = vadd.f32 %v2318, %v2520
        %v2593 = vadd.f32 %v2319, %v2525
        %v2594 = vadd.f32 %v2320, %v2528
        %v2595 = vadd.f32 %v2321, %v2533
        %v2596 = vadd.f32 %v2322, %v2536
        %v2597 = vadd.f32 %v2323, %v2541
        %v2598 = vadd.f32 %v2324, %v2544
        %v2599 = vadd.f32 %v2325, %v2549
        %v2600 = vadd.f32 %v2326, %v2552
        %v2601 = vadd.f32 %v2327, %v2557
        %v2602 = vadd.f32 %v2328, %v2560
        %v2603 = vadd.f32 %v2329, %v2565
        %v2604 = vadd.f32 %v2330, %v2568
        %v2605 = vadd.f32 %v2331, %v2573
        %v2606 = vadd.f32 %v2332, %v2576
        %v2607 = vld [vmem:[#allocation2 + $0x11] sm:$0xff]
        %v2608 = vld [vmem:[#allocation2 + $0x19] sm:$0xff]
        %v2609 = vld [vmem:[#allocation2 + $0x21] sm:$0xff]
        %v2610 = vld [vmem:[#allocation2 + $0x29] sm:$0xff]
        %v2611 = vld [vmem:[#allocation2 + $0x31] sm:$0xff]
        %v2612 = vld [vmem:[#allocation2 + $0x39] sm:$0xff]
        %v2613 = vld [vmem:[#allocation2 + $0x41] sm:$0xff]
        %v2614 = vld [vmem:[#allocation2 + $0x49] sm:$0xff]
        %v2615 = vld [vmem:[#allocation2 + $0x51] sm:$0xff]
        %v2616 = vld [vmem:[#allocation2 + $0x59] sm:$0xff]
        %v2617 = vld [vmem:[#allocation2 + $0x61] sm:$0xff]
        %v2618 = vld [vmem:[#allocation2 + $0x69] sm:$0xff]
        %v2619 = vld [vmem:[#allocation2 + $0x71] sm:$0xff]
        %v2620 = vld [vmem:[#allocation2 + $0x79] sm:$0xff]
        %v2621 = vld [vmem:[#allocation2 + $0x81] sm:$0xff]
        %v2622 = vld [vmem:[#allocation2 + $0x89] sm:$0xff]
        %v2623 = vld [vmem:[#allocation2 + $0x91] sm:$0xff]
        %v2624 = vld [vmem:[#allocation2 + $0x99] sm:$0xff]
        %v2625 = vld [vmem:[#allocation2 + $0xa1] sm:$0xff]
        %v2626 = vld [vmem:[#allocation2 + $0xa9] sm:$0xff]
        %v2627 = vld [vmem:[#allocation2 + $0xb1] sm:$0xff]
        %v2628 = vld [vmem:[#allocation2 + $0xb9] sm:$0xff]
        %v2629 = vld [vmem:[#allocation2 + $0xc1] sm:$0xff]
        %v2630 = vld [vmem:[#allocation2 + $0xc9] sm:$0xff]
        %v2631 = vld [vmem:[#allocation2 + $0xd1] sm:$0xff]
        %v2632 = vld [vmem:[#allocation2 + $0xd9] sm:$0xff]
        %v2633 = vld [vmem:[#allocation2 + $0xe1] sm:$0xff]
        %v2634 = vld [vmem:[#allocation2 + $0xe9] sm:$0xff]
        %v2635 = vpack.c.bf16 %v2608, %v2607
        %v2636 = vpack.c.bf16 %v2610, %v2609
        %v2637 = vpack.c.bf16 %v2612, %v2611
        %v2638 = vpack.c.bf16 %v2614, %v2613
        %v2639 = vpack.c.bf16 %v2616, %v2615
        %v2640 = vpack.c.bf16 %v2618, %v2617
        %v2641 = vpack.c.bf16 %v2620, %v2619
        %v2642 = vpack.c.bf16 %v2622, %v2621
        %v2643 = vpack.c.bf16 %v2624, %v2623
        %v2644 = vpack.c.bf16 %v2626, %v2625
        %v2645 = vpack.c.bf16 %v2628, %v2627
        %v2646 = vpack.c.bf16 %v2630, %v2629
        %v2647 = vpack.c.bf16 %v2632, %v2631
        %v2648 = vpack.c.bf16 %v2634, %v2633
        %s2649 = scalar_lea.vmem %s3, 64
        %v2650 = vld [vmem:[%s2649] sm:$0xf]
        %v2651 = vld [vmem:[%s2649 + $0x4] sm:$0xf]
        %v2652 = vld [vmem:[%s2649 + $0x8] sm:$0xf]
        %v2653 = vld [vmem:[%s2649 + $0xc] sm:$0xf]
        %v2658 = vunpack.c.l.b16 %v2650
        %v2659 = vunpack.c.l.b16 %v2651
        %v2660 = vunpack.c.l.b16 %v2652
        %v2661 = vunpack.c.l.b16 %v2653
        %v2662 = vpack.c.b16 %v2659, %v2658
        %v2663 = vpack.c.b16 %v2661, %v2660
        %v2667 = vsel %vm1534, %v2635, 0
        %v2670 = vsel %vm1534, %v2636, 0
        %v2673 = vsel %vm1534, %v2637, 0
        %v2676 = vsel %vm1534, %v2638, 0
        %v2679 = vsel %vm1534, %v2639, 0
        %v2682 = vsel %vm1534, %v2640, 0
        %v2685 = vsel %vm1534, %v2641, 0
        %v2688 = vsel %vm1534, %v2642, 0
        %v2691 = vsel %vm1534, %v2643, 0
        %v2694 = vsel %vm1534, %v2644, 0
        %v2697 = vsel %vm1534, %v2645, 0
        %v2700 = vsel %vm1534, %v2646, 0
        %v2703 = vsel %vm1534, %v2647, 0
        %v2706 = vsel %vm1534, %v2648, 0
        %2708 = vmatprep.subr.bf16.mxu0 0
        %2709 = vmatpush1.bf16.msra.mxu0 %v2662
        %2710 = vmatprep.subr.bf16.mxu0 0
        %2711 = vmatpush1.bf16.msra.mxu0 %v2663
        %2712 = vmatprep.subr.bf16.mxu0 0
        %2713 = vmatpush1.bf16.msra.mxu0 0
        %2714 = vmatprep.subr.bf16.mxu0 0
        %2715 = vmatpush1.bf16.msra.mxu0 0
        %2716 = vmatprep.subr.bf16.mxu0 0
        %2717 = vmatpush1.bf16.msra.mxu0 0
        %2718 = vmatprep.subr.bf16.mxu0 0
        %2719 = vmatpush1.bf16.msra.mxu0 0
        %2720 = vmatprep.subr.bf16.mxu0 0
        %2721 = vmatpush1.bf16.msra.mxu0 0
        %2722 = vmatprep.subr.bf16.mxu0 0
        %2723 = vmatpush1.bf16.msra.mxu0 0
        %2724 = vmatprep.subr.bf16.mxu0 0
        %2725 = vmatpush1.bf16.msra.mxu0 0
        %2726 = vmatprep.subr.bf16.mxu0 0
        %2727 = vmatpush1.bf16.msra.mxu0 0
        %2728 = vmatprep.subr.bf16.mxu0 0
        %2729 = vmatpush1.bf16.msra.mxu0 0
        %2730 = vmatprep.subr.bf16.mxu0 0
        %2731 = vmatpush1.bf16.msra.mxu0 0
        %2732 = vmatprep.subr.bf16.mxu0 0
        %2733 = vmatpush1.bf16.msra.mxu0 0
        %2734 = vmatprep.subr.bf16.mxu0 0
        %2735 = vmatpush1.bf16.msra.mxu0 0
        %2736 = vmatprep.subr.bf16.mxu0 0
        %2737 = vmatpush1.bf16.msra.mxu0 0
        %2738 = vmatprep.subr.bf16.mxu0 0
        %2739 = vmatpush1.bf16.msra.mxu0 0
        %2740 = vmatprep.mubr.bf16.mxu0 0
        %2741 = vmatmul.mubr.bf16.gmra.mrb[0].mxu0 %v2667
        %v2742 = vpop.f32.mrb[0].mxu0
        %v2743 = vadd.f32 0.0, %v2742
        %v2744 = vpop.f32.mrb[0].mxu0
        %v2745 = vpop.f32.mrb[0].mxu0
        %v2746 = vadd.f32 0.0, %v2745
        %v2747 = vpop.f32.mrb[0].mxu0
        %2748 = vmatprep.mubr.bf16.mxu0 0
        %2749 = vmatmul.mubr.bf16.gmra.mrb[0].mxu0 %v2670
        %v2750 = vpop.f32.mrb[0].mxu0
        %v2751 = vadd.f32 0.0, %v2750
        %v2752 = vpop.f32.mrb[0].mxu0
        %v2753 = vpop.f32.mrb[0].mxu0
        %v2754 = vadd.f32 0.0, %v2753
        %v2755 = vpop.f32.mrb[0].mxu0
        %2756 = vmatprep.mubr.bf16.mxu0 0
        %2757 = vmatmul.mubr.bf16.gmra.mrb[0].mxu0 %v2673
        %v2758 = vpop.f32.mrb[0].mxu0
        %v2759 = vadd.f32 0.0, %v2758
        %v2760 = vpop.f32.mrb[0].mxu0
        %v2761 = vpop.f32.mrb[0].mxu0
        %v2762 = vadd.f32 0.0, %v2761
        %v2763 = vpop.f32.mrb[0].mxu0
        %2764 = vmatprep.mubr.bf16.mxu0 0
        %2765 = vmatmul.mubr.bf16.gmra.mrb[0].mxu0 %v2676
        %v2766 = vpop.f32.mrb[0].mxu0
        %v2767 = vadd.f32 0.0, %v2766
        %v2768 = vpop.f32.mrb[0].mxu0
        %v2769 = vpop.f32.mrb[0].mxu0
        %v2770 = vadd.f32 0.0, %v2769
        %v2771 = vpop.f32.mrb[0].mxu0
        %2772 = vmatprep.mubr.bf16.mxu0 0
        %2773 = vmatmul.mubr.bf16.gmra.mrb[0].mxu0 %v2679
        %v2774 = vpop.f32.mrb[0].mxu0
        %v2775 = vadd.f32 0.0, %v2774
        %v2776 = vpop.f32.mrb[0].mxu0
        %v2777 = vpop.f32.mrb[0].mxu0
        %v2778 = vadd.f32 0.0, %v2777
        %v2779 = vpop.f32.mrb[0].mxu0
        %2780 = vmatprep.mubr.bf16.mxu0 0
        %2781 = vmatmul.mubr.bf16.gmra.mrb[0].mxu0 %v2682
        %v2782 = vpop.f32.mrb[0].mxu0
        %v2783 = vadd.f32 0.0, %v2782
        %v2784 = vpop.f32.mrb[0].mxu0
        %v2785 = vpop.f32.mrb[0].mxu0
        %v2786 = vadd.f32 0.0, %v2785
        %v2787 = vpop.f32.mrb[0].mxu0
        %2788 = vmatprep.mubr.bf16.mxu0 0
        %2789 = vmatmul.mubr.bf16.gmra.mrb[0].mxu0 %v2685
        %v2790 = vpop.f32.mrb[0].mxu0
        %v2791 = vadd.f32 0.0, %v2790
        %v2792 = vpop.f32.mrb[0].mxu0
        %v2793 = vpop.f32.mrb[0].mxu0
        %v2794 = vadd.f32 0.0, %v2793
        %v2795 = vpop.f32.mrb[0].mxu0
        %2796 = vmatprep.mubr.bf16.mxu0 0
        %2797 = vmatmul.mubr.bf16.gmra.mrb[0].mxu0 %v2688
        %v2798 = vpop.f32.mrb[0].mxu0
        %v2799 = vadd.f32 0.0, %v2798
        %v2800 = vpop.f32.mrb[0].mxu0
        %v2801 = vpop.f32.mrb[0].mxu0
        %v2802 = vadd.f32 0.0, %v2801
        %v2803 = vpop.f32.mrb[0].mxu0
        %2804 = vmatprep.mubr.bf16.mxu0 0
        %2805 = vmatmul.mubr.bf16.gmra.mrb[0].mxu0 %v2691
        %v2806 = vpop.f32.mrb[0].mxu0
        %v2807 = vadd.f32 0.0, %v2806
        %v2808 = vpop.f32.mrb[0].mxu0
        %v2809 = vpop.f32.mrb[0].mxu0
        %v2810 = vadd.f32 0.0, %v2809
        %v2811 = vpop.f32.mrb[0].mxu0
        %2812 = vmatprep.mubr.bf16.mxu0 0
        %2813 = vmatmul.mubr.bf16.gmra.mrb[0].mxu0 %v2694
        %v2814 = vpop.f32.mrb[0].mxu0
        %v2815 = vadd.f32 0.0, %v2814
        %v2816 = vpop.f32.mrb[0].mxu0
        %v2817 = vpop.f32.mrb[0].mxu0
        %v2818 = vadd.f32 0.0, %v2817
        %v2819 = vpop.f32.mrb[0].mxu0
        %2820 = vmatprep.mubr.bf16.mxu0 0
        %2821 = vmatmul.mubr.bf16.gmra.mrb[0].mxu0 %v2697
        %v2822 = vpop.f32.mrb[0].mxu0
        %v2823 = vadd.f32 0.0, %v2822
        %v2824 = vpop.f32.mrb[0].mxu0
        %v2825 = vpop.f32.mrb[0].mxu0
        %v2826 = vadd.f32 0.0, %v2825
        %v2827 = vpop.f32.mrb[0].mxu0
        %2828 = vmatprep.mubr.bf16.mxu0 0
        %2829 = vmatmul.mubr.bf16.gmra.mrb[0].mxu0 %v2700
        %v2830 = vpop.f32.mrb[0].mxu0
        %v2831 = vadd.f32 0.0, %v2830
        %v2832 = vpop.f32.mrb[0].mxu0
        %v2833 = vpop.f32.mrb[0].mxu0
        %v2834 = vadd.f32 0.0, %v2833
        %v2835 = vpop.f32.mrb[0].mxu0
        %2836 = vmatprep.mubr.bf16.mxu0 0
        %2837 = vmatmul.mubr.bf16.gmra.mrb[0].mxu0 %v2703
        %v2838 = vpop.f32.mrb[0].mxu0
        %v2839 = vadd.f32 0.0, %v2838
        %v2840 = vpop.f32.mrb[0].mxu0
        %v2841 = vpop.f32.mrb[0].mxu0
        %v2842 = vadd.f32 0.0, %v2841
        %v2843 = vpop.f32.mrb[0].mxu0
        %2844 = vmatprep.mubr.bf16.mxu0 0
        %2845 = vmatmul.mubr.bf16.gmra.mrb[0].mxu0 %v2706
        %v2846 = vpop.f32.mrb[0].mxu0
        %v2847 = vadd.f32 0.0, %v2846
        %v2848 = vpop.f32.mrb[0].mxu0
        %v2849 = vpop.f32.mrb[0].mxu0
        %v2850 = vadd.f32 0.0, %v2849
        %v2851 = vpop.f32.mrb[0].mxu0
        %2852 = vdwg.mxu0
        %v2853 = vadd.f32 %v2579, %v2743
        %v2854 = vadd.f32 %v2580, %v2746
        %v2855 = vadd.f32 %v2581, %v2751
        %v2856 = vadd.f32 %v2582, %v2754
        %v2857 = vadd.f32 %v2583, %v2759
        %v2858 = vadd.f32 %v2584, %v2762
        %v2859 = vadd.f32 %v2585, %v2767
        %v2860 = vadd.f32 %v2586, %v2770
        %v2861 = vadd.f32 %v2587, %v2775
        %v2862 = vadd.f32 %v2588, %v2778
        %v2863 = vadd.f32 %v2589, %v2783
        %v2864 = vadd.f32 %v2590, %v2786
        %v2865 = vadd.f32 %v2591, %v2791
        %v2866 = vadd.f32 %v2592, %v2794
        %v2867 = vadd.f32 %v2593, %v2799
        %v2868 = vadd.f32 %v2594, %v2802
        %v2869 = vadd.f32 %v2595, %v2807
        %v2870 = vadd.f32 %v2596, %v2810
        %v2871 = vadd.f32 %v2597, %v2815
        %v2872 = vadd.f32 %v2598, %v2818
        %v2873 = vadd.f32 %v2599, %v2823
        %v2874 = vadd.f32 %v2600, %v2826
        %v2875 = vadd.f32 %v2601, %v2831
        %v2876 = vadd.f32 %v2602, %v2834
        %v2877 = vadd.f32 %v2603, %v2839
        %v2878 = vadd.f32 %v2604, %v2842
        %v2879 = vadd.f32 %v2605, %v2847
        %v2880 = vadd.f32 %v2606, %v2850
        %v2881 = vld [vmem:[#allocation2 + $0x12] sm:$0xff]
        %v2882 = vld [vmem:[#allocation2 + $0x1a] sm:$0xff]
        %v2883 = vld [vmem:[#allocation2 + $0x22] sm:$0xff]
        %v2884 = vld [vmem:[#allocation2 + $0x2a] sm:$0xff]
        %v2885 = vld [vmem:[#allocation2 + $0x32] sm:$0xff]
        %v2886 = vld [vmem:[#allocation2 + $0x3a] sm:$0xff]
        %v2887 = vld [vmem:[#allocation2 + $0x42] sm:$0xff]
        %v2888 = vld [vmem:[#allocation2 + $0x4a] sm:$0xff]
        %v2889 = vld [vmem:[#allocation2 + $0x52] sm:$0xff]
        %v2890 = vld [vmem:[#allocation2 + $0x5a] sm:$0xff]
        %v2891 = vld [vmem:[#allocation2 + $0x62] sm:$0xff]
        %v2892 = vld [vmem:[#allocation2 + $0x6a] sm:$0xff]
        %v2893 = vld [vmem:[#allocation2 + $0x72] sm:$0xff]
        %v2894 = vld [vmem:[#allocation2 + $0x7a] sm:$0xff]
        %v2895 = vld [vmem:[#allocation2 + $0x82] sm:$0xff]
        %v2896 = vld [vmem:[#allocation2 + $0x8a] sm:$0xff]
        %v2897 = vld [vmem:[#allocation2 + $0x92] sm:$0xff]
        %v2898 = vld [vmem:[#allocation2 + $0x9a] sm:$0xff]
        %v2899 = vld [vmem:[#allocation2 + $0xa2] sm:$0xff]
        %v2900 = vld [vmem:[#allocation2 + $0xaa] sm:$0xff]
        %v2901 = vld [vmem:[#allocation2 + $0xb2] sm:$0xff]
        %v2902 = vld [vmem:[#allocation2 + $0xba] sm:$0xff]
        %v2903 = vld [vmem:[#allocation2 + $0xc2] sm:$0xff]
        %v2904 = vld [vmem:[#allocation2 + $0xca] sm:$0xff]
        %v2905 = vld [vmem:[#allocation2 + $0xd2] sm:$0xff]
        %v2906 = vld [vmem:[#allocation2 + $0xda] sm:$0xff]
        %v2907 = vld [vmem:[#allocation2 + $0xe2] sm:$0xff]
        %v2908 = vld [vmem:[#allocation2 + $0xea] sm:$0xff]
        %v2909 = vpack.c.bf16 %v2882, %v2881
        %v2910 = vpack.c.bf16 %v2884, %v2883
        %v2911 = vpack.c.bf16 %v2886, %v2885
        %v2912 = vpack.c.bf16 %v2888, %v2887
        %v2913 = vpack.c.bf16 %v2890, %v2889
        %v2914 = vpack.c.bf16 %v2892, %v2891
        %v2915 = vpack.c.bf16 %v2894, %v2893
        %v2916 = vpack.c.bf16 %v2896, %v2895
        %v2917 = vpack.c.bf16 %v2898, %v2897
        %v2918 = vpack.c.bf16 %v2900, %v2899
        %v2919 = vpack.c.bf16 %v2902, %v2901
        %v2920 = vpack.c.bf16 %v2904, %v2903
        %v2921 = vpack.c.bf16 %v2906, %v2905
        %v2922 = vpack.c.bf16 %v2908, %v2907
        %s2923 = scalar_lea.vmem %s3, 80
        %v2924 = vld [vmem:[%s2923] sm:$0xf]
        %v2925 = vld [vmem:[%s2923 + $0x4] sm:$0xf]
        %v2926 = vld [vmem:[%s2923 + $0x8] sm:$0xf]
        %v2927 = vld [vmem:[%s2923 + $0xc] sm:$0xf]
        %v2932 = vunpack.c.l.b16 %v2924
        %v2933 = vunpack.c.l.b16 %v2925
        %v2934 = vunpack.c.l.b16 %v2926
        %v2935 = vunpack.c.l.b16 %v2927
        %v2936 = vpack.c.b16 %v2933, %v2932
        %v2937 = vpack.c.b16 %v2935, %v2934
        %v2941 = vsel %vm1534, %v2909, 0
        %v2944 = vsel %vm1534, %v2910, 0
        %v2947 = vsel %vm1534, %v2911, 0
        %v2950 = vsel %vm1534, %v2912, 0
        %v2953 = vsel %vm1534, %v2913, 0
        %v2956 = vsel %vm1534, %v2914, 0
        %v2959 = vsel %vm1534, %v2915, 0
        %v2962 = vsel %vm1534, %v2916, 0
        %v2965 = vsel %vm1534, %v2917, 0
        %v2968 = vsel %vm1534, %v2918, 0
        %v2971 = vsel %vm1534, %v2919, 0
        %v2974 = vsel %vm1534, %v2920, 0
        %v2977 = vsel %vm1534, %v2921, 0
        %v2980 = vsel %vm1534, %v2922, 0
        %2982 = vmatprep.subr.bf16.mxu0 0
        %2983 = vmatpush1.bf16.msra.mxu0 %v2936
        %2984 = vmatprep.subr.bf16.mxu0 0
        %2985 = vmatpush1.bf16.msra.mxu0 %v2937
        %2986 = vmatprep.subr.bf16.mxu0 0
        %2987 = vmatpush1.bf16.msra.mxu0 0
        %2988 = vmatprep.subr.bf16.mxu0 0
        %2989 = vmatpush1.bf16.msra.mxu0 0
        %2990 = vmatprep.subr.bf16.mxu0 0
        %2991 = vmatpush1.bf16.msra.mxu0 0
        %2992 = vmatprep.subr.bf16.mxu0 0
        %2993 = vmatpush1.bf16.msra.mxu0 0
        %2994 = vmatprep.subr.bf16.mxu0 0
        %2995 = vmatpush1.bf16.msra.mxu0 0
        %2996 = vmatprep.subr.bf16.mxu0 0
        %2997 = vmatpush1.bf16.msra.mxu0 0
        %2998 = vmatprep.subr.bf16.mxu0 0
        %2999 = vmatpush1.bf16.msra.mxu0 0
        %3000 = vmatprep.subr.bf16.mxu0 0
        %3001 = vmatpush1.bf16.msra.mxu0 0
        %3002 = vmatprep.subr.bf16.mxu0 0
        %3003 = vmatpush1.bf16.msra.mxu0 0
        %3004 = vmatprep.subr.bf16.mxu0 0
        %3005 = vmatpush1.bf16.msra.mxu0 0
        %3006 = vmatprep.subr.bf16.mxu0 0
        %3007 = vmatpush1.bf16.msra.mxu0 0
        %3008 = vmatprep.subr.bf16.mxu0 0
        %3009 = vmatpush1.bf16.msra.mxu0 0
        %3010 = vmatprep.subr.bf16.mxu0 0
        %3011 = vmatpush1.bf16.msra.mxu0 0
        %3012 = vmatprep.subr.bf16.mxu0 0
        %3013 = vmatpush1.bf16.msra.mxu0 0
        %3014 = vmatprep.mubr.bf16.mxu0 0
        %3015 = vmatmul.mubr.bf16.gmra.mrb[0].mxu0 %v2941
        %v3016 = vpop.f32.mrb[0].mxu0
        %v3017 = vadd.f32 0.0, %v3016
        %v3018 = vpop.f32.mrb[0].mxu0
        %v3019 = vpop.f32.mrb[0].mxu0
        %v3020 = vadd.f32 0.0, %v3019
        %v3021 = vpop.f32.mrb[0].mxu0
        %3022 = vmatprep.mubr.bf16.mxu0 0
        %3023 = vmatmul.mubr.bf16.gmra.mrb[0].mxu0 %v2944
        %v3024 = vpop.f32.mrb[0].mxu0
        %v3025 = vadd.f32 0.0, %v3024
        %v3026 = vpop.f32.mrb[0].mxu0
        %v3027 = vpop.f32.mrb[0].mxu0
        %v3028 = vadd.f32 0.0, %v3027
        %v3029 = vpop.f32.mrb[0].mxu0
        %3030 = vmatprep.mubr.bf16.mxu0 0
        %3031 = vmatmul.mubr.bf16.gmra.mrb[0].mxu0 %v2947
        %v3032 = vpop.f32.mrb[0].mxu0
        %v3033 = vadd.f32 0.0, %v3032
        %v3034 = vpop.f32.mrb[0].mxu0
        %v3035 = vpop.f32.mrb[0].mxu0
        %v3036 = vadd.f32 0.0, %v3035
        %v3037 = vpop.f32.mrb[0].mxu0
        %3038 = vmatprep.mubr.bf16.mxu0 0
        %3039 = vmatmul.mubr.bf16.gmra.mrb[0].mxu0 %v2950
        %v3040 = vpop.f32.mrb[0].mxu0
        %v3041 = vadd.f32 0.0, %v3040
        %v3042 = vpop.f32.mrb[0].mxu0
        %v3043 = vpop.f32.mrb[0].mxu0
        %v3044 = vadd.f32 0.0, %v3043
        %v3045 = vpop.f32.mrb[0].mxu0
        %3046 = vmatprep.mubr.bf16.mxu0 0
        %3047 = vmatmul.mubr.bf16.gmra.mrb[0].mxu0 %v2953
        %v3048 = vpop.f32.mrb[0].mxu0
        %v3049 = vadd.f32 0.0, %v3048
        %v3050 = vpop.f32.mrb[0].mxu0
        %v3051 = vpop.f32.mrb[0].mxu0
        %v3052 = vadd.f32 0.0, %v3051
        %v3053 = vpop.f32.mrb[0].mxu0
        %3054 = vmatprep.mubr.bf16.mxu0 0
        %3055 = vmatmul.mubr.bf16.gmra.mrb[0].mxu0 %v2956
        %v3056 = vpop.f32.mrb[0].mxu0
        %v3057 = vadd.f32 0.0, %v3056
        %v3058 = vpop.f32.mrb[0].mxu0
        %v3059 = vpop.f32.mrb[0].mxu0
        %v3060 = vadd.f32 0.0, %v3059
        %v3061 = vpop.f32.mrb[0].mxu0
        %3062 = vmatprep.mubr.bf16.mxu0 0
        %3063 = vmatmul.mubr.bf16.gmra.mrb[0].mxu0 %v2959
        %v3064 = vpop.f32.mrb[0].mxu0
        %v3065 = vadd.f32 0.0, %v3064
        %v3066 = vpop.f32.mrb[0].mxu0
        %v3067 = vpop.f32.mrb[0].mxu0
        %v3068 = vadd.f32 0.0, %v3067
        %v3069 = vpop.f32.mrb[0].mxu0
        %3070 = vmatprep.mubr.bf16.mxu0 0
        %3071 = vmatmul.mubr.bf16.gmra.mrb[0].mxu0 %v2962
        %v3072 = vpop.f32.mrb[0].mxu0
        %v3073 = vadd.f32 0.0, %v3072
        %v3074 = vpop.f32.mrb[0].mxu0
        %v3075 = vpop.f32.mrb[0].mxu0
        %v3076 = vadd.f32 0.0, %v3075
        %v3077 = vpop.f32.mrb[0].mxu0
        %3078 = vmatprep.mubr.bf16.mxu0 0
        %3079 = vmatmul.mubr.bf16.gmra.mrb[0].mxu0 %v2965
        %v3080 = vpop.f32.mrb[0].mxu0
        %v3081 = vadd.f32 0.0, %v3080
        %v3082 = vpop.f32.mrb[0].mxu0
        %v3083 = vpop.f32.mrb[0].mxu0
        %v3084 = vadd.f32 0.0, %v3083
        %v3085 = vpop.f32.mrb[0].mxu0
        %3086 = vmatprep.mubr.bf16.mxu0 0
        %3087 = vmatmul.mubr.bf16.gmra.mrb[0].mxu0 %v2968
        %v3088 = vpop.f32.mrb[0].mxu0
        %v3089 = vadd.f32 0.0, %v3088
        %v3090 = vpop.f32.mrb[0].mxu0
        %v3091 = vpop.f32.mrb[0].mxu0
        %v3092 = vadd.f32 0.0, %v3091
        %v3093 = vpop.f32.mrb[0].mxu0
        %3094 = vmatprep.mubr.bf16.mxu0 0
        %3095 = vmatmul.mubr.bf16.gmra.mrb[0].mxu0 %v2971
        %v3096 = vpop.f32.mrb[0].mxu0
        %v3097 = vadd.f32 0.0, %v3096
        %v3098 = vpop.f32.mrb[0].mxu0
        %v3099 = vpop.f32.mrb[0].mxu0
        %v3100 = vadd.f32 0.0, %v3099
        %v3101 = vpop.f32.mrb[0].mxu0
        %3102 = vmatprep.mubr.bf16.mxu0 0
        %3103 = vmatmul.mubr.bf16.gmra.mrb[0].mxu0 %v2974
        %v3104 = vpop.f32.mrb[0].mxu0
        %v3105 = vadd.f32 0.0, %v3104
        %v3106 = vpop.f32.mrb[0].mxu0
        %v3107 = vpop.f32.mrb[0].mxu0
        %v3108 = vadd.f32 0.0, %v3107
        %v3109 = vpop.f32.mrb[0].mxu0
        %3110 = vmatprep.mubr.bf16.mxu0 0
        %3111 = vmatmul.mubr.bf16.gmra.mrb[0].mxu0 %v2977
        %v3112 = vpop.f32.mrb[0].mxu0
        %v3113 = vadd.f32 0.0, %v3112
        %v3114 = vpop.f32.mrb[0].mxu0
        %v3115 = vpop.f32.mrb[0].mxu0
        %v3116 = vadd.f32 0.0, %v3115
        %v3117 = vpop.f32.mrb[0].mxu0
        %3118 = vmatprep.mubr.bf16.mxu0 0
        %3119 = vmatmul.mubr.bf16.gmra.mrb[0].mxu0 %v2980
        %v3120 = vpop.f32.mrb[0].mxu0
        %v3121 = vadd.f32 0.0, %v3120
        %v3122 = vpop.f32.mrb[0].mxu0
        %v3123 = vpop.f32.mrb[0].mxu0
        %v3124 = vadd.f32 0.0, %v3123
        %v3125 = vpop.f32.mrb[0].mxu0
        %3126 = vdwg.mxu0
        %v3127 = vadd.f32 %v2853, %v3017
        %v3128 = vadd.f32 %v2854, %v3020
        %v3129 = vadd.f32 %v2855, %v3025
        %v3130 = vadd.f32 %v2856, %v3028
        %v3131 = vadd.f32 %v2857, %v3033
        %v3132 = vadd.f32 %v2858, %v3036
        %v3133 = vadd.f32 %v2859, %v3041
        %v3134 = vadd.f32 %v2860, %v3044
        %v3135 = vadd.f32 %v2861, %v3049
        %v3136 = vadd.f32 %v2862, %v3052
        %v3137 = vadd.f32 %v2863, %v3057
        %v3138 = vadd.f32 %v2864, %v3060
        %v3139 = vadd.f32 %v2865, %v3065
        %v3140 = vadd.f32 %v2866, %v3068
        %v3141 = vadd.f32 %v2867, %v3073
        %v3142 = vadd.f32 %v2868, %v3076
        %v3143 = vadd.f32 %v2869, %v3081
        %v3144 = vadd.f32 %v2870, %v3084
        %v3145 = vadd.f32 %v2871, %v3089
        %v3146 = vadd.f32 %v2872, %v3092
        %v3147 = vadd.f32 %v2873, %v3097
        %v3148 = vadd.f32 %v2874, %v3100
        %v3149 = vadd.f32 %v2875, %v3105
        %v3150 = vadd.f32 %v2876, %v3108
        %v3151 = vadd.f32 %v2877, %v3113
        %v3152 = vadd.f32 %v2878, %v3116
        %v3153 = vadd.f32 %v2879, %v3121
        %v3154 = vadd.f32 %v2880, %v3124
        %v3155 = vld [vmem:[#allocation2 + $0x20] sm:$0xff]
        %v3156 = vld [vmem:[#allocation2 + $0x28] sm:$0xff]
        %v3157 = vld [vmem:[#allocation2 + $0x30] sm:$0xff]
        %v3158 = vld [vmem:[#allocation2 + $0x38] sm:$0xff]
        %v3159 = vld [vmem:[#allocation2 + $0x40] sm:$0xff]
        %v3160 = vld [vmem:[#allocation2 + $0x48] sm:$0xff]
        %v3161 = vld [vmem:[#allocation2 + $0x50] sm:$0xff]
        %v3162 = vld [vmem:[#allocation2 + $0x58] sm:$0xff]
        %v3163 = vld [vmem:[#allocation2 + $0x60] sm:$0xff]
        %v3164 = vld [vmem:[#allocation2 + $0x68] sm:$0xff]
        %v3165 = vld [vmem:[#allocation2 + $0x70] sm:$0xff]
        %v3166 = vld [vmem:[#allocation2 + $0x78] sm:$0xff]
        %v3167 = vld [vmem:[#allocation2 + $0x80] sm:$0xff]
        %v3168 = vld [vmem:[#allocation2 + $0x88] sm:$0xff]
        %v3169 = vld [vmem:[#allocation2 + $0x90] sm:$0xff]
        %v3170 = vld [vmem:[#allocation2 + $0x98] sm:$0xff]
        %v3171 = vld [vmem:[#allocation2 + $0xa0] sm:$0xff]
        %v3172 = vld [vmem:[#allocation2 + $0xa8] sm:$0xff]
        %v3173 = vld [vmem:[#allocation2 + $0xb0] sm:$0xff]
        %v3174 = vld [vmem:[#allocation2 + $0xb8] sm:$0xff]
        %v3175 = vld [vmem:[#allocation2 + $0xc0] sm:$0xff]
        %v3176 = vld [vmem:[#allocation2 + $0xc8] sm:$0xff]
        %v3177 = vld [vmem:[#allocation2 + $0xd0] sm:$0xff]
        %v3178 = vld [vmem:[#allocation2 + $0xd8] sm:$0xff]
        %v3179 = vld [vmem:[#allocation2 + $0xe0] sm:$0xff]
        %v3180 = vld [vmem:[#allocation2 + $0xe8] sm:$0xff]
        %v3181 = vld [vmem:[#allocation2 + $0xf0] sm:$0xff]
        %v3182 = vld [vmem:[#allocation2 + $0xf8] sm:$0xff]
        %v3183 = vpack.c.bf16 %v3156, %v3155
        %v3184 = vpack.c.bf16 %v3158, %v3157
        %v3185 = vpack.c.bf16 %v3160, %v3159
        %v3186 = vpack.c.bf16 %v3162, %v3161
        %v3187 = vpack.c.bf16 %v3164, %v3163
        %v3188 = vpack.c.bf16 %v3166, %v3165
        %v3189 = vpack.c.bf16 %v3168, %v3167
        %v3190 = vpack.c.bf16 %v3170, %v3169
        %v3191 = vpack.c.bf16 %v3172, %v3171
        %v3192 = vpack.c.bf16 %v3174, %v3173
        %v3193 = vpack.c.bf16 %v3176, %v3175
        %v3194 = vpack.c.bf16 %v3178, %v3177
        %v3195 = vpack.c.bf16 %v3180, %v3179
        %v3196 = vpack.c.bf16 %v3182, %v3181
        %s3197 = scalar_lea.vmem %s3, 96
        %v3198 = vld [vmem:[%s3197] sm:$0xf]
        %v3199 = vld [vmem:[%s3197 + $0x4] sm:$0xf]
        %v3200 = vld [vmem:[%s3197 + $0x8] sm:$0xf]
        %v3201 = vld [vmem:[%s3197 + $0xc] sm:$0xf]
        %v3206 = vunpack.c.l.b16 %v3198
        %v3207 = vunpack.c.l.b16 %v3199
        %v3208 = vunpack.c.l.b16 %v3200
        %v3209 = vunpack.c.l.b16 %v3201
        %v3210 = vpack.c.b16 %v3207, %v3206
        %v3211 = vpack.c.b16 %v3209, %v3208
        %v3215 = vsel %vm1534, %v3183, 0
        %v3218 = vsel %vm1534, %v3184, 0
        %v3221 = vsel %vm1534, %v3185, 0
        %v3224 = vsel %vm1534, %v3186, 0
        %v3227 = vsel %vm1534, %v3187, 0
        %v3230 = vsel %vm1534, %v3188, 0
        %v3233 = vsel %vm1534, %v3189, 0
        %v3236 = vsel %vm1534, %v3190, 0
        %v3239 = vsel %vm1534, %v3191, 0
        %v3242 = vsel %vm1534, %v3192, 0
        %v3245 = vsel %vm1534, %v3193, 0
        %v3248 = vsel %vm1534, %v3194, 0
        %v3251 = vsel %vm1534, %v3195, 0
        %v3254 = vsel %vm1534, %v3196, 0
        %3256 = vmatprep.subr.bf16.mxu0 0
        %3257 = vmatpush1.bf16.msra.mxu0 %v3210
        %3258 = vmatprep.subr.bf16.mxu0 0
        %3259 = vmatpush1.bf16.msra.mxu0 %v3211
        %3260 = vmatprep.subr.bf16.mxu0 0
        %3261 = vmatpush1.bf16.msra.mxu0 0
        %3262 = vmatprep.subr.bf16.mxu0 0
        %3263 = vmatpush1.bf16.msra.mxu0 0
        %3264 = vmatprep.subr.bf16.mxu0 0
        %3265 = vmatpush1.bf16.msra.mxu0 0
        %3266 = vmatprep.subr.bf16.mxu0 0
        %3267 = vmatpush1.bf16.msra.mxu0 0
        %3268 = vmatprep.subr.bf16.mxu0 0
        %3269 = vmatpush1.bf16.msra.mxu0 0
        %3270 = vmatprep.subr.bf16.mxu0 0
        %3271 = vmatpush1.bf16.msra.mxu0 0
        %3272 = vmatprep.subr.bf16.mxu0 0
        %3273 = vmatpush1.bf16.msra.mxu0 0
        %3274 = vmatprep.subr.bf16.mxu0 0
        %3275 = vmatpush1.bf16.msra.mxu0 0
        %3276 = vmatprep.subr.bf16.mxu0 0
        %3277 = vmatpush1.bf16.msra.mxu0 0
        %3278 = vmatprep.subr.bf16.mxu0 0
        %3279 = vmatpush1.bf16.msra.mxu0 0
        %3280 = vmatprep.subr.bf16.mxu0 0
        %3281 = vmatpush1.bf16.msra.mxu0 0
        %3282 = vmatprep.subr.bf16.mxu0 0
        %3283 = vmatpush1.bf16.msra.mxu0 0
        %3284 = vmatprep.subr.bf16.mxu0 0
        %3285 = vmatpush1.bf16.msra.mxu0 0
        %3286 = vmatprep.subr.bf16.mxu0 0
        %3287 = vmatpush1.bf16.msra.mxu0 0
        %3288 = vmatprep.mubr.bf16.mxu0 0
        %3289 = vmatmul.mubr.bf16.gmra.mrb[0].mxu0 %v3215
        %v3290 = vpop.f32.mrb[0].mxu0
        %v3291 = vadd.f32 0.0, %v3290
        %v3292 = vpop.f32.mrb[0].mxu0
        %v3293 = vpop.f32.mrb[0].mxu0
        %v3294 = vadd.f32 0.0, %v3293
        %v3295 = vpop.f32.mrb[0].mxu0
        %3296 = vmatprep.mubr.bf16.mxu0 0
        %3297 = vmatmul.mubr.bf16.gmra.mrb[0].mxu0 %v3218
        %v3298 = vpop.f32.mrb[0].mxu0
        %v3299 = vadd.f32 0.0, %v3298
        %v3300 = vpop.f32.mrb[0].mxu0
        %v3301 = vpop.f32.mrb[0].mxu0
        %v3302 = vadd.f32 0.0, %v3301
        %v3303 = vpop.f32.mrb[0].mxu0
        %3304 = vmatprep.mubr.bf16.mxu0 0
        %3305 = vmatmul.mubr.bf16.gmra.mrb[0].mxu0 %v3221
        %v3306 = vpop.f32.mrb[0].mxu0
        %v3307 = vadd.f32 0.0, %v3306
        %v3308 = vpop.f32.mrb[0].mxu0
        %v3309 = vpop.f32.mrb[0].mxu0
        %v3310 = vadd.f32 0.0, %v3309
        %v3311 = vpop.f32.mrb[0].mxu0
        %3312 = vmatprep.mubr.bf16.mxu0 0
        %3313 = vmatmul.mubr.bf16.gmra.mrb[0].mxu0 %v3224
        %v3314 = vpop.f32.mrb[0].mxu0
        %v3315 = vadd.f32 0.0, %v3314
        %v3316 = vpop.f32.mrb[0].mxu0
        %v3317 = vpop.f32.mrb[0].mxu0
        %v3318 = vadd.f32 0.0, %v3317
        %v3319 = vpop.f32.mrb[0].mxu0
        %3320 = vmatprep.mubr.bf16.mxu0 0
        %3321 = vmatmul.mubr.bf16.gmra.mrb[0].mxu0 %v3227
        %v3322 = vpop.f32.mrb[0].mxu0
        %v3323 = vadd.f32 0.0, %v3322
        %v3324 = vpop.f32.mrb[0].mxu0
        %v3325 = vpop.f32.mrb[0].mxu0
        %v3326 = vadd.f32 0.0, %v3325
        %v3327 = vpop.f32.mrb[0].mxu0
        %3328 = vmatprep.mubr.bf16.mxu0 0
        %3329 = vmatmul.mubr.bf16.gmra.mrb[0].mxu0 %v3230
        %v3330 = vpop.f32.mrb[0].mxu0
        %v3331 = vadd.f32 0.0, %v3330
        %v3332 = vpop.f32.mrb[0].mxu0
        %v3333 = vpop.f32.mrb[0].mxu0
        %v3334 = vadd.f32 0.0, %v3333
        %v3335 = vpop.f32.mrb[0].mxu0
        %3336 = vmatprep.mubr.bf16.mxu0 0
        %3337 = vmatmul.mubr.bf16.gmra.mrb[0].mxu0 %v3233
        %v3338 = vpop.f32.mrb[0].mxu0
        %v3339 = vadd.f32 0.0, %v3338
        %v3340 = vpop.f32.mrb[0].mxu0
        %v3341 = vpop.f32.mrb[0].mxu0
        %v3342 = vadd.f32 0.0, %v3341
        %v3343 = vpop.f32.mrb[0].mxu0
        %3344 = vmatprep.mubr.bf16.mxu0 0
        %3345 = vmatmul.mubr.bf16.gmra.mrb[0].mxu0 %v3236
        %v3346 = vpop.f32.mrb[0].mxu0
        %v3347 = vadd.f32 0.0, %v3346
        %v3348 = vpop.f32.mrb[0].mxu0
        %v3349 = vpop.f32.mrb[0].mxu0
        %v3350 = vadd.f32 0.0, %v3349
        %v3351 = vpop.f32.mrb[0].mxu0
        %3352 = vmatprep.mubr.bf16.mxu0 0
        %3353 = vmatmul.mubr.bf16.gmra.mrb[0].mxu0 %v3239
        %v3354 = vpop.f32.mrb[0].mxu0
        %v3355 = vadd.f32 0.0, %v3354
        %v3356 = vpop.f32.mrb[0].mxu0
        %v3357 = vpop.f32.mrb[0].mxu0
        %v3358 = vadd.f32 0.0, %v3357
        %v3359 = vpop.f32.mrb[0].mxu0
        %3360 = vmatprep.mubr.bf16.mxu0 0
        %3361 = vmatmul.mubr.bf16.gmra.mrb[0].mxu0 %v3242
        %v3362 = vpop.f32.mrb[0].mxu0
        %v3363 = vadd.f32 0.0, %v3362
        %v3364 = vpop.f32.mrb[0].mxu0
        %v3365 = vpop.f32.mrb[0].mxu0
        %v3366 = vadd.f32 0.0, %v3365
        %v3367 = vpop.f32.mrb[0].mxu0
        %3368 = vmatprep.mubr.bf16.mxu0 0
        %3369 = vmatmul.mubr.bf16.gmra.mrb[0].mxu0 %v3245
        %v3370 = vpop.f32.mrb[0].mxu0
        %v3371 = vadd.f32 0.0, %v3370
        %v3372 = vpop.f32.mrb[0].mxu0
        %v3373 = vpop.f32.mrb[0].mxu0
        %v3374 = vadd.f32 0.0, %v3373
        %v3375 = vpop.f32.mrb[0].mxu0
        %3376 = vmatprep.mubr.bf16.mxu0 0
        %3377 = vmatmul.mubr.bf16.gmra.mrb[0].mxu0 %v3248
        %v3378 = vpop.f32.mrb[0].mxu0
        %v3379 = vadd.f32 0.0, %v3378
        %v3380 = vpop.f32.mrb[0].mxu0
        %v3381 = vpop.f32.mrb[0].mxu0
        %v3382 = vadd.f32 0.0, %v3381
        %v3383 = vpop.f32.mrb[0].mxu0
        %3384 = vmatprep.mubr.bf16.mxu0 0
        %3385 = vmatmul.mubr.bf16.gmra.mrb[0].mxu0 %v3251
        %v3386 = vpop.f32.mrb[0].mxu0
        %v3387 = vadd.f32 0.0, %v3386
        %v3388 = vpop.f32.mrb[0].mxu0
        %v3389 = vpop.f32.mrb[0].mxu0
        %v3390 = vadd.f32 0.0, %v3389
        %v3391 = vpop.f32.mrb[0].mxu0
        %3392 = vmatprep.mubr.bf16.mxu0 0
        %3393 = vmatmul.mubr.bf16.gmra.mrb[0].mxu0 %v3254
        %v3394 = vpop.f32.mrb[0].mxu0
        %v3395 = vadd.f32 0.0, %v3394
        %v3396 = vpop.f32.mrb[0].mxu0
        %v3397 = vpop.f32.mrb[0].mxu0
        %v3398 = vadd.f32 0.0, %v3397
        %v3399 = vpop.f32.mrb[0].mxu0
        %3400 = vdwg.mxu0
        %v3401 = vadd.f32 %v3127, %v3291
        %v3402 = vadd.f32 %v3128, %v3294
        %v3403 = vadd.f32 %v3129, %v3299
        %v3404 = vadd.f32 %v3130, %v3302
        %v3405 = vadd.f32 %v3131, %v3307
        %v3406 = vadd.f32 %v3132, %v3310
        %v3407 = vadd.f32 %v3133, %v3315
        %v3408 = vadd.f32 %v3134, %v3318
        %v3409 = vadd.f32 %v3135, %v3323
        %v3410 = vadd.f32 %v3136, %v3326
        %v3411 = vadd.f32 %v3137, %v3331
        %v3412 = vadd.f32 %v3138, %v3334
        %v3413 = vadd.f32 %v3139, %v3339
        %v3414 = vadd.f32 %v3140, %v3342
        %v3415 = vadd.f32 %v3141, %v3347
        %v3416 = vadd.f32 %v3142, %v3350
        %v3417 = vadd.f32 %v3143, %v3355
        %v3418 = vadd.f32 %v3144, %v3358
        %v3419 = vadd.f32 %v3145, %v3363
        %v3420 = vadd.f32 %v3146, %v3366
        %v3421 = vadd.f32 %v3147, %v3371
        %v3422 = vadd.f32 %v3148, %v3374
        %v3423 = vadd.f32 %v3149, %v3379
        %v3424 = vadd.f32 %v3150, %v3382
        %v3425 = vadd.f32 %v3151, %v3387
        %v3426 = vadd.f32 %v3152, %v3390
        %v3427 = vadd.f32 %v3153, %v3395
        %v3428 = vadd.f32 %v3154, %v3398
        %v3429 = vld [vmem:[#allocation2 + $0x21] sm:$0xff]
        %v3430 = vld [vmem:[#allocation2 + $0x29] sm:$0xff]
        %v3431 = vld [vmem:[#allocation2 + $0x31] sm:$0xff]
        %v3432 = vld [vmem:[#allocation2 + $0x39] sm:$0xff]
        %v3433 = vld [vmem:[#allocation2 + $0x41] sm:$0xff]
        %v3434 = vld [vmem:[#allocation2 + $0x49] sm:$0xff]
        %v3435 = vld [vmem:[#allocation2 + $0x51] sm:$0xff]
        %v3436 = vld [vmem:[#allocation2 + $0x59] sm:$0xff]
        %v3437 = vld [vmem:[#allocation2 + $0x61] sm:$0xff]
        %v3438 = vld [vmem:[#allocation2 + $0x69] sm:$0xff]
        %v3439 = vld [vmem:[#allocation2 + $0x71] sm:$0xff]
        %v3440 = vld [vmem:[#allocation2 + $0x79] sm:$0xff]
        %v3441 = vld [vmem:[#allocation2 + $0x81] sm:$0xff]
        %v3442 = vld [vmem:[#allocation2 + $0x89] sm:$0xff]
        %v3443 = vld [vmem:[#allocation2 + $0x91] sm:$0xff]
        %v3444 = vld [vmem:[#allocation2 + $0x99] sm:$0xff]
        %v3445 = vld [vmem:[#allocation2 + $0xa1] sm:$0xff]
        %v3446 = vld [vmem:[#allocation2 + $0xa9] sm:$0xff]
        %v3447 = vld [vmem:[#allocation2 + $0xb1] sm:$0xff]
        %v3448 = vld [vmem:[#allocation2 + $0xb9] sm:$0xff]
        %v3449 = vld [vmem:[#allocation2 + $0xc1] sm:$0xff]
        %v3450 = vld [vmem:[#allocation2 + $0xc9] sm:$0xff]
        %v3451 = vld [vmem:[#allocation2 + $0xd1] sm:$0xff]
        %v3452 = vld [vmem:[#allocation2 + $0xd9] sm:$0xff]
        %v3453 = vld [vmem:[#allocation2 + $0xe1] sm:$0xff]
        %v3454 = vld [vmem:[#allocation2 + $0xe9] sm:$0xff]
        %v3455 = vld [vmem:[#allocation2 + $0xf1] sm:$0xff]
        %v3456 = vld [vmem:[#allocation2 + $0xf9] sm:$0xff]
        %v3457 = vpack.c.bf16 %v3430, %v3429
        %v3458 = vpack.c.bf16 %v3432, %v3431
        %v3459 = vpack.c.bf16 %v3434, %v3433
        %v3460 = vpack.c.bf16 %v3436, %v3435
        %v3461 = vpack.c.bf16 %v3438, %v3437
        %v3462 = vpack.c.bf16 %v3440, %v3439
        %v3463 = vpack.c.bf16 %v3442, %v3441
        %v3464 = vpack.c.bf16 %v3444, %v3443
        %v3465 = vpack.c.bf16 %v3446, %v3445
        %v3466 = vpack.c.bf16 %v3448, %v3447
        %v3467 = vpack.c.bf16 %v3450, %v3449
        %v3468 = vpack.c.bf16 %v3452, %v3451
        %v3469 = vpack.c.bf16 %v3454, %v3453
        %v3470 = vpack.c.bf16 %v3456, %v3455
        %s3471 = scalar_lea.vmem %s3, 112
        %v3472 = vld [vmem:[%s3471] sm:$0xf]
        %v3473 = vld [vmem:[%s3471 + $0x4] sm:$0xf]
        %v3474 = vld [vmem:[%s3471 + $0x8] sm:$0xf]
        %v3475 = vld [vmem:[%s3471 + $0xc] sm:$0xf]
        %v3480 = vunpack.c.l.b16 %v3472
        %v3481 = vunpack.c.l.b16 %v3473
        %v3482 = vunpack.c.l.b16 %v3474
        %v3483 = vunpack.c.l.b16 %v3475
        %v3484 = vpack.c.b16 %v3481, %v3480
        %v3485 = vpack.c.b16 %v3483, %v3482
        %v3489 = vsel %vm1534, %v3457, 0
        %v3492 = vsel %vm1534, %v3458, 0
        %v3495 = vsel %vm1534, %v3459, 0
        %v3498 = vsel %vm1534, %v3460, 0
        %v3501 = vsel %vm1534, %v3461, 0
        %v3504 = vsel %vm1534, %v3462, 0
        %v3507 = vsel %vm1534, %v3463, 0
        %v3510 = vsel %vm1534, %v3464, 0
        %v3513 = vsel %vm1534, %v3465, 0
        %v3516 = vsel %vm1534, %v3466, 0
        %v3519 = vsel %vm1534, %v3467, 0
        %v3522 = vsel %vm1534, %v3468, 0
        %v3525 = vsel %vm1534, %v3469, 0
        %v3528 = vsel %vm1534, %v3470, 0
        %3530 = vmatprep.subr.bf16.mxu0 0
        %3531 = vmatpush1.bf16.msra.mxu0 %v3484
        %3532 = vmatprep.subr.bf16.mxu0 0
        %3533 = vmatpush1.bf16.msra.mxu0 %v3485
        %3534 = vmatprep.subr.bf16.mxu0 0
        %3535 = vmatpush1.bf16.msra.mxu0 0
        %3536 = vmatprep.subr.bf16.mxu0 0
        %3537 = vmatpush1.bf16.msra.mxu0 0
        %3538 = vmatprep.subr.bf16.mxu0 0
        %3539 = vmatpush1.bf16.msra.mxu0 0
        %3540 = vmatprep.subr.bf16.mxu0 0
        %3541 = vmatpush1.bf16.msra.mxu0 0
        %3542 = vmatprep.subr.bf16.mxu0 0
        %3543 = vmatpush1.bf16.msra.mxu0 0
        %3544 = vmatprep.subr.bf16.mxu0 0
        %3545 = vmatpush1.bf16.msra.mxu0 0
        %3546 = vmatprep.subr.bf16.mxu0 0
        %3547 = vmatpush1.bf16.msra.mxu0 0
        %3548 = vmatprep.subr.bf16.mxu0 0
        %3549 = vmatpush1.bf16.msra.mxu0 0
        %3550 = vmatprep.subr.bf16.mxu0 0
        %3551 = vmatpush1.bf16.msra.mxu0 0
        %3552 = vmatprep.subr.bf16.mxu0 0
        %3553 = vmatpush1.bf16.msra.mxu0 0
        %3554 = vmatprep.subr.bf16.mxu0 0
        %3555 = vmatpush1.bf16.msra.mxu0 0
        %3556 = vmatprep.subr.bf16.mxu0 0
        %3557 = vmatpush1.bf16.msra.mxu0 0
        %3558 = vmatprep.subr.bf16.mxu0 0
        %3559 = vmatpush1.bf16.msra.mxu0 0
        %3560 = vmatprep.subr.bf16.mxu0 0
        %3561 = vmatpush1.bf16.msra.mxu0 0
        %3562 = vmatprep.mubr.bf16.mxu0 0
        %3563 = vmatmul.mubr.bf16.gmra.mrb[0].mxu0 %v3489
        %v3564 = vpop.f32.mrb[0].mxu0
        %v3565 = vadd.f32 0.0, %v3564
        %v3566 = vpop.f32.mrb[0].mxu0
        %v3567 = vpop.f32.mrb[0].mxu0
        %v3568 = vadd.f32 0.0, %v3567
        %v3569 = vpop.f32.mrb[0].mxu0
        %3570 = vmatprep.mubr.bf16.mxu0 0
        %3571 = vmatmul.mubr.bf16.gmra.mrb[0].mxu0 %v3492
        %v3572 = vpop.f32.mrb[0].mxu0
        %v3573 = vadd.f32 0.0, %v3572
        %v3574 = vpop.f32.mrb[0].mxu0
        %v3575 = vpop.f32.mrb[0].mxu0
        %v3576 = vadd.f32 0.0, %v3575
        %v3577 = vpop.f32.mrb[0].mxu0
        %3578 = vmatprep.mubr.bf16.mxu0 0
        %3579 = vmatmul.mubr.bf16.gmra.mrb[0].mxu0 %v3495
        %v3580 = vpop.f32.mrb[0].mxu0
        %v3581 = vadd.f32 0.0, %v3580
        %v3582 = vpop.f32.mrb[0].mxu0
        %v3583 = vpop.f32.mrb[0].mxu0
        %v3584 = vadd.f32 0.0, %v3583
        %v3585 = vpop.f32.mrb[0].mxu0
        %3586 = vmatprep.mubr.bf16.mxu0 0
        %3587 = vmatmul.mubr.bf16.gmra.mrb[0].mxu0 %v3498
        %v3588 = vpop.f32.mrb[0].mxu0
        %v3589 = vadd.f32 0.0, %v3588
        %v3590 = vpop.f32.mrb[0].mxu0
        %v3591 = vpop.f32.mrb[0].mxu0
        %v3592 = vadd.f32 0.0, %v3591
        %v3593 = vpop.f32.mrb[0].mxu0
        %3594 = vmatprep.mubr.bf16.mxu0 0
        %3595 = vmatmul.mubr.bf16.gmra.mrb[0].mxu0 %v3501
        %v3596 = vpop.f32.mrb[0].mxu0
        %v3597 = vadd.f32 0.0, %v3596
        %v3598 = vpop.f32.mrb[0].mxu0
        %v3599 = vpop.f32.mrb[0].mxu0
        %v3600 = vadd.f32 0.0, %v3599
        %v3601 = vpop.f32.mrb[0].mxu0
        %3602 = vmatprep.mubr.bf16.mxu0 0
        %3603 = vmatmul.mubr.bf16.gmra.mrb[0].mxu0 %v3504
        %v3604 = vpop.f32.mrb[0].mxu0
        %v3605 = vadd.f32 0.0, %v3604
        %v3606 = vpop.f32.mrb[0].mxu0
        %v3607 = vpop.f32.mrb[0].mxu0
        %v3608 = vadd.f32 0.0, %v3607
        %v3609 = vpop.f32.mrb[0].mxu0
        %3610 = vmatprep.mubr.bf16.mxu0 0
        %3611 = vmatmul.mubr.bf16.gmra.mrb[0].mxu0 %v3507
        %v3612 = vpop.f32.mrb[0].mxu0
        %v3613 = vadd.f32 0.0, %v3612
        %v3614 = vpop.f32.mrb[0].mxu0
        %v3615 = vpop.f32.mrb[0].mxu0
        %v3616 = vadd.f32 0.0, %v3615
        %v3617 = vpop.f32.mrb[0].mxu0
        %3618 = vmatprep.mubr.bf16.mxu0 0
        %3619 = vmatmul.mubr.bf16.gmra.mrb[0].mxu0 %v3510
        %v3620 = vpop.f32.mrb[0].mxu0
        %v3621 = vadd.f32 0.0, %v3620
        %v3622 = vpop.f32.mrb[0].mxu0
        %v3623 = vpop.f32.mrb[0].mxu0
        %v3624 = vadd.f32 0.0, %v3623
        %v3625 = vpop.f32.mrb[0].mxu0
        %3626 = vmatprep.mubr.bf16.mxu0 0
        %3627 = vmatmul.mubr.bf16.gmra.mrb[0].mxu0 %v3513
        %v3628 = vpop.f32.mrb[0].mxu0
        %v3629 = vadd.f32 0.0, %v3628
        %v3630 = vpop.f32.mrb[0].mxu0
        %v3631 = vpop.f32.mrb[0].mxu0
        %v3632 = vadd.f32 0.0, %v3631
        %v3633 = vpop.f32.mrb[0].mxu0
        %3634 = vmatprep.mubr.bf16.mxu0 0
        %3635 = vmatmul.mubr.bf16.gmra.mrb[0].mxu0 %v3516
        %v3636 = vpop.f32.mrb[0].mxu0
        %v3637 = vadd.f32 0.0, %v3636
        %v3638 = vpop.f32.mrb[0].mxu0
        %v3639 = vpop.f32.mrb[0].mxu0
        %v3640 = vadd.f32 0.0, %v3639
        %v3641 = vpop.f32.mrb[0].mxu0
        %3642 = vmatprep.mubr.bf16.mxu0 0
        %3643 = vmatmul.mubr.bf16.gmra.mrb[0].mxu0 %v3519
        %v3644 = vpop.f32.mrb[0].mxu0
        %v3645 = vadd.f32 0.0, %v3644
        %v3646 = vpop.f32.mrb[0].mxu0
        %v3647 = vpop.f32.mrb[0].mxu0
        %v3648 = vadd.f32 0.0, %v3647
        %v3649 = vpop.f32.mrb[0].mxu0
        %3650 = vmatprep.mubr.bf16.mxu0 0
        %3651 = vmatmul.mubr.bf16.gmra.mrb[0].mxu0 %v3522
        %v3652 = vpop.f32.mrb[0].mxu0
        %v3653 = vadd.f32 0.0, %v3652
        %v3654 = vpop.f32.mrb[0].mxu0
        %v3655 = vpop.f32.mrb[0].mxu0
        %v3656 = vadd.f32 0.0, %v3655
        %v3657 = vpop.f32.mrb[0].mxu0
        %3658 = vmatprep.mubr.bf16.mxu0 0
        %3659 = vmatmul.mubr.bf16.gmra.mrb[0].mxu0 %v3525
        %v3660 = vpop.f32.mrb[0].mxu0
        %v3661 = vadd.f32 0.0, %v3660
        %v3662 = vpop.f32.mrb[0].mxu0
        %v3663 = vpop.f32.mrb[0].mxu0
        %v3664 = vadd.f32 0.0, %v3663
        %v3665 = vpop.f32.mrb[0].mxu0
        %3666 = vmatprep.mubr.bf16.mxu0 0
        %3667 = vmatmul.mubr.bf16.gmra.mrb[0].mxu0 %v3528
        %v3668 = vpop.f32.mrb[0].mxu0
        %v3669 = vadd.f32 0.0, %v3668
        %v3670 = vpop.f32.mrb[0].mxu0
        %v3671 = vpop.f32.mrb[0].mxu0
        %v3672 = vadd.f32 0.0, %v3671
        %v3673 = vpop.f32.mrb[0].mxu0
        %3674 = vdwg.mxu0
        %v3675 = vadd.f32 %v3401, %v3565
        %v3676 = vadd.f32 %v3402, %v3568
        %v3677 = vadd.f32 %v3403, %v3573
        %v3678 = vadd.f32 %v3404, %v3576
        %v3679 = vadd.f32 %v3405, %v3581
        %v3680 = vadd.f32 %v3406, %v3584
        %v3681 = vadd.f32 %v3407, %v3589
        %v3682 = vadd.f32 %v3408, %v3592
        %v3683 = vadd.f32 %v3409, %v3597
        %v3684 = vadd.f32 %v3410, %v3600
        %v3685 = vadd.f32 %v3411, %v3605
        %v3686 = vadd.f32 %v3412, %v3608
        %v3687 = vadd.f32 %v3413, %v3613
        %v3688 = vadd.f32 %v3414, %v3616
        %v3689 = vadd.f32 %v3415, %v3621
        %v3690 = vadd.f32 %v3416, %v3624
        %v3691 = vadd.f32 %v3417, %v3629
        %v3692 = vadd.f32 %v3418, %v3632
        %v3693 = vadd.f32 %v3419, %v3637
        %v3694 = vadd.f32 %v3420, %v3640
        %v3695 = vadd.f32 %v3421, %v3645
        %v3696 = vadd.f32 %v3422, %v3648
        %v3697 = vadd.f32 %v3423, %v3653
        %v3698 = vadd.f32 %v3424, %v3656
        %v3699 = vadd.f32 %v3425, %v3661
        %v3700 = vadd.f32 %v3426, %v3664
        %v3701 = vadd.f32 %v3427, %v3669
        %v3702 = vadd.f32 %v3428, %v3672
        %v3703 = vld [vmem:[#allocation2 + $0x22] sm:$0xff]
        %v3704 = vld [vmem:[#allocation2 + $0x2a] sm:$0xff]
        %v3705 = vld [vmem:[#allocation2 + $0x32] sm:$0xff]
        %v3706 = vld [vmem:[#allocation2 + $0x3a] sm:$0xff]
        %v3707 = vld [vmem:[#allocation2 + $0x42] sm:$0xff]
        %v3708 = vld [vmem:[#allocation2 + $0x4a] sm:$0xff]
        %v3709 = vld [vmem:[#allocation2 + $0x52] sm:$0xff]
        %v3710 = vld [vmem:[#allocation2 + $0x5a] sm:$0xff]
        %v3711 = vld [vmem:[#allocation2 + $0x62] sm:$0xff]
        %v3712 = vld [vmem:[#allocation2 + $0x6a] sm:$0xff]
        %v3713 = vld [vmem:[#allocation2 + $0x72] sm:$0xff]
        %v3714 = vld [vmem:[#allocation2 + $0x7a] sm:$0xff]
        %v3715 = vld [vmem:[#allocation2 + $0x82] sm:$0xff]
        %v3716 = vld [vmem:[#allocation2 + $0x8a] sm:$0xff]
        %v3717 = vld [vmem:[#allocation2 + $0x92] sm:$0xff]
        %v3718 = vld [vmem:[#allocation2 + $0x9a] sm:$0xff]
        %v3719 = vld [vmem:[#allocation2 + $0xa2] sm:$0xff]
        %v3720 = vld [vmem:[#allocation2 + $0xaa] sm:$0xff]
        %v3721 = vld [vmem:[#allocation2 + $0xb2] sm:$0xff]
        %v3722 = vld [vmem:[#allocation2 + $0xba] sm:$0xff]
        %v3723 = vld [vmem:[#allocation2 + $0xc2] sm:$0xff]
        %v3724 = vld [vmem:[#allocation2 + $0xca] sm:$0xff]
        %v3725 = vld [vmem:[#allocation2 + $0xd2] sm:$0xff]
        %v3726 = vld [vmem:[#allocation2 + $0xda] sm:$0xff]
        %v3727 = vld [vmem:[#allocation2 + $0xe2] sm:$0xff]
        %v3728 = vld [vmem:[#allocation2 + $0xea] sm:$0xff]
        %v3729 = vld [vmem:[#allocation2 + $0xf2] sm:$0xff]
        %v3730 = vld [vmem:[#allocation2 + $0xfa] sm:$0xff]
        %v3731 = vpack.c.bf16 %v3704, %v3703
        %v3732 = vpack.c.bf16 %v3706, %v3705
        %v3733 = vpack.c.bf16 %v3708, %v3707
        %v3734 = vpack.c.bf16 %v3710, %v3709
        %v3735 = vpack.c.bf16 %v3712, %v3711
        %v3736 = vpack.c.bf16 %v3714, %v3713
        %v3737 = vpack.c.bf16 %v3716, %v3715
        %v3738 = vpack.c.bf16 %v3718, %v3717
        %v3739 = vpack.c.bf16 %v3720, %v3719
        %v3740 = vpack.c.bf16 %v3722, %v3721
        %v3741 = vpack.c.bf16 %v3724, %v3723
        %v3742 = vpack.c.bf16 %v3726, %v3725
        %v3743 = vpack.c.bf16 %v3728, %v3727
        %v3744 = vpack.c.bf16 %v3730, %v3729
        %s3745 = scalar_lea.vmem %s3, 128
        %v3746 = vld [vmem:[%s3745] sm:$0xf]
        %v3747 = vld [vmem:[%s3745 + $0x4] sm:$0xf]
        %v3748 = vld [vmem:[%s3745 + $0x8] sm:$0xf]
        %v3749 = vld [vmem:[%s3745 + $0xc] sm:$0xf]
        %v3754 = vunpack.c.l.b16 %v3746
        %v3755 = vunpack.c.l.b16 %v3747
        %v3756 = vunpack.c.l.b16 %v3748
        %v3757 = vunpack.c.l.b16 %v3749
        %v3758 = vpack.c.b16 %v3755, %v3754
        %v3759 = vpack.c.b16 %v3757, %v3756
        %v3763 = vsel %vm1534, %v3731, 0
        %v3766 = vsel %vm1534, %v3732, 0
        %v3769 = vsel %vm1534, %v3733, 0
        %v3772 = vsel %vm1534, %v3734, 0
        %v3775 = vsel %vm1534, %v3735, 0
        %v3778 = vsel %vm1534, %v3736, 0
        %v3781 = vsel %vm1534, %v3737, 0
        %v3784 = vsel %vm1534, %v3738, 0
        %v3787 = vsel %vm1534, %v3739, 0
        %v3790 = vsel %vm1534, %v3740, 0
        %v3793 = vsel %vm1534, %v3741, 0
        %v3796 = vsel %vm1534, %v3742, 0
        %v3799 = vsel %vm1534, %v3743, 0
        %v3802 = vsel %vm1534, %v3744, 0
        %3804 = vmatprep.subr.bf16.mxu0 0
        %3805 = vmatpush1.bf16.msra.mxu0 %v3758
        %3806 = vmatprep.subr.bf16.mxu0 0
        %3807 = vmatpush1.bf16.msra.mxu0 %v3759
        %3808 = vmatprep.subr.bf16.mxu0 0
        %3809 = vmatpush1.bf16.msra.mxu0 0
        %3810 = vmatprep.subr.bf16.mxu0 0
        %3811 = vmatpush1.bf16.msra.mxu0 0
        %3812 = vmatprep.subr.bf16.mxu0 0
        %3813 = vmatpush1.bf16.msra.mxu0 0
        %3814 = vmatprep.subr.bf16.mxu0 0
        %3815 = vmatpush1.bf16.msra.mxu0 0
        %3816 = vmatprep.subr.bf16.mxu0 0
        %3817 = vmatpush1.bf16.msra.mxu0 0
        %3818 = vmatprep.subr.bf16.mxu0 0
        %3819 = vmatpush1.bf16.msra.mxu0 0
        %3820 = vmatprep.subr.bf16.mxu0 0
        %3821 = vmatpush1.bf16.msra.mxu0 0
        %3822 = vmatprep.subr.bf16.mxu0 0
        %3823 = vmatpush1.bf16.msra.mxu0 0
        %3824 = vmatprep.subr.bf16.mxu0 0
        %3825 = vmatpush1.bf16.msra.mxu0 0
        %3826 = vmatprep.subr.bf16.mxu0 0
        %3827 = vmatpush1.bf16.msra.mxu0 0
        %3828 = vmatprep.subr.bf16.mxu0 0
        %3829 = vmatpush1.bf16.msra.mxu0 0
        %3830 = vmatprep.subr.bf16.mxu0 0
        %3831 = vmatpush1.bf16.msra.mxu0 0
        %3832 = vmatprep.subr.bf16.mxu0 0
        %3833 = vmatpush1.bf16.msra.mxu0 0
        %3834 = vmatprep.subr.bf16.mxu0 0
        %3835 = vmatpush1.bf16.msra.mxu0 0
        %3836 = vmatprep.mubr.bf16.mxu0 0
        %3837 = vmatmul.mubr.bf16.gmra.mrb[0].mxu0 %v3763
        %v3838 = vpop.f32.mrb[0].mxu0
        %v3839 = vadd.f32 0.0, %v3838
        %v3840 = vpop.f32.mrb[0].mxu0
        %v3841 = vpop.f32.mrb[0].mxu0
        %v3842 = vadd.f32 0.0, %v3841
        %v3843 = vpop.f32.mrb[0].mxu0
        %3844 = vmatprep.mubr.bf16.mxu0 0
        %3845 = vmatmul.mubr.bf16.gmra.mrb[0].mxu0 %v3766
        %v3846 = vpop.f32.mrb[0].mxu0
        %v3847 = vadd.f32 0.0, %v3846
        %v3848 = vpop.f32.mrb[0].mxu0
        %v3849 = vpop.f32.mrb[0].mxu0
        %v3850 = vadd.f32 0.0, %v3849
        %v3851 = vpop.f32.mrb[0].mxu0
        %3852 = vmatprep.mubr.bf16.mxu0 0
        %3853 = vmatmul.mubr.bf16.gmra.mrb[0].mxu0 %v3769
        %v3854 = vpop.f32.mrb[0].mxu0
        %v3855 = vadd.f32 0.0, %v3854
        %v3856 = vpop.f32.mrb[0].mxu0
        %v3857 = vpop.f32.mrb[0].mxu0
        %v3858 = vadd.f32 0.0, %v3857
        %v3859 = vpop.f32.mrb[0].mxu0
        %3860 = vmatprep.mubr.bf16.mxu0 0
        %3861 = vmatmul.mubr.bf16.gmra.mrb[0].mxu0 %v3772
        %v3862 = vpop.f32.mrb[0].mxu0
        %v3863 = vadd.f32 0.0, %v3862
        %v3864 = vpop.f32.mrb[0].mxu0
        %v3865 = vpop.f32.mrb[0].mxu0
        %v3866 = vadd.f32 0.0, %v3865
        %v3867 = vpop.f32.mrb[0].mxu0
        %3868 = vmatprep.mubr.bf16.mxu0 0
        %3869 = vmatmul.mubr.bf16.gmra.mrb[0].mxu0 %v3775
        %v3870 = vpop.f32.mrb[0].mxu0
        %v3871 = vadd.f32 0.0, %v3870
        %v3872 = vpop.f32.mrb[0].mxu0
        %v3873 = vpop.f32.mrb[0].mxu0
        %v3874 = vadd.f32 0.0, %v3873
        %v3875 = vpop.f32.mrb[0].mxu0
        %3876 = vmatprep.mubr.bf16.mxu0 0
        %3877 = vmatmul.mubr.bf16.gmra.mrb[0].mxu0 %v3778
        %v3878 = vpop.f32.mrb[0].mxu0
        %v3879 = vadd.f32 0.0, %v3878
        %v3880 = vpop.f32.mrb[0].mxu0
        %v3881 = vpop.f32.mrb[0].mxu0
        %v3882 = vadd.f32 0.0, %v3881
        %v3883 = vpop.f32.mrb[0].mxu0
        %3884 = vmatprep.mubr.bf16.mxu0 0
        %3885 = vmatmul.mubr.bf16.gmra.mrb[0].mxu0 %v3781
        %v3886 = vpop.f32.mrb[0].mxu0
        %v3887 = vadd.f32 0.0, %v3886
        %v3888 = vpop.f32.mrb[0].mxu0
        %v3889 = vpop.f32.mrb[0].mxu0
        %v3890 = vadd.f32 0.0, %v3889
        %v3891 = vpop.f32.mrb[0].mxu0
        %3892 = vmatprep.mubr.bf16.mxu0 0
        %3893 = vmatmul.mubr.bf16.gmra.mrb[0].mxu0 %v3784
        %v3894 = vpop.f32.mrb[0].mxu0
        %v3895 = vadd.f32 0.0, %v3894
        %v3896 = vpop.f32.mrb[0].mxu0
        %v3897 = vpop.f32.mrb[0].mxu0
        %v3898 = vadd.f32 0.0, %v3897
        %v3899 = vpop.f32.mrb[0].mxu0
        %3900 = vmatprep.mubr.bf16.mxu0 0
        %3901 = vmatmul.mubr.bf16.gmra.mrb[0].mxu0 %v3787
        %v3902 = vpop.f32.mrb[0].mxu0
        %v3903 = vadd.f32 0.0, %v3902
        %v3904 = vpop.f32.mrb[0].mxu0
        %v3905 = vpop.f32.mrb[0].mxu0
        %v3906 = vadd.f32 0.0, %v3905
        %v3907 = vpop.f32.mrb[0].mxu0
        %3908 = vmatprep.mubr.bf16.mxu0 0
        %3909 = vmatmul.mubr.bf16.gmra.mrb[0].mxu0 %v3790
        %v3910 = vpop.f32.mrb[0].mxu0
        %v3911 = vadd.f32 0.0, %v3910
        %v3912 = vpop.f32.mrb[0].mxu0
        %v3913 = vpop.f32.mrb[0].mxu0
        %v3914 = vadd.f32 0.0, %v3913
        %v3915 = vpop.f32.mrb[0].mxu0
        %3916 = vmatprep.mubr.bf16.mxu0 0
        %3917 = vmatmul.mubr.bf16.gmra.mrb[0].mxu0 %v3793
        %v3918 = vpop.f32.mrb[0].mxu0
        %v3919 = vadd.f32 0.0, %v3918
        %v3920 = vpop.f32.mrb[0].mxu0
        %v3921 = vpop.f32.mrb[0].mxu0
        %v3922 = vadd.f32 0.0, %v3921
        %v3923 = vpop.f32.mrb[0].mxu0
        %3924 = vmatprep.mubr.bf16.mxu0 0
        %3925 = vmatmul.mubr.bf16.gmra.mrb[0].mxu0 %v3796
        %v3926 = vpop.f32.mrb[0].mxu0
        %v3927 = vadd.f32 0.0, %v3926
        %v3928 = vpop.f32.mrb[0].mxu0
        %v3929 = vpop.f32.mrb[0].mxu0
        %v3930 = vadd.f32 0.0, %v3929
        %v3931 = vpop.f32.mrb[0].mxu0
        %3932 = vmatprep.mubr.bf16.mxu0 0
        %3933 = vmatmul.mubr.bf16.gmra.mrb[0].mxu0 %v3799
        %v3934 = vpop.f32.mrb[0].mxu0
        %v3935 = vadd.f32 0.0, %v3934
        %v3936 = vpop.f32.mrb[0].mxu0
        %v3937 = vpop.f32.mrb[0].mxu0
        %v3938 = vadd.f32 0.0, %v3937
        %v3939 = vpop.f32.mrb[0].mxu0
        %3940 = vmatprep.mubr.bf16.mxu0 0
        %3941 = vmatmul.mubr.bf16.gmra.mrb[0].mxu0 %v3802
        %v3942 = vpop.f32.mrb[0].mxu0
        %v3943 = vadd.f32 0.0, %v3942
        %v3944 = vpop.f32.mrb[0].mxu0
        %v3945 = vpop.f32.mrb[0].mxu0
        %v3946 = vadd.f32 0.0, %v3945
        %v3947 = vpop.f32.mrb[0].mxu0
        %3948 = vdwg.mxu0
        %v3949 = vadd.f32 %v3675, %v3839
        %v3950 = vadd.f32 %v3676, %v3842
        %v3951 = vadd.f32 %v3677, %v3847
        %v3952 = vadd.f32 %v3678, %v3850
        %v3953 = vadd.f32 %v3679, %v3855
        %v3954 = vadd.f32 %v3680, %v3858
        %v3955 = vadd.f32 %v3681, %v3863
        %v3956 = vadd.f32 %v3682, %v3866
        %v3957 = vadd.f32 %v3683, %v3871
        %v3958 = vadd.f32 %v3684, %v3874
        %v3959 = vadd.f32 %v3685, %v3879
        %v3960 = vadd.f32 %v3686, %v3882
        %v3961 = vadd.f32 %v3687, %v3887
        %v3962 = vadd.f32 %v3688, %v3890
        %v3963 = vadd.f32 %v3689, %v3895
        %v3964 = vadd.f32 %v3690, %v3898
        %v3965 = vadd.f32 %v3691, %v3903
        %v3966 = vadd.f32 %v3692, %v3906
        %v3967 = vadd.f32 %v3693, %v3911
        %v3968 = vadd.f32 %v3694, %v3914
        %v3969 = vadd.f32 %v3695, %v3919
        %v3970 = vadd.f32 %v3696, %v3922
        %v3971 = vadd.f32 %v3697, %v3927
        %v3972 = vadd.f32 %v3698, %v3930
        %v3973 = vadd.f32 %v3699, %v3935
        %v3974 = vadd.f32 %v3700, %v3938
        %v3975 = vadd.f32 %v3701, %v3943
        %v3976 = vadd.f32 %v3702, %v3946
        %v3977 = vld [vmem:[%s4] sm:$0x1]
        %v3979 = vlaneseq
        %v3980 = vshrl.u32 %v3979, 7
        %v3981 = vsub.s32 0, %v3980
        %v3982 = vrot.slane %v3977, %v3981
        %v3984 = vadd.f32 %v3949, %v3982
        %v3985 = vadd.f32 %v3950, %v3982
        %v3986 = vadd.f32 %v3951, %v3982
        %v3987 = vadd.f32 %v3952, %v3982
        %v3988 = vadd.f32 %v3953, %v3982
        %v3989 = vadd.f32 %v3954, %v3982
        %v3990 = vadd.f32 %v3955, %v3982
        %v3991 = vadd.f32 %v3956, %v3982
        %v3992 = vadd.f32 %v3957, %v3982
        %v3993 = vadd.f32 %v3958, %v3982
        %v3994 = vadd.f32 %v3959, %v3982
        %v3995 = vadd.f32 %v3960, %v3982
        %v3996 = vadd.f32 %v3961, %v3982
        %v3997 = vadd.f32 %v3962, %v3982
        %v3998 = vadd.f32 %v3963, %v3982
        %v3999 = vadd.f32 %v3964, %v3982
        %v4000 = vadd.f32 %v3965, %v3982
        %v4001 = vadd.f32 %v3966, %v3982
        %v4002 = vadd.f32 %v3967, %v3982
        %v4003 = vadd.f32 %v3968, %v3982
        %v4004 = vadd.f32 %v3969, %v3982
        %v4005 = vadd.f32 %v3970, %v3982
        %v4006 = vadd.f32 %v3971, %v3982
        %v4007 = vadd.f32 %v3972, %v3982
        %v4008 = vadd.f32 %v3973, %v3982
        %v4009 = vadd.f32 %v3974, %v3982
        %v4010 = vadd.f32 %v3975, %v3982
        %v4011 = vadd.f32 %v3976, %v3982
        %v4012 = vmul.f32 %v3984, %v3984
        %v4013 = vmul.f32 %v3985, %v3985
        %v4014 = vmul.f32 %v3986, %v3986
        %v4015 = vmul.f32 %v3987, %v3987
        %v4016 = vmul.f32 %v3988, %v3988
        %v4017 = vmul.f32 %v3989, %v3989
        %v4018 = vmul.f32 %v3990, %v3990
        %v4019 = vmul.f32 %v3991, %v3991
        %v4020 = vmul.f32 %v3992, %v3992
        %v4021 = vmul.f32 %v3993, %v3993
        %v4022 = vmul.f32 %v3994, %v3994
        %v4023 = vmul.f32 %v3995, %v3995
        %v4024 = vmul.f32 %v3996, %v3996
        %v4025 = vmul.f32 %v3997, %v3997
        %v4026 = vmul.f32 %v3998, %v3998
        %v4027 = vmul.f32 %v3999, %v3999
        %v4028 = vmul.f32 %v4000, %v4000
        %v4029 = vmul.f32 %v4001, %v4001
        %v4030 = vmul.f32 %v4002, %v4002
        %v4031 = vmul.f32 %v4003, %v4003
        %v4032 = vmul.f32 %v4004, %v4004
        %v4033 = vmul.f32 %v4005, %v4005
        %v4034 = vmul.f32 %v4006, %v4006
        %v4035 = vmul.f32 %v4007, %v4007
        %v4036 = vmul.f32 %v4008, %v4008
        %v4037 = vmul.f32 %v4009, %v4009
        %v4038 = vmul.f32 %v4010, %v4010
        %v4039 = vmul.f32 %v4011, %v4011
        %v4040 = vmul.f32 %v3984, %v4012
        %v4041 = vmul.f32 %v3985, %v4013
        %v4042 = vmul.f32 %v3986, %v4014
        %v4043 = vmul.f32 %v3987, %v4015
        %v4044 = vmul.f32 %v3988, %v4016
        %v4045 = vmul.f32 %v3989, %v4017
        %v4046 = vmul.f32 %v3990, %v4018
        %v4047 = vmul.f32 %v3991, %v4019
        %v4048 = vmul.f32 %v3992, %v4020
        %v4049 = vmul.f32 %v3993, %v4021
        %v4050 = vmul.f32 %v3994, %v4022
        %v4051 = vmul.f32 %v3995, %v4023
        %v4052 = vmul.f32 %v3996, %v4024
        %v4053 = vmul.f32 %v3997, %v4025
        %v4054 = vmul.f32 %v3998, %v4026
        %v4055 = vmul.f32 %v3999, %v4027
        %v4056 = vmul.f32 %v4000, %v4028
        %v4057 = vmul.f32 %v4001, %v4029
        %v4058 = vmul.f32 %v4002, %v4030
        %v4059 = vmul.f32 %v4003, %v4031
        %v4060 = vmul.f32 %v4004, %v4032
        %v4061 = vmul.f32 %v4005, %v4033
        %v4062 = vmul.f32 %v4006, %v4034
        %v4063 = vmul.f32 %v4007, %v4035
        %v4064 = vmul.f32 %v4008, %v4036
        %v4065 = vmul.f32 %v4009, %v4037
        %v4066 = vmul.f32 %v4010, %v4038
        %v4067 = vmul.f32 %v4011, %v4039
        %v4068 = vmul.f32 %v4040, 0.044715
        %v4069 = vmul.f32 %v4041, 0.044715
        %v4070 = vmul.f32 %v4042, 0.044715
        %v4071 = vmul.f32 %v4043, 0.044715
        %v4072 = vmul.f32 %v4044, 0.044715
        %v4073 = vmul.f32 %v4045, 0.044715
        %v4074 = vmul.f32 %v4046, 0.044715
        %v4075 = vmul.f32 %v4047, 0.044715
        %v4076 = vmul.f32 %v4048, 0.044715
        %v4077 = vmul.f32 %v4049, 0.044715
        %v4078 = vmul.f32 %v4050, 0.044715
        %v4079 = vmul.f32 %v4051, 0.044715
        %v4080 = vmul.f32 %v4052, 0.044715
        %v4081 = vmul.f32 %v4053, 0.044715
        %v4082 = vmul.f32 %v4054, 0.044715
        %v4083 = vmul.f32 %v4055, 0.044715
        %v4084 = vmul.f32 %v4056, 0.044715
        %v4085 = vmul.f32 %v4057, 0.044715
        %v4086 = vmul.f32 %v4058, 0.044715
        %v4087 = vmul.f32 %v4059, 0.044715
        %v4088 = vmul.f32 %v4060, 0.044715
        %v4089 = vmul.f32 %v4061, 0.044715
        %v4090 = vmul.f32 %v4062, 0.044715
        %v4091 = vmul.f32 %v4063, 0.044715
        %v4092 = vmul.f32 %v4064, 0.044715
        %v4093 = vmul.f32 %v4065, 0.044715
        %v4094 = vmul.f32 %v4066, 0.044715
        %v4095 = vmul.f32 %v4067, 0.044715
        %v4096 = vadd.f32 %v3984, %v4068
        %v4097 = vadd.f32 %v3985, %v4069
        %v4098 = vadd.f32 %v3986, %v4070
        %v4099 = vadd.f32 %v3987, %v4071
        %v4100 = vadd.f32 %v3988, %v4072
        %v4101 = vadd.f32 %v3989, %v4073
        %v4102 = vadd.f32 %v3990, %v4074
        %v4103 = vadd.f32 %v3991, %v4075
        %v4104 = vadd.f32 %v3992, %v4076
        %v4105 = vadd.f32 %v3993, %v4077
        %v4106 = vadd.f32 %v3994, %v4078
        %v4107 = vadd.f32 %v3995, %v4079
        %v4108 = vadd.f32 %v3996, %v4080
        %v4109 = vadd.f32 %v3997, %v4081
        %v4110 = vadd.f32 %v3998, %v4082
        %v4111 = vadd.f32 %v3999, %v4083
        %v4112 = vadd.f32 %v4000, %v4084
        %v4113 = vadd.f32 %v4001, %v4085
        %v4114 = vadd.f32 %v4002, %v4086
        %v4115 = vadd.f32 %v4003, %v4087
        %v4116 = vadd.f32 %v4004, %v4088
        %v4117 = vadd.f32 %v4005, %v4089
        %v4118 = vadd.f32 %v4006, %v4090
        %v4119 = vadd.f32 %v4007, %v4091
        %v4120 = vadd.f32 %v4008, %v4092
        %v4121 = vadd.f32 %v4009, %v4093
        %v4122 = vadd.f32 %v4010, %v4094
        %v4123 = vadd.f32 %v4011, %v4095
        %v4124 = vmul.f32 %v4096, 0.7978846
        %v4125 = vmul.f32 %v4097, 0.7978846
        %v4126 = vmul.f32 %v4098, 0.7978846
        %v4127 = vmul.f32 %v4099, 0.7978846
        %v4128 = vmul.f32 %v4100, 0.7978846
        %v4129 = vmul.f32 %v4101, 0.7978846
        %v4130 = vmul.f32 %v4102, 0.7978846
        %v4131 = vmul.f32 %v4103, 0.7978846
        %v4132 = vmul.f32 %v4104, 0.7978846
        %v4133 = vmul.f32 %v4105, 0.7978846
        %v4134 = vmul.f32 %v4106, 0.7978846
        %v4135 = vmul.f32 %v4107, 0.7978846
        %v4136 = vmul.f32 %v4108, 0.7978846
        %v4137 = vmul.f32 %v4109, 0.7978846
        %v4138 = vmul.f32 %v4110, 0.7978846
        %v4139 = vmul.f32 %v4111, 0.7978846
        %v4140 = vmul.f32 %v4112, 0.7978846
        %v4141 = vmul.f32 %v4113, 0.7978846
        %v4142 = vmul.f32 %v4114, 0.7978846
        %v4143 = vmul.f32 %v4115, 0.7978846
        %v4144 = vmul.f32 %v4116, 0.7978846
        %v4145 = vmul.f32 %v4117, 0.7978846
        %v4146 = vmul.f32 %v4118, 0.7978846
        %v4147 = vmul.f32 %v4119, 0.7978846
        %v4148 = vmul.f32 %v4120, 0.7978846
        %v4149 = vmul.f32 %v4121, 0.7978846
        %v4150 = vmul.f32 %v4122, 0.7978846
        %v4151 = vmul.f32 %v4123, 0.7978846
        %v4152 = vtanh.pop %v4124
        %v4153 = vtanh.pop %v4125
        %v4154 = vtanh.pop %v4126
        %v4155 = vtanh.pop %v4127
        %v4156 = vtanh.pop %v4128
        %v4157 = vtanh.pop %v4129
        %v4158 = vtanh.pop %v4130
        %v4159 = vtanh.pop %v4131
        %v4160 = vtanh.pop %v4132
        %v4161 = vtanh.pop %v4133
        %v4162 = vtanh.pop %v4134
        %v4163 = vtanh.pop %v4135
        %v4164 = vtanh.pop %v4136
        %v4165 = vtanh.pop %v4137
        %v4166 = vtanh.pop %v4138
        %v4167 = vtanh.pop %v4139
        %v4168 = vtanh.pop %v4140
        %v4169 = vtanh.pop %v4141
        %v4170 = vtanh.pop %v4142
        %v4171 = vtanh.pop %v4143
        %v4172 = vtanh.pop %v4144
        %v4173 = vtanh.pop %v4145
        %v4174 = vtanh.pop %v4146
        %v4175 = vtanh.pop %v4147
        %v4176 = vtanh.pop %v4148
        %v4177 = vtanh.pop %v4149
        %v4178 = vtanh.pop %v4150
        %v4179 = vtanh.pop %v4151
        %v4180 = vadd.f32 %v4152, 1.0
        %v4181 = vadd.f32 %v4153, 1.0
        %v4182 = vadd.f32 %v4154, 1.0
        %v4183 = vadd.f32 %v4155, 1.0
        %v4184 = vadd.f32 %v4156, 1.0
        %v4185 = vadd.f32 %v4157, 1.0
        %v4186 = vadd.f32 %v4158, 1.0
        %v4187 = vadd.f32 %v4159, 1.0
        %v4188 = vadd.f32 %v4160, 1.0
        %v4189 = vadd.f32 %v4161, 1.0
        %v4190 = vadd.f32 %v4162, 1.0
        %v4191 = vadd.f32 %v4163, 1.0
        %v4192 = vadd.f32 %v4164, 1.0
        %v4193 = vadd.f32 %v4165, 1.0
        %v4194 = vadd.f32 %v4166, 1.0
        %v4195 = vadd.f32 %v4167, 1.0
        %v4196 = vadd.f32 %v4168, 1.0
        %v4197 = vadd.f32 %v4169, 1.0
        %v4198 = vadd.f32 %v4170, 1.0
        %v4199 = vadd.f32 %v4171, 1.0
        %v4200 = vadd.f32 %v4172, 1.0
        %v4201 = vadd.f32 %v4173, 1.0
        %v4202 = vadd.f32 %v4174, 1.0
        %v4203 = vadd.f32 %v4175, 1.0
        %v4204 = vadd.f32 %v4176, 1.0
        %v4205 = vadd.f32 %v4177, 1.0
        %v4206 = vadd.f32 %v4178, 1.0
        %v4207 = vadd.f32 %v4179, 1.0
        %v4208 = vmul.f32 %v4180, 0.5
        %v4209 = vmul.f32 %v4181, 0.5
        %v4210 = vmul.f32 %v4182, 0.5
        %v4211 = vmul.f32 %v4183, 0.5
        %v4212 = vmul.f32 %v4184, 0.5
        %v4213 = vmul.f32 %v4185, 0.5
        %v4214 = vmul.f32 %v4186, 0.5
        %v4215 = vmul.f32 %v4187, 0.5
        %v4216 = vmul.f32 %v4188, 0.5
        %v4217 = vmul.f32 %v4189, 0.5
        %v4218 = vmul.f32 %v4190, 0.5
        %v4219 = vmul.f32 %v4191, 0.5
        %v4220 = vmul.f32 %v4192, 0.5
        %v4221 = vmul.f32 %v4193, 0.5
        %v4222 = vmul.f32 %v4194, 0.5
        %v4223 = vmul.f32 %v4195, 0.5
        %v4224 = vmul.f32 %v4196, 0.5
        %v4225 = vmul.f32 %v4197, 0.5
        %v4226 = vmul.f32 %v4198, 0.5
        %v4227 = vmul.f32 %v4199, 0.5
        %v4228 = vmul.f32 %v4200, 0.5
        %v4229 = vmul.f32 %v4201, 0.5
        %v4230 = vmul.f32 %v4202, 0.5
        %v4231 = vmul.f32 %v4203, 0.5
        %v4232 = vmul.f32 %v4204, 0.5
        %v4233 = vmul.f32 %v4205, 0.5
        %v4234 = vmul.f32 %v4206, 0.5
        %v4235 = vmul.f32 %v4207, 0.5
        %v4236 = vmul.f32 %v3984, %v4208
        %v4237 = vmul.f32 %v3985, %v4209
        %v4238 = vmul.f32 %v3986, %v4210
        %v4239 = vmul.f32 %v3987, %v4211
        %v4240 = vmul.f32 %v3988, %v4212
        %v4241 = vmul.f32 %v3989, %v4213
        %v4242 = vmul.f32 %v3990, %v4214
        %v4243 = vmul.f32 %v3991, %v4215
        %v4244 = vmul.f32 %v3992, %v4216
        %v4245 = vmul.f32 %v3993, %v4217
        %v4246 = vmul.f32 %v3994, %v4218
        %v4247 = vmul.f32 %v3995, %v4219
        %v4248 = vmul.f32 %v3996, %v4220
        %v4249 = vmul.f32 %v3997, %v4221
        %v4250 = vmul.f32 %v3998, %v4222
        %v4251 = vmul.f32 %v3999, %v4223
        %v4252 = vmul.f32 %v4000, %v4224
        %v4253 = vmul.f32 %v4001, %v4225
        %v4254 = vmul.f32 %v4002, %v4226
        %v4255 = vmul.f32 %v4003, %v4227
        %v4256 = vmul.f32 %v4004, %v4228
        %v4257 = vmul.f32 %v4005, %v4229
        %v4258 = vmul.f32 %v4006, %v4230
        %v4259 = vmul.f32 %v4007, %v4231
        %v4260 = vmul.f32 %v4008, %v4232
        %v4261 = vmul.f32 %v4009, %v4233
        %v4262 = vmul.f32 %v4010, %v4234
        %v4263 = vmul.f32 %v4011, %v4235
        %v4264 = vlaneseq
        %v4265 = vshrl.u32 %v4264, 7
        %v4266 = vadd.s32 %v4265, 8
        %v4267 = vadd.s32 %v4265, 16
        %v4268 = vadd.s32 %v4265, 24
        %v4269 = vadd.s32 %v4265, 32
        %v4270 = vadd.s32 %v4265, 40
        %v4271 = vadd.s32 %v4265, 48
        %v4272 = vadd.s32 %v4265, 56
        %v4273 = vadd.s32 %v4265, 64
        %v4274 = vadd.s32 %v4265, 72
        %v4275 = vadd.s32 %v4265, 80
        %v4276 = vadd.s32 %v4265, 88
        %v4277 = vadd.s32 %v4265, 96
        %v4278 = vadd.s32 %v4265, 104
        %v4279 = vadd.s32 %v4265, 112
        %v4280 = vadd.s32 %v4265, 120
        %v4281 = vadd.s32 %v4265, 128
        %v4282 = vadd.s32 %v4265, 136
        %v4283 = vadd.s32 %v4265, 144
        %v4284 = vadd.s32 %v4265, 152
        %v4285 = vadd.s32 %v4265, 160
        %v4286 = vadd.s32 %v4265, 168
        %v4287 = vadd.s32 %v4265, 176
        %v4288 = vadd.s32 %v4265, 184
        %v4289 = vadd.s32 %v4265, 192
        %v4290 = vadd.s32 %v4265, 200
        %v4291 = vadd.s32 %v4265, 208
        %v4292 = vadd.s32 %v4265, 216
        %vm4293 = vcmp.lt.s32.totalorder %v4265, 0
        %v4294 = vsub.s32 0, %v4265
        %v4295 = vsel %vm4293, %v4294, %v4265
        %v4296 = vshrl.u32 %v4295, 4
        %v4297 = vand.u32 %v4295, 15
        %v4298 = vsub.s32 0, %v4297
        %v4299 = vsel %vm4293, %v4298, %v4297
        %vm4300 = vcmp.lt.s32.totalorder %v4266, 0
        %v4301 = vsub.s32 0, %v4266
        %v4302 = vsel %vm4300, %v4301, %v4266
        %v4303 = vshrl.u32 %v4302, 4
        %v4304 = vand.u32 %v4302, 15
        %v4305 = vsub.s32 0, %v4304
        %v4306 = vsel %vm4300, %v4305, %v4304
        %vm4307 = vcmp.lt.s32.totalorder %v4267, 0
        %v4308 = vsub.s32 0, %v4267
        %v4309 = vsel %vm4307, %v4308, %v4267
        %v4310 = vshrl.u32 %v4309, 4
        %v4311 = vand.u32 %v4309, 15
        %v4312 = vsub.s32 0, %v4311
        %v4313 = vsel %vm4307, %v4312, %v4311
        %vm4314 = vcmp.lt.s32.totalorder %v4268, 0
        %v4315 = vsub.s32 0, %v4268
        %v4316 = vsel %vm4314, %v4315, %v4268
        %v4317 = vshrl.u32 %v4316, 4
        %v4318 = vand.u32 %v4316, 15
        %v4319 = vsub.s32 0, %v4318
        %v4320 = vsel %vm4314, %v4319, %v4318
        %vm4321 = vcmp.lt.s32.totalorder %v4269, 0
        %v4322 = vsub.s32 0, %v4269
        %v4323 = vsel %vm4321, %v4322, %v4269
        %v4324 = vshrl.u32 %v4323, 4
        %v4325 = vand.u32 %v4323, 15
        %v4326 = vsub.s32 0, %v4325
        %v4327 = vsel %vm4321, %v4326, %v4325
        %vm4328 = vcmp.lt.s32.totalorder %v4270, 0
        %v4329 = vsub.s32 0, %v4270
        %v4330 = vsel %vm4328, %v4329, %v4270
        %v4331 = vshrl.u32 %v4330, 4
        %v4332 = vand.u32 %v4330, 15
        %v4333 = vsub.s32 0, %v4332
        %v4334 = vsel %vm4328, %v4333, %v4332
        %vm4335 = vcmp.lt.s32.totalorder %v4271, 0
        %v4336 = vsub.s32 0, %v4271
        %v4337 = vsel %vm4335, %v4336, %v4271
        %v4338 = vshrl.u32 %v4337, 4
        %v4339 = vand.u32 %v4337, 15
        %v4340 = vsub.s32 0, %v4339
        %v4341 = vsel %vm4335, %v4340, %v4339
        %vm4342 = vcmp.lt.s32.totalorder %v4272, 0
        %v4343 = vsub.s32 0, %v4272
        %v4344 = vsel %vm4342, %v4343, %v4272
        %v4345 = vshrl.u32 %v4344, 4
        %v4346 = vand.u32 %v4344, 15
        %v4347 = vsub.s32 0, %v4346
        %v4348 = vsel %vm4342, %v4347, %v4346
        %vm4349 = vcmp.lt.s32.totalorder %v4273, 0
        %v4350 = vsub.s32 0, %v4273
        %v4351 = vsel %vm4349, %v4350, %v4273
        %v4352 = vshrl.u32 %v4351, 4
        %v4353 = vand.u32 %v4351, 15
        %v4354 = vsub.s32 0, %v4353
        %v4355 = vsel %vm4349, %v4354, %v4353
        %vm4356 = vcmp.lt.s32.totalorder %v4274, 0
        %v4357 = vsub.s32 0, %v4274
        %v4358 = vsel %vm4356, %v4357, %v4274
        %v4359 = vshrl.u32 %v4358, 4
        %v4360 = vand.u32 %v4358, 15
        %v4361 = vsub.s32 0, %v4360
        %v4362 = vsel %vm4356, %v4361, %v4360
        %vm4363 = vcmp.lt.s32.totalorder %v4275, 0
        %v4364 = vsub.s32 0, %v4275
        %v4365 = vsel %vm4363, %v4364, %v4275
        %v4366 = vshrl.u32 %v4365, 4
        %v4367 = vand.u32 %v4365, 15
        %v4368 = vsub.s32 0, %v4367
        %v4369 = vsel %vm4363, %v4368, %v4367
        %vm4370 = vcmp.lt.s32.totalorder %v4276, 0
        %v4371 = vsub.s32 0, %v4276
        %v4372 = vsel %vm4370, %v4371, %v4276
        %v4373 = vshrl.u32 %v4372, 4
        %v4374 = vand.u32 %v4372, 15
        %v4375 = vsub.s32 0, %v4374
        %v4376 = vsel %vm4370, %v4375, %v4374
        %vm4377 = vcmp.lt.s32.totalorder %v4277, 0
        %v4378 = vsub.s32 0, %v4277
        %v4379 = vsel %vm4377, %v4378, %v4277
        %v4380 = vshrl.u32 %v4379, 4
        %v4381 = vand.u32 %v4379, 15
        %v4382 = vsub.s32 0, %v4381
        %v4383 = vsel %vm4377, %v4382, %v4381
        %vm4384 = vcmp.lt.s32.totalorder %v4278, 0
        %v4385 = vsub.s32 0, %v4278
        %v4386 = vsel %vm4384, %v4385, %v4278
        %v4387 = vshrl.u32 %v4386, 4
        %v4388 = vand.u32 %v4386, 15
        %v4389 = vsub.s32 0, %v4388
        %v4390 = vsel %vm4384, %v4389, %v4388
        %vm4391 = vcmp.lt.s32.totalorder %v4279, 0
        %v4392 = vsub.s32 0, %v4279
        %v4393 = vsel %vm4391, %v4392, %v4279
        %v4394 = vshrl.u32 %v4393, 4
        %v4395 = vand.u32 %v4393, 15
        %v4396 = vsub.s32 0, %v4395
        %v4397 = vsel %vm4391, %v4396, %v4395
        %vm4398 = vcmp.lt.s32.totalorder %v4280, 0
        %v4399 = vsub.s32 0, %v4280
        %v4400 = vsel %vm4398, %v4399, %v4280
        %v4401 = vshrl.u32 %v4400, 4
        %v4402 = vand.u32 %v4400, 15
        %v4403 = vsub.s32 0, %v4402
        %v4404 = vsel %vm4398, %v4403, %v4402
        %vm4405 = vcmp.lt.s32.totalorder %v4281, 0
        %v4406 = vsub.s32 0, %v4281
        %v4407 = vsel %vm4405, %v4406, %v4281
        %v4408 = vshrl.u32 %v4407, 4
        %v4409 = vand.u32 %v4407, 15
        %v4410 = vsub.s32 0, %v4409
        %v4411 = vsel %vm4405, %v4410, %v4409
        %vm4412 = vcmp.lt.s32.totalorder %v4282, 0
        %v4413 = vsub.s32 0, %v4282
        %v4414 = vsel %vm4412, %v4413, %v4282
        %v4415 = vshrl.u32 %v4414, 4
        %v4416 = vand.u32 %v4414, 15
        %v4417 = vsub.s32 0, %v4416
        %v4418 = vsel %vm4412, %v4417, %v4416
        %vm4419 = vcmp.lt.s32.totalorder %v4283, 0
        %v4420 = vsub.s32 0, %v4283
        %v4421 = vsel %vm4419, %v4420, %v4283
        %v4422 = vshrl.u32 %v4421, 4
        %v4423 = vand.u32 %v4421, 15
        %v4424 = vsub.s32 0, %v4423
        %v4425 = vsel %vm4419, %v4424, %v4423
        %vm4426 = vcmp.lt.s32.totalorder %v4284, 0
        %v4427 = vsub.s32 0, %v4284
        %v4428 = vsel %vm4426, %v4427, %v4284
        %v4429 = vshrl.u32 %v4428, 4
        %v4430 = vand.u32 %v4428, 15
        %v4431 = vsub.s32 0, %v4430
        %v4432 = vsel %vm4426, %v4431, %v4430
        %vm4433 = vcmp.lt.s32.totalorder %v4285, 0
        %v4434 = vsub.s32 0, %v4285
        %v4435 = vsel %vm4433, %v4434, %v4285
        %v4436 = vshrl.u32 %v4435, 4
        %v4437 = vand.u32 %v4435, 15
        %v4438 = vsub.s32 0, %v4437
        %v4439 = vsel %vm4433, %v4438, %v4437
        %vm4440 = vcmp.lt.s32.totalorder %v4286, 0
        %v4441 = vsub.s32 0, %v4286
        %v4442 = vsel %vm4440, %v4441, %v4286
        %v4443 = vshrl.u32 %v4442, 4
        %v4444 = vand.u32 %v4442, 15
        %v4445 = vsub.s32 0, %v4444
        %v4446 = vsel %vm4440, %v4445, %v4444
        %vm4447 = vcmp.lt.s32.totalorder %v4287, 0
        %v4448 = vsub.s32 0, %v4287
        %v4449 = vsel %vm4447, %v4448, %v4287
        %v4450 = vshrl.u32 %v4449, 4
        %v4451 = vand.u32 %v4449, 15
        %v4452 = vsub.s32 0, %v4451
        %v4453 = vsel %vm4447, %v4452, %v4451
        %vm4454 = vcmp.lt.s32.totalorder %v4288, 0
        %v4455 = vsub.s32 0, %v4288
        %v4456 = vsel %vm4454, %v4455, %v4288
        %v4457 = vshrl.u32 %v4456, 4
        %v4458 = vand.u32 %v4456, 15
        %v4459 = vsub.s32 0, %v4458
        %v4460 = vsel %vm4454, %v4459, %v4458
        %vm4461 = vcmp.lt.s32.totalorder %v4289, 0
        %v4462 = vsub.s32 0, %v4289
        %v4463 = vsel %vm4461, %v4462, %v4289
        %v4464 = vshrl.u32 %v4463, 4
        %v4465 = vand.u32 %v4463, 15
        %v4466 = vsub.s32 0, %v4465
        %v4467 = vsel %vm4461, %v4466, %v4465
        %vm4468 = vcmp.lt.s32.totalorder %v4290, 0
        %v4469 = vsub.s32 0, %v4290
        %v4470 = vsel %vm4468, %v4469, %v4290
        %v4471 = vshrl.u32 %v4470, 4
        %v4472 = vand.u32 %v4470, 15
        %v4473 = vsub.s32 0, %v4472
        %v4474 = vsel %vm4468, %v4473, %v4472
        %vm4475 = vcmp.lt.s32.totalorder %v4291, 0
        %v4476 = vsub.s32 0, %v4291
        %v4477 = vsel %vm4475, %v4476, %v4291
        %v4478 = vshrl.u32 %v4477, 4
        %v4479 = vand.u32 %v4477, 15
        %v4480 = vsub.s32 0, %v4479
        %v4481 = vsel %vm4475, %v4480, %v4479
        %vm4482 = vcmp.lt.s32.totalorder %v4292, 0
        %v4483 = vsub.s32 0, %v4292
        %v4484 = vsel %vm4482, %v4483, %v4292
        %v4485 = vshrl.u32 %v4484, 4
        %v4486 = vand.u32 %v4484, 15
        %v4487 = vsub.s32 0, %v4486
        %v4488 = vsel %vm4482, %v4487, %v4486
        %vm4489 = vcmp.ne.s32.totalorder %v4299, 0
        %vm4490 = vcmp.ne.s32.totalorder %v4306, 0
        %vm4491 = vcmp.ne.s32.totalorder %v4313, 0
        %vm4492 = vcmp.ne.s32.totalorder %v4320, 0
        %vm4493 = vcmp.ne.s32.totalorder %v4327, 0
        %vm4494 = vcmp.ne.s32.totalorder %v4334, 0
        %vm4495 = vcmp.ne.s32.totalorder %v4341, 0
        %vm4496 = vcmp.ne.s32.totalorder %v4348, 0
        %vm4497 = vcmp.ne.s32.totalorder %v4355, 0
        %vm4498 = vcmp.ne.s32.totalorder %v4362, 0
        %vm4499 = vcmp.ne.s32.totalorder %v4369, 0
        %vm4500 = vcmp.ne.s32.totalorder %v4376, 0
        %vm4501 = vcmp.ne.s32.totalorder %v4383, 0
        %vm4502 = vcmp.ne.s32.totalorder %v4390, 0
        %vm4503 = vcmp.ne.s32.totalorder %v4397, 0
        %vm4504 = vcmp.ne.s32.totalorder %v4404, 0
        %vm4505 = vcmp.ne.s32.totalorder %v4411, 0
        %vm4506 = vcmp.ne.s32.totalorder %v4418, 0
        %vm4507 = vcmp.ne.s32.totalorder %v4425, 0
        %vm4508 = vcmp.ne.s32.totalorder %v4432, 0
        %vm4509 = vcmp.ne.s32.totalorder %v4439, 0
        %vm4510 = vcmp.ne.s32.totalorder %v4446, 0
        %vm4511 = vcmp.ne.s32.totalorder %v4453, 0
        %vm4512 = vcmp.ne.s32.totalorder %v4460, 0
        %vm4513 = vcmp.ne.s32.totalorder %v4467, 0
        %vm4514 = vcmp.ne.s32.totalorder %v4474, 0
        %vm4515 = vcmp.ne.s32.totalorder %v4481, 0
        %vm4516 = vcmp.ne.s32.totalorder %v4488, 0
        %vm4517 = vcmp.lt.s32.totalorder %v4299, 0
        %vm4518 = vcmp.lt.s32.totalorder %v4306, 0
        %vm4519 = vcmp.lt.s32.totalorder %v4313, 0
        %vm4520 = vcmp.lt.s32.totalorder %v4320, 0
        %vm4521 = vcmp.lt.s32.totalorder %v4327, 0
        %vm4522 = vcmp.lt.s32.totalorder %v4334, 0
        %vm4523 = vcmp.lt.s32.totalorder %v4341, 0
        %vm4524 = vcmp.lt.s32.totalorder %v4348, 0
        %vm4525 = vcmp.lt.s32.totalorder %v4355, 0
        %vm4526 = vcmp.lt.s32.totalorder %v4362, 0
        %vm4527 = vcmp.lt.s32.totalorder %v4369, 0
        %vm4528 = vcmp.lt.s32.totalorder %v4376, 0
        %vm4529 = vcmp.lt.s32.totalorder %v4383, 0
        %vm4530 = vcmp.lt.s32.totalorder %v4390, 0
        %vm4531 = vcmp.lt.s32.totalorder %v4397, 0
        %vm4532 = vcmp.lt.s32.totalorder %v4404, 0
        %vm4533 = vcmp.lt.s32.totalorder %v4411, 0
        %vm4534 = vcmp.lt.s32.totalorder %v4418, 0
        %vm4535 = vcmp.lt.s32.totalorder %v4425, 0
        %vm4536 = vcmp.lt.s32.totalorder %v4432, 0
        %vm4537 = vcmp.lt.s32.totalorder %v4439, 0
        %vm4538 = vcmp.lt.s32.totalorder %v4446, 0
        %vm4539 = vcmp.lt.s32.totalorder %v4453, 0
        %vm4540 = vcmp.lt.s32.totalorder %v4460, 0
        %vm4541 = vcmp.lt.s32.totalorder %v4467, 0
        %vm4542 = vcmp.lt.s32.totalorder %v4474, 0
        %vm4543 = vcmp.lt.s32.totalorder %v4481, 0
        %vm4544 = vcmp.lt.s32.totalorder %v4488, 0
        %vm4545 = vmand %vm4517, %vm4489
        %vm4546 = vmand %vm4518, %vm4490
        %vm4547 = vmand %vm4519, %vm4491
        %vm4548 = vmand %vm4520, %vm4492
        %vm4549 = vmand %vm4521, %vm4493
        %vm4550 = vmand %vm4522, %vm4494
        %vm4551 = vmand %vm4523, %vm4495
        %vm4552 = vmand %vm4524, %vm4496
        %vm4553 = vmand %vm4525, %vm4497
        %vm4554 = vmand %vm4526, %vm4498
        %vm4555 = vmand %vm4527, %vm4499
        %vm4556 = vmand %vm4528, %vm4500
        %vm4557 = vmand %vm4529, %vm4501
        %vm4558 = vmand %vm4530, %vm4502
        %vm4559 = vmand %vm4531, %vm4503
        %vm4560 = vmand %vm4532, %vm4504
        %vm4561 = vmand %vm4533, %vm4505
        %vm4562 = vmand %vm4534, %vm4506
        %vm4563 = vmand %vm4535, %vm4507
        %vm4564 = vmand %vm4536, %vm4508
        %vm4565 = vmand %vm4537, %vm4509
        %vm4566 = vmand %vm4538, %vm4510
        %vm4567 = vmand %vm4539, %vm4511
        %vm4568 = vmand %vm4540, %vm4512
        %vm4569 = vmand %vm4541, %vm4513
        %vm4570 = vmand %vm4542, %vm4514
        %vm4571 = vmand %vm4543, %vm4515
        %vm4572 = vmand %vm4544, %vm4516
        %v4573 = vadd.s32 %v4299, 16
        %v4574 = vadd.s32 %v4306, 16
        %v4575 = vadd.s32 %v4313, 16
        %v4576 = vadd.s32 %v4320, 16
        %v4577 = vadd.s32 %v4327, 16
        %v4578 = vadd.s32 %v4334, 16
        %v4579 = vadd.s32 %v4341, 16
        %v4580 = vadd.s32 %v4348, 16
        %v4581 = vadd.s32 %v4355, 16
        %v4582 = vadd.s32 %v4362, 16
        %v4583 = vadd.s32 %v4369, 16
        %v4584 = vadd.s32 %v4376, 16
        %v4585 = vadd.s32 %v4383, 16
        %v4586 = vadd.s32 %v4390, 16
        %v4587 = vadd.s32 %v4397, 16
        %v4588 = vadd.s32 %v4404, 16
        %v4589 = vadd.s32 %v4411, 16
        %v4590 = vadd.s32 %v4418, 16
        %v4591 = vadd.s32 %v4425, 16
        %v4592 = vadd.s32 %v4432, 16
        %v4593 = vadd.s32 %v4439, 16
        %v4594 = vadd.s32 %v4446, 16
        %v4595 = vadd.s32 %v4453, 16
        %v4596 = vadd.s32 %v4460, 16
        %v4597 = vadd.s32 %v4467, 16
        %v4598 = vadd.s32 %v4474, 16
        %v4599 = vadd.s32 %v4481, 16
        %v4600 = vadd.s32 %v4488, 16
        %v4601 = vsel %vm4545, %v4573, %v4299
        %v4602 = vsel %vm4546, %v4574, %v4306
        %v4603 = vsel %vm4547, %v4575, %v4313
        %v4604 = vsel %vm4548, %v4576, %v4320
        %v4605 = vsel %vm4549, %v4577, %v4327
        %v4606 = vsel %vm4550, %v4578, %v4334
        %v4607 = vsel %vm4551, %v4579, %v4341
        %v4608 = vsel %vm4552, %v4580, %v4348
        %v4609 = vsel %vm4553, %v4581, %v4355
        %v4610 = vsel %vm4554, %v4582, %v4362
        %v4611 = vsel %vm4555, %v4583, %v4369
        %v4612 = vsel %vm4556, %v4584, %v4376
        %v4613 = vsel %vm4557, %v4585, %v4383
        %v4614 = vsel %vm4558, %v4586, %v4390
        %v4615 = vsel %vm4559, %v4587, %v4397
        %v4616 = vsel %vm4560, %v4588, %v4404
        %v4617 = vsel %vm4561, %v4589, %v4411
        %v4618 = vsel %vm4562, %v4590, %v4418
        %v4619 = vsel %vm4563, %v4591, %v4425
        %v4620 = vsel %vm4564, %v4592, %v4432
        %v4621 = vsel %vm4565, %v4593, %v4439
        %v4622 = vsel %vm4566, %v4594, %v4446
        %v4623 = vsel %vm4567, %v4595, %v4453
        %v4624 = vsel %vm4568, %v4596, %v4460
        %v4625 = vsel %vm4569, %v4597, %v4467
        %v4626 = vsel %vm4570, %v4598, %v4474
        %v4627 = vsel %vm4571, %v4599, %v4481
        %v4628 = vsel %vm4572, %v4600, %v4488
        %vm4629 = vcmp.lt.s32.totalorder %v4601, 14
        %vm4630 = vcmp.lt.s32.totalorder %v4602, 14
        %vm4631 = vcmp.lt.s32.totalorder %v4603, 14
        %vm4632 = vcmp.lt.s32.totalorder %v4604, 14
        %vm4633 = vcmp.lt.s32.totalorder %v4605, 14
        %vm4634 = vcmp.lt.s32.totalorder %v4606, 14
        %vm4635 = vcmp.lt.s32.totalorder %v4607, 14
        %vm4636 = vcmp.lt.s32.totalorder %v4608, 14
        %vm4637 = vcmp.lt.s32.totalorder %v4609, 14
        %vm4638 = vcmp.lt.s32.totalorder %v4610, 14
        %vm4639 = vcmp.lt.s32.totalorder %v4611, 14
        %vm4640 = vcmp.lt.s32.totalorder %v4612, 14
        %vm4641 = vcmp.lt.s32.totalorder %v4613, 14
        %vm4642 = vcmp.lt.s32.totalorder %v4614, 14
        %vm4643 = vcmp.lt.s32.totalorder %v4615, 14
        %vm4644 = vcmp.lt.s32.totalorder %v4616, 14
        %vm4645 = vcmp.lt.s32.totalorder %v4617, 14
        %vm4646 = vcmp.lt.s32.totalorder %v4618, 14
        %vm4647 = vcmp.lt.s32.totalorder %v4619, 14
        %vm4648 = vcmp.lt.s32.totalorder %v4620, 14
        %vm4649 = vcmp.lt.s32.totalorder %v4621, 14
        %vm4650 = vcmp.lt.s32.totalorder %v4622, 14
        %vm4651 = vcmp.lt.s32.totalorder %v4623, 14
        %vm4652 = vcmp.lt.s32.totalorder %v4624, 14
        %vm4653 = vcmp.lt.s32.totalorder %v4625, 14
        %vm4654 = vcmp.lt.s32.totalorder %v4626, 14
        %vm4655 = vcmp.lt.s32.totalorder %v4627, 14
        %vm4656 = vcmp.lt.s32.totalorder %v4628, 14
        %v4657 = vsel %vm4629, 1, 0
        %v4658 = vsel %vm4630, 1, 0
        %v4659 = vsel %vm4631, 1, 0
        %v4660 = vsel %vm4632, 1, 0
        %v4661 = vsel %vm4633, 1, 0
        %v4662 = vsel %vm4634, 1, 0
        %v4663 = vsel %vm4635, 1, 0
        %v4664 = vsel %vm4636, 1, 0
        %v4665 = vsel %vm4637, 1, 0
        %v4666 = vsel %vm4638, 1, 0
        %v4667 = vsel %vm4639, 1, 0
        %v4668 = vsel %vm4640, 1, 0
        %v4669 = vsel %vm4641, 1, 0
        %v4670 = vsel %vm4642, 1, 0
        %v4671 = vsel %vm4643, 1, 0
        %v4672 = vsel %vm4644, 1, 0
        %v4673 = vsel %vm4645, 1, 0
        %v4674 = vsel %vm4646, 1, 0
        %v4675 = vsel %vm4647, 1, 0
        %v4676 = vsel %vm4648, 1, 0
        %v4677 = vsel %vm4649, 1, 0
        %v4678 = vsel %vm4650, 1, 0
        %v4679 = vsel %vm4651, 1, 0
        %v4680 = vsel %vm4652, 1, 0
        %v4681 = vsel %vm4653, 1, 0
        %v4682 = vsel %vm4654, 1, 0
        %v4683 = vsel %vm4655, 1, 0
        %v4684 = vsel %vm4656, 1, 0
        %vm4685 = vcmp.eq.s32.totalorder %v4657, 1
        %vm4686 = vcmp.eq.s32.totalorder %v4658, 1
        %vm4687 = vcmp.eq.s32.totalorder %v4659, 1
        %vm4688 = vcmp.eq.s32.totalorder %v4660, 1
        %vm4689 = vcmp.eq.s32.totalorder %v4661, 1
        %vm4690 = vcmp.eq.s32.totalorder %v4662, 1
        %vm4691 = vcmp.eq.s32.totalorder %v4663, 1
        %vm4692 = vcmp.eq.s32.totalorder %v4664, 1
        %vm4693 = vcmp.eq.s32.totalorder %v4665, 1
        %vm4694 = vcmp.eq.s32.totalorder %v4666, 1
        %vm4695 = vcmp.eq.s32.totalorder %v4667, 1
        %vm4696 = vcmp.eq.s32.totalorder %v4668, 1
        %vm4697 = vcmp.eq.s32.totalorder %v4669, 1
        %vm4698 = vcmp.eq.s32.totalorder %v4670, 1
        %vm4699 = vcmp.eq.s32.totalorder %v4671, 1
        %vm4700 = vcmp.eq.s32.totalorder %v4672, 1
        %vm4701 = vcmp.eq.s32.totalorder %v4673, 1
        %vm4702 = vcmp.eq.s32.totalorder %v4674, 1
        %vm4703 = vcmp.eq.s32.totalorder %v4675, 1
        %vm4704 = vcmp.eq.s32.totalorder %v4676, 1
        %vm4705 = vcmp.eq.s32.totalorder %v4677, 1
        %vm4706 = vcmp.eq.s32.totalorder %v4678, 1
        %vm4707 = vcmp.eq.s32.totalorder %v4679, 1
        %vm4708 = vcmp.eq.s32.totalorder %v4680, 1
        %vm4709 = vcmp.eq.s32.totalorder %v4681, 1
        %vm4710 = vcmp.eq.s32.totalorder %v4682, 1
        %vm4711 = vcmp.eq.s32.totalorder %v4683, 1
        %vm4712 = vcmp.eq.s32.totalorder %v4684, 1
        %v4713 = vsel %vm4685, %v4236, 0.0
        %v4714 = vsel %vm4686, %v4237, 0.0
        %v4715 = vsel %vm4687, %v4238, 0.0
        %v4716 = vsel %vm4688, %v4239, 0.0
        %v4717 = vsel %vm4689, %v4240, 0.0
        %v4718 = vsel %vm4690, %v4241, 0.0
        %v4719 = vsel %vm4691, %v4242, 0.0
        %v4720 = vsel %vm4692, %v4243, 0.0
        %v4721 = vsel %vm4693, %v4244, 0.0
        %v4722 = vsel %vm4694, %v4245, 0.0
        %v4723 = vsel %vm4695, %v4246, 0.0
        %v4724 = vsel %vm4696, %v4247, 0.0
        %v4725 = vsel %vm4697, %v4248, 0.0
        %v4726 = vsel %vm4698, %v4249, 0.0
        %v4727 = vsel %vm4699, %v4250, 0.0
        %v4728 = vsel %vm4700, %v4251, 0.0
        %v4729 = vsel %vm4701, %v4252, 0.0
        %v4730 = vsel %vm4702, %v4253, 0.0
        %v4731 = vsel %vm4703, %v4254, 0.0
        %v4732 = vsel %vm4704, %v4255, 0.0
        %v4733 = vsel %vm4705, %v4256, 0.0
        %v4734 = vsel %vm4706, %v4257, 0.0
        %v4735 = vsel %vm4707, %v4258, 0.0
        %v4736 = vsel %vm4708, %v4259, 0.0
        %v4737 = vsel %vm4709, %v4260, 0.0
        %v4738 = vsel %vm4710, %v4261, 0.0
        %v4739 = vsel %vm4711, %v4262, 0.0
        %v4740 = vsel %vm4712, %v4263, 0.0
        %v4741 = vsel %vm1534, %v4713, 0.0
        %v4742 = vsel %vm1534, %v4714, 0.0
        %v4743 = vadd.f32 %v4741, %v4742
        %v4744 = vsel %vm1534, %v4715, 0.0
        %v4745 = vadd.f32 %v4743, %v4744
        %v4746 = vsel %vm1534, %v4716, 0.0
        %v4747 = vadd.f32 %v4745, %v4746
        %v4748 = vsel %vm1534, %v4717, 0.0
        %v4749 = vadd.f32 %v4747, %v4748
        %v4750 = vsel %vm1534, %v4718, 0.0
        %v4751 = vadd.f32 %v4749, %v4750
        %v4752 = vsel %vm1534, %v4719, 0.0
        %v4753 = vadd.f32 %v4751, %v4752
        %v4754 = vsel %vm1534, %v4720, 0.0
        %v4755 = vadd.f32 %v4753, %v4754
        %v4756 = vsel %vm1534, %v4721, 0.0
        %v4757 = vadd.f32 %v4755, %v4756
        %v4758 = vsel %vm1534, %v4722, 0.0
        %v4759 = vadd.f32 %v4757, %v4758
        %v4760 = vsel %vm1534, %v4723, 0.0
        %v4761 = vadd.f32 %v4759, %v4760
        %v4762 = vsel %vm1534, %v4724, 0.0
        %v4763 = vadd.f32 %v4761, %v4762
        %v4764 = vsel %vm1534, %v4725, 0.0
        %v4765 = vadd.f32 %v4763, %v4764
        %v4766 = vsel %vm1534, %v4726, 0.0
        %v4767 = vadd.f32 %v4765, %v4766
        %v4768 = vsel %vm1534, %v4727, 0.0
        %v4769 = vadd.f32 %v4767, %v4768
        %v4770 = vsel %vm1534, %v4728, 0.0
        %v4771 = vadd.f32 %v4769, %v4770
        %v4772 = vsel %vm1534, %v4729, 0.0
        %v4773 = vadd.f32 %v4771, %v4772
        %v4774 = vsel %vm1534, %v4730, 0.0
        %v4775 = vadd.f32 %v4773, %v4774
        %v4776 = vsel %vm1534, %v4731, 0.0
        %v4777 = vadd.f32 %v4775, %v4776
        %v4778 = vsel %vm1534, %v4732, 0.0
        %v4779 = vadd.f32 %v4777, %v4778
        %v4780 = vsel %vm1534, %v4733, 0.0
        %v4781 = vadd.f32 %v4779, %v4780
        %v4782 = vsel %vm1534, %v4734, 0.0
        %v4783 = vadd.f32 %v4781, %v4782
        %v4784 = vsel %vm1534, %v4735, 0.0
        %v4785 = vadd.f32 %v4783, %v4784
        %v4786 = vsel %vm1534, %v4736, 0.0
        %v4787 = vadd.f32 %v4785, %v4786
        %v4788 = vsel %vm1534, %v4737, 0.0
        %v4789 = vadd.f32 %v4787, %v4788
        %v4790 = vsel %vm1534, %v4738, 0.0
        %v4791 = vadd.f32 %v4789, %v4790
        %v4792 = vsel %vm1534, %v4739, 0.0
        %v4793 = vadd.f32 %v4791, %v4792
        %v4794 = vsel %vm1534, %v4740, 0.0
        %v4795 = vadd.f32 %v4793, %v4794
        %v4796 = vrot.slane %v4795, 4
        %v4797 = vadd.f32 %v4795, %v4796
        %v4798 = vrot.slane %v4797, 2
        %v4799 = vadd.f32 %v4797, %v4798
        %v4800 = vrot.slane %v4799, 1
        %v4801 = vadd.f32 %v4799, %v4800
        %v4802 = vmul.f32 %v4801, 0.0051020407
        %v4803 = vld [vmem:[%s5] sm:$0xff]
        %v4804 = vld [vmem:[%s5 + $0x8] sm:$0xff]
        %v4805 = vld [vmem:[%s5 + $0x10] sm:$0xff]
        %v4806 = vld [vmem:[%s5 + $0x18] sm:$0xff]
        %v4807 = vld [vmem:[%s6] sm:$0x1]
        %v4809 = vsel %vm1534, %v4802, 0
        %4811 = vmatprep.subr.mxu0 0.0
        %4812 = vmatpush1.msra.mxu0 %v4803
        %4813 = vmatprep.subr.mxu0 0.0
        %4814 = vmatpush1.msra.mxu0 %v4804
        %4815 = vmatprep.subr.mxu0 0.0
        %4816 = vmatpush1.msra.mxu0 %v4805
        %4817 = vmatprep.subr.mxu0 0.0
        %4818 = vmatpush1.msra.mxu0 %v4806
        %4819 = vmatprep.subr.mxu0 0.0
        %4820 = vmatpush1.msra.mxu0 0.0
        %4821 = vmatprep.subr.mxu0 0.0
        %4822 = vmatpush1.msra.mxu0 0.0
        %4823 = vmatprep.subr.mxu0 0.0
        %4824 = vmatpush1.msra.mxu0 0.0
        %4825 = vmatprep.subr.mxu0 0.0
        %4826 = vmatpush1.msra.mxu0 0.0
        %4827 = vmatprep.subr.mxu0 0.0
        %4828 = vmatpush1.msra.mxu0 0.0
        %4829 = vmatprep.subr.mxu0 0.0
        %4830 = vmatpush1.msra.mxu0 0.0
        %4831 = vmatprep.subr.mxu0 0.0
        %4832 = vmatpush1.msra.mxu0 0.0
        %4833 = vmatprep.subr.mxu0 0.0
        %4834 = vmatpush1.msra.mxu0 0.0
        %4835 = vmatprep.subr.mxu0 0.0
        %4836 = vmatpush1.msra.mxu0 0.0
        %4837 = vmatprep.subr.mxu0 0.0
        %4838 = vmatpush1.msra.mxu0 0.0
        %4839 = vmatprep.subr.mxu0 0.0
        %4840 = vmatpush1.msra.mxu0 0.0
        %4841 = vmatprep.subr.mxu0 0.0
        %4842 = vmatpush1.msra.mxu0 0.0
        %4843 = vmatprep.subr.mxu0 0.0
        %4844 = vmatpush1.msra.mxu0 0.0
        %4845 = vmatprep.subr.mxu0 0.0
        %4846 = vmatpush1.msra.mxu0 0.0
        %4847 = vmatprep.subr.mxu0 0.0
        %4848 = vmatpush1.msra.mxu0 0.0
        %4849 = vmatprep.subr.mxu0 0.0
        %4850 = vmatpush1.msra.mxu0 0.0
        %4851 = vmatprep.subr.mxu0 0.0
        %4852 = vmatpush1.msra.mxu0 0.0
        %4853 = vmatprep.subr.mxu0 0.0
        %4854 = vmatpush1.msra.mxu0 0.0
        %4855 = vmatprep.subr.mxu0 0.0
        %4856 = vmatpush1.msra.mxu0 0.0
        %4857 = vmatprep.subr.mxu0 0.0
        %4858 = vmatpush1.msra.mxu0 0.0
        %4859 = vmatprep.subr.mxu0 0.0
        %4860 = vmatpush1.msra.mxu0 0.0
        %4861 = vmatprep.subr.mxu0 0.0
        %4862 = vmatpush1.msra.mxu0 0.0
        %4863 = vmatprep.subr.mxu0 0.0
        %4864 = vmatpush1.msra.mxu0 0.0
        %4865 = vmatprep.subr.mxu0 0.0
        %4866 = vmatpush1.msra.mxu0 0.0
        %4867 = vmatprep.subr.mxu0 0.0
        %4868 = vmatpush1.msra.mxu0 0.0
        %4869 = vmatprep.subr.mxu0 0.0
        %4870 = vmatpush1.msra.mxu0 0.0
        %4871 = vmatprep.subr.mxu0 0.0
        %4872 = vmatpush1.msra.mxu0 0.0
        %4873 = vmatprep.subr.mxu0 0.0
        %4874 = vmatpush1.msra.mxu0 0.0
        %4875 = vmatprep.mubr.f32.mxu0 0.0
        %4876 = vmatmul.mubr.f32.gmra.mrb[0].mxu0 %v4809
        %v4877 = vpop.f32.mrb[0].mxu0
        %v4878 = vadd.f32 %v4807, %v4877
        %v4879 = vpop.f32.mrb[0].mxu0
        %4880 = vdwg.mxu0
        %v4881 = vmax.f32 %v4878, 0.0
        %v4882 = vld [vmem:[%s7] sm:$0x3]
        %v4883 = vld [vmem:[%s8] sm:$0x1]
        %vm4884 = vcmask 15360
        %v4886 = vsel %vm4884, %v4881, 0
        %vm4888 = vcmask 1041408
        %v4890 = vsel %vm4888, %v4882, 0
        %4892 = vmatprep.subr.mxu0 0.0
        %4893 = vmatpush1.msra.mxu0 %v4890
        %4894 = vmatprep.subr.mxu0 0.0
        %4895 = vmatpush1.msra.mxu0 0.0
        %4896 = vmatprep.subr.mxu0 0.0
        %4897 = vmatpush1.msra.mxu0 0.0
        %4898 = vmatprep.subr.mxu0 0.0
        %4899 = vmatpush1.msra.mxu0 0.0
        %4900 = vmatprep.subr.mxu0 0.0
        %4901 = vmatpush1.msra.mxu0 0.0
        %4902 = vmatprep.subr.mxu0 0.0
        %4903 = vmatpush1.msra.mxu0 0.0
        %4904 = vmatprep.subr.mxu0 0.0
        %4905 = vmatpush1.msra.mxu0 0.0
        %4906 = vmatprep.subr.mxu0 0.0
        %4907 = vmatpush1.msra.mxu0 0.0
        %4908 = vmatprep.subr.mxu0 0.0
        %4909 = vmatpush1.msra.mxu0 0.0
        %4910 = vmatprep.subr.mxu0 0.0
        %4911 = vmatpush1.msra.mxu0 0.0
        %4912 = vmatprep.subr.mxu0 0.0
        %4913 = vmatpush1.msra.mxu0 0.0
        %4914 = vmatprep.subr.mxu0 0.0
        %4915 = vmatpush1.msra.mxu0 0.0
        %4916 = vmatprep.subr.mxu0 0.0
        %4917 = vmatpush1.msra.mxu0 0.0
        %4918 = vmatprep.subr.mxu0 0.0
        %4919 = vmatpush1.msra.mxu0 0.0
        %4920 = vmatprep.subr.mxu0 0.0
        %4921 = vmatpush1.msra.mxu0 0.0
        %4922 = vmatprep.subr.mxu0 0.0
        %4923 = vmatpush1.msra.mxu0 0.0
        %4924 = vmatprep.subr.mxu0 0.0
        %4925 = vmatpush1.msra.mxu0 0.0
        %4926 = vmatprep.subr.mxu0 0.0
        %4927 = vmatpush1.msra.mxu0 0.0
        %4928 = vmatprep.subr.mxu0 0.0
        %4929 = vmatpush1.msra.mxu0 0.0
        %4930 = vmatprep.subr.mxu0 0.0
        %4931 = vmatpush1.msra.mxu0 0.0
        %4932 = vmatprep.subr.mxu0 0.0
        %4933 = vmatpush1.msra.mxu0 0.0
        %4934 = vmatprep.subr.mxu0 0.0
        %4935 = vmatpush1.msra.mxu0 0.0
        %4936 = vmatprep.subr.mxu0 0.0
        %4937 = vmatpush1.msra.mxu0 0.0
        %4938 = vmatprep.subr.mxu0 0.0
        %4939 = vmatpush1.msra.mxu0 0.0
        %4940 = vmatprep.subr.mxu0 0.0
        %4941 = vmatpush1.msra.mxu0 0.0
        %4942 = vmatprep.subr.mxu0 0.0
        %4943 = vmatpush1.msra.mxu0 0.0
        %4944 = vmatprep.subr.mxu0 0.0
        %4945 = vmatpush1.msra.mxu0 0.0
        %4946 = vmatprep.subr.mxu0 0.0
        %4947 = vmatpush1.msra.mxu0 0.0
        %4948 = vmatprep.subr.mxu0 0.0
        %4949 = vmatpush1.msra.mxu0 0.0
        %4950 = vmatprep.subr.mxu0 0.0
        %4951 = vmatpush1.msra.mxu0 0.0
        %4952 = vmatprep.subr.mxu0 0.0
        %4953 = vmatpush1.msra.mxu0 0.0
        %4954 = vmatprep.subr.mxu0 0.0
        %4955 = vmatpush1.msra.mxu0 0.0
        %4956 = vmatprep.mubr.f32.mxu0 0.0
        %4957 = vmatmul.mubr.f32.gmra.mrb[0].mxu0 %v4886
        %v4958 = vpop.f32.mrb[0].mxu0
        %v4959 = vadd.f32 %v4883, %v4958
        %v4960 = vpop.f32.mrb[0].mxu0
        %4961 = vdwg.mxu0
        %v4962 = vxor.u32 %v4959, 2147483648
        %v4963 = vmul.f32 %v4962, 1.442695
        %v4964 = vpow.pop %v4963
        %v4965 = vadd.f32 %v4964, 1.0
        %v4966 = vrcp.pop %v4965
        %v4967 = vmul.f32 1.0, %v4966
        %v4968 = vlaneseq
        %v4969 = vshrl.u32 %v4968, 7
        %v4970 = vsub.s32 0, %v4969
        %v4971 = vrot.slane %v4967, %v4970
        %v4972 = vmul.f32 %v4236, %v4971
        %v4973 = vmul.f32 %v4237, %v4971
        %v4974 = vmul.f32 %v4238, %v4971
        %v4975 = vmul.f32 %v4239, %v4971
        %v4976 = vmul.f32 %v4240, %v4971
        %v4977 = vmul.f32 %v4241, %v4971
        %v4978 = vmul.f32 %v4242, %v4971
        %v4979 = vmul.f32 %v4243, %v4971
        %v4980 = vmul.f32 %v4244, %v4971
        %v4981 = vmul.f32 %v4245, %v4971
        %v4982 = vmul.f32 %v4246, %v4971
        %v4983 = vmul.f32 %v4247, %v4971
        %v4984 = vmul.f32 %v4248, %v4971
        %v4985 = vmul.f32 %v4249, %v4971
        %v4986 = vmul.f32 %v4250, %v4971
        %v4987 = vmul.f32 %v4251, %v4971
        %v4988 = vmul.f32 %v4252, %v4971
        %v4989 = vmul.f32 %v4253, %v4971
        %v4990 = vmul.f32 %v4254, %v4971
        %v4991 = vmul.f32 %v4255, %v4971
        %v4992 = vmul.f32 %v4256, %v4971
        %v4993 = vmul.f32 %v4257, %v4971
        %v4994 = vmul.f32 %v4258, %v4971
        %v4995 = vmul.f32 %v4259, %v4971
        %v4996 = vmul.f32 %v4260, %v4971
        %v4997 = vmul.f32 %v4261, %v4971
        %v4998 = vmul.f32 %v4262, %v4971
        %v4999 = vmul.f32 %v4263, %v4971
        %v5000 = vpack.c.bf16 %v4973, %v4972
        %v5001 = vpack.c.bf16 %v4975, %v4974
        %v5002 = vpack.c.bf16 %v4977, %v4976
        %v5003 = vpack.c.bf16 %v4979, %v4978
        %v5004 = vpack.c.bf16 %v4981, %v4980
        %v5005 = vpack.c.bf16 %v4983, %v4982
        %v5006 = vpack.c.bf16 %v4985, %v4984
        %v5007 = vpack.c.bf16 %v4987, %v4986
        %v5008 = vpack.c.bf16 %v4989, %v4988
        %v5009 = vpack.c.bf16 %v4991, %v4990
        %v5010 = vpack.c.bf16 %v4993, %v4992
        %v5011 = vpack.c.bf16 %v4995, %v4994
        %v5012 = vpack.c.bf16 %v4997, %v4996
        %v5013 = vpack.c.bf16 %v4999, %v4998
        %v5014 = vld [vmem:[%s9] sm:$0xf]
        %v5015 = vld [vmem:[%s9 + $0x4] sm:$0xf]
        %v5016 = vld [vmem:[%s9 + $0x8] sm:$0xf]
        %v5017 = vld [vmem:[%s9 + $0xc] sm:$0xf]
        %v5018 = vld [vmem:[%s10] sm:$0x1]
        %v5020 = vlaneseq
        %v5021 = vshrl.u32 %v5020, 7
        %v5022 = vsub.s32 0, %v5021
        %v5023 = vrot.slane %v5018, %v5022
        %v5029 = vunpack.c.l.b16 %v5014
        %v5030 = vunpack.c.l.b16 %v5015
        %v5031 = vunpack.c.l.b16 %v5016
        %v5032 = vunpack.c.l.b16 %v5017
        %v5033 = vpack.c.b16 %v5030, %v5029
        %v5034 = vpack.c.b16 %v5032, %v5031
        %v5038 = vsel %vm1534, %v5000, 0
        %v5041 = vsel %vm1534, %v5001, 0
        %v5044 = vsel %vm1534, %v5002, 0
        %v5047 = vsel %vm1534, %v5003, 0
        %v5050 = vsel %vm1534, %v5004, 0
        %v5053 = vsel %vm1534, %v5005, 0
        %v5056 = vsel %vm1534, %v5006, 0
        %v5059 = vsel %vm1534, %v5007, 0
        %v5062 = vsel %vm1534, %v5008, 0
        %v5065 = vsel %vm1534, %v5009, 0
        %v5068 = vsel %vm1534, %v5010, 0
        %v5071 = vsel %vm1534, %v5011, 0
        %v5074 = vsel %vm1534, %v5012, 0
        %v5077 = vsel %vm1534, %v5013, 0
        %5079 = vmatprep.subr.bf16.mxu0 0
        %5080 = vmatpush1.bf16.msra.mxu0 %v5033
        %5081 = vmatprep.subr.bf16.mxu0 0
        %5082 = vmatpush1.bf16.msra.mxu0 %v5034
        %5083 = vmatprep.subr.bf16.mxu0 0
        %5084 = vmatpush1.bf16.msra.mxu0 0
        %5085 = vmatprep.subr.bf16.mxu0 0
        %5086 = vmatpush1.bf16.msra.mxu0 0
        %5087 = vmatprep.subr.bf16.mxu0 0
        %5088 = vmatpush1.bf16.msra.mxu0 0
        %5089 = vmatprep.subr.bf16.mxu0 0
        %5090 = vmatpush1.bf16.msra.mxu0 0
        %5091 = vmatprep.subr.bf16.mxu0 0
        %5092 = vmatpush1.bf16.msra.mxu0 0
        %5093 = vmatprep.subr.bf16.mxu0 0
        %5094 = vmatpush1.bf16.msra.mxu0 0
        %5095 = vmatprep.subr.bf16.mxu0 0
        %5096 = vmatpush1.bf16.msra.mxu0 0
        %5097 = vmatprep.subr.bf16.mxu0 0
        %5098 = vmatpush1.bf16.msra.mxu0 0
        %5099 = vmatprep.subr.bf16.mxu0 0
        %5100 = vmatpush1.bf16.msra.mxu0 0
        %5101 = vmatprep.subr.bf16.mxu0 0
        %5102 = vmatpush1.bf16.msra.mxu0 0
        %5103 = vmatprep.subr.bf16.mxu0 0
        %5104 = vmatpush1.bf16.msra.mxu0 0
        %5105 = vmatprep.subr.bf16.mxu0 0
        %5106 = vmatpush1.bf16.msra.mxu0 0
        %5107 = vmatprep.subr.bf16.mxu0 0
        %5108 = vmatpush1.bf16.msra.mxu0 0
        %5109 = vmatprep.subr.bf16.mxu0 0
        %5110 = vmatpush1.bf16.msra.mxu0 0
        %5111 = vmatprep.mubr.bf16.mxu0 0
        %5112 = vmatmul.mubr.bf16.gmra.mrb[0].mxu0 %v5038
        %v5113 = vpop.f32.mrb[0].mxu0
        %v5114 = vadd.f32 %v5023, %v5113
        %v5115 = vpop.f32.mrb[0].mxu0
        %v5116 = vpop.f32.mrb[0].mxu0
        %v5117 = vadd.f32 %v5023, %v5116
        %v5118 = vpop.f32.mrb[0].mxu0
        %5119 = vmatprep.mubr.bf16.mxu0 0
        %5120 = vmatmul.mubr.bf16.gmra.mrb[0].mxu0 %v5041
        %v5121 = vpop.f32.mrb[0].mxu0
        %v5122 = vadd.f32 %v5023, %v5121
        %v5123 = vpop.f32.mrb[0].mxu0
        %v5124 = vpop.f32.mrb[0].mxu0
        %v5125 = vadd.f32 %v5023, %v5124
        %v5126 = vpop.f32.mrb[0].mxu0
        %5127 = vmatprep.mubr.bf16.mxu0 0
        %5128 = vmatmul.mubr.bf16.gmra.mrb[0].mxu0 %v5044
        %v5129 = vpop.f32.mrb[0].mxu0
        %v5130 = vadd.f32 %v5023, %v5129
        %v5131 = vpop.f32.mrb[0].mxu0
        %v5132 = vpop.f32.mrb[0].mxu0
        %v5133 = vadd.f32 %v5023, %v5132
        %v5134 = vpop.f32.mrb[0].mxu0
        %5135 = vmatprep.mubr.bf16.mxu0 0
        %5136 = vmatmul.mubr.bf16.gmra.mrb[0].mxu0 %v5047
        %v5137 = vpop.f32.mrb[0].mxu0
        %v5138 = vadd.f32 %v5023, %v5137
        %v5139 = vpop.f32.mrb[0].mxu0
        %v5140 = vpop.f32.mrb[0].mxu0
        %v5141 = vadd.f32 %v5023, %v5140
        %v5142 = vpop.f32.mrb[0].mxu0
        %5143 = vmatprep.mubr.bf16.mxu0 0
        %5144 = vmatmul.mubr.bf16.gmra.mrb[0].mxu0 %v5050
        %v5145 = vpop.f32.mrb[0].mxu0
        %v5146 = vadd.f32 %v5023, %v5145
        %v5147 = vpop.f32.mrb[0].mxu0
        %v5148 = vpop.f32.mrb[0].mxu0
        %v5149 = vadd.f32 %v5023, %v5148
        %v5150 = vpop.f32.mrb[0].mxu0
        %5151 = vmatprep.mubr.bf16.mxu0 0
        %5152 = vmatmul.mubr.bf16.gmra.mrb[0].mxu0 %v5053
        %v5153 = vpop.f32.mrb[0].mxu0
        %v5154 = vadd.f32 %v5023, %v5153
        %v5155 = vpop.f32.mrb[0].mxu0
        %v5156 = vpop.f32.mrb[0].mxu0
        %v5157 = vadd.f32 %v5023, %v5156
        %v5158 = vpop.f32.mrb[0].mxu0
        %5159 = vmatprep.mubr.bf16.mxu0 0
        %5160 = vmatmul.mubr.bf16.gmra.mrb[0].mxu0 %v5056
        %v5161 = vpop.f32.mrb[0].mxu0
        %v5162 = vadd.f32 %v5023, %v5161
        %v5163 = vpop.f32.mrb[0].mxu0
        %v5164 = vpop.f32.mrb[0].mxu0
        %v5165 = vadd.f32 %v5023, %v5164
        %v5166 = vpop.f32.mrb[0].mxu0
        %5167 = vmatprep.mubr.bf16.mxu0 0
        %5168 = vmatmul.mubr.bf16.gmra.mrb[0].mxu0 %v5059
        %v5169 = vpop.f32.mrb[0].mxu0
        %v5170 = vadd.f32 %v5023, %v5169
        %v5171 = vpop.f32.mrb[0].mxu0
        %v5172 = vpop.f32.mrb[0].mxu0
        %v5173 = vadd.f32 %v5023, %v5172
        %v5174 = vpop.f32.mrb[0].mxu0
        %5175 = vmatprep.mubr.bf16.mxu0 0
        %5176 = vmatmul.mubr.bf16.gmra.mrb[0].mxu0 %v5062
        %v5177 = vpop.f32.mrb[0].mxu0
        %v5178 = vadd.f32 %v5023, %v5177
        %v5179 = vpop.f32.mrb[0].mxu0
        %v5180 = vpop.f32.mrb[0].mxu0
        %v5181 = vadd.f32 %v5023, %v5180
        %v5182 = vpop.f32.mrb[0].mxu0
        %5183 = vmatprep.mubr.bf16.mxu0 0
        %5184 = vmatmul.mubr.bf16.gmra.mrb[0].mxu0 %v5065
        %v5185 = vpop.f32.mrb[0].mxu0
        %v5186 = vadd.f32 %v5023, %v5185
        %v5187 = vpop.f32.mrb[0].mxu0
        %v5188 = vpop.f32.mrb[0].mxu0
        %v5189 = vadd.f32 %v5023, %v5188
        %v5190 = vpop.f32.mrb[0].mxu0
        %5191 = vmatprep.mubr.bf16.mxu0 0
        %5192 = vmatmul.mubr.bf16.gmra.mrb[0].mxu0 %v5068
        %v5193 = vpop.f32.mrb[0].mxu0
        %v5194 = vadd.f32 %v5023, %v5193
        %v5195 = vpop.f32.mrb[0].mxu0
        %v5196 = vpop.f32.mrb[0].mxu0
        %v5197 = vadd.f32 %v5023, %v5196
        %v5198 = vpop.f32.mrb[0].mxu0
        %5199 = vmatprep.mubr.bf16.mxu0 0
        %5200 = vmatmul.mubr.bf16.gmra.mrb[0].mxu0 %v5071
        %v5201 = vpop.f32.mrb[0].mxu0
        %v5202 = vadd.f32 %v5023, %v5201
        %v5203 = vpop.f32.mrb[0].mxu0
        %v5204 = vpop.f32.mrb[0].mxu0
        %v5205 = vadd.f32 %v5023, %v5204
        %v5206 = vpop.f32.mrb[0].mxu0
        %5207 = vmatprep.mubr.bf16.mxu0 0
        %5208 = vmatmul.mubr.bf16.gmra.mrb[0].mxu0 %v5074
        %v5209 = vpop.f32.mrb[0].mxu0
        %v5210 = vadd.f32 %v5023, %v5209
        %v5211 = vpop.f32.mrb[0].mxu0
        %v5212 = vpop.f32.mrb[0].mxu0
        %v5213 = vadd.f32 %v5023, %v5212
        %v5214 = vpop.f32.mrb[0].mxu0
        %5215 = vmatprep.mubr.bf16.mxu0 0
        %5216 = vmatmul.mubr.bf16.gmra.mrb[0].mxu0 %v5077
        %v5217 = vpop.f32.mrb[0].mxu0
        %v5218 = vadd.f32 %v5023, %v5217
        %v5219 = vpop.f32.mrb[0].mxu0
        %v5220 = vpop.f32.mrb[0].mxu0
        %v5221 = vadd.f32 %v5023, %v5220
        %v5222 = vpop.f32.mrb[0].mxu0
        %5223 = vdwg.mxu0
        %5224 = vst [vmem:[%s379] sm:$0xff] %v5114
        %5225 = vst [vmem:[%s379 + $0x8] sm:$0xff] %v5117
        %5226 = vst [vmem:[%s379 + $0x10] sm:$0xff] %v5122
        %5227 = vst [vmem:[%s379 + $0x18] sm:$0xff] %v5125
        %5228 = vst [vmem:[%s379 + $0x20] sm:$0xff] %v5130
        %5229 = vst [vmem:[%s379 + $0x28] sm:$0xff] %v5133
        %5230 = vst [vmem:[%s379 + $0x30] sm:$0xff] %v5138
        %5231 = vst [vmem:[%s379 + $0x38] sm:$0xff] %v5141
        %5232 = vst [vmem:[%s379 + $0x40] sm:$0xff] %v5146
        %5233 = vst [vmem:[%s379 + $0x48] sm:$0xff] %v5149
        %5234 = vst [vmem:[%s379 + $0x50] sm:$0xff] %v5154
        %5235 = vst [vmem:[%s379 + $0x58] sm:$0xff] %v5157
        %5236 = vst [vmem:[%s379 + $0x60] sm:$0xff] %v5162
        %5237 = vst [vmem:[%s379 + $0x68] sm:$0xff] %v5165
        %5238 = vst [vmem:[%s379 + $0x70] sm:$0xff] %v5170
        %5239 = vst [vmem:[%s379 + $0x78] sm:$0xff] %v5173
        %5240 = vst [vmem:[%s379 + $0x80] sm:$0xff] %v5178
        %5241 = vst [vmem:[%s379 + $0x88] sm:$0xff] %v5181
        %5242 = vst [vmem:[%s379 + $0x90] sm:$0xff] %v5186
        %5243 = vst [vmem:[%s379 + $0x98] sm:$0xff] %v5189
        %5244 = vst [vmem:[%s379 + $0xa0] sm:$0xff] %v5194
        %5245 = vst [vmem:[%s379 + $0xa8] sm:$0xff] %v5197
        %5246 = vst [vmem:[%s379 + $0xb0] sm:$0xff] %v5202
        %5247 = vst [vmem:[%s379 + $0xb8] sm:$0xff] %v5205
        %5248 = vst [vmem:[%s379 + $0xc0] sm:$0xff] %v5210
        %5249 = vst [vmem:[%s379 + $0xc8] sm:$0xff] %v5213
        %5250 = vst [vmem:[%s379 + $0xd0] sm:$0xff] %v5218
        %5251 = vst [vmem:[%s379 + $0xd8] sm:$0xff] %v5221
        %s5252 = sand.u32 %s269, 1
        %s5253 = scalar_lea.sflag [#allocation4], %s5252
        %s5254 = sand.u32 %s269, 1
        %s5255 = smul.addr %s5254, 224
        %s5256 = scalar_lea.vmem [#allocation3], %s5255
        // Predicated region
        $region65: #{tpu_custom_call.1} parent=63 // pred_check
          %p5257 = pneg %p279
        $region66: #{tpu_custom_call.1} parent=63 // pred_check_branch
          %5259 = sbr.rel (%p5257) target = $region68
        $region67: #{tpu_custom_call.1} parent=63 // pred_region
          %s5261 = ssub.s32 3584, 3584
          %5262 = vsyncadd %s5253, %s5261
          %s5263 = smul.addr %s25, 28
          %s5264 = smul.addr %s5263, 128
          %s5265 = scalar_lea.hbm %s11, %s5264
          %s5266 = sshll.u32 %s5256, 4
          %s5267 = int_to_ptr.vmem [resolvable:$true] %s5266
          %5272 = dma.vmem_to_hbm [thread:$0]  %s5267, 3584, %s5265, %s5253, 128, 128, 8
        $region68: #{tpu_custom_call.1} parent=63 // pred_fallthru
          _
      $region64: #{tpu_custom_call.1} parent=5 // pred_fallthru
        _
      %p5273 = scmp.le.s32.totalorder 2, %s20
      // Predicated region
      $region69: #{tpu_custom_call.1} parent=5 // pred_check
        %p5274 = pneg %p5273
      $region70: #{tpu_custom_call.1} parent=5 // pred_check_branch
        %5276 = sbr.rel (%p5274) target = $region72
      $region71: #{tpu_custom_call.1} parent=5 // pred_region
        %s5277 = ssub.s32 %s20, 2
        // Predicated region
        $region73: #{tpu_custom_call.1} parent=71 // pred_check
          %p5278 = pneg %p285
        $region74: #{tpu_custom_call.1} parent=71 // pred_check_branch
          %5280 = sbr.rel (%p5278) target = $region76
        $region75: #{tpu_custom_call.1} parent=71 // pred_region
          %s5281 = sand.u32 %s270, 1
          %s5282 = scalar_lea.sflag [#allocation4], %s5281
          %s5283 = sand.u32 %s270, 1
          %s5284 = smul.addr %s5283, 224
          %s5285 = scalar_lea.vmem [#allocation3], %s5284
          %5286 = dma.done %s5282, 3584
        $region76: #{tpu_custom_call.1} parent=71 // pred_fallthru
          _
      $region72: #{tpu_custom_call.1} parent=5 // pred_fallthru
        _
    $region6: #{tpu_custom_call.1} parent=1 // loop_footer
      %s24 = sadd.s32 1, %s20
    $region7: #{tpu_custom_call.1} parent=1 // loop_footer_branch
      %19 = sbr.rel target = $region3
    $region8: #{tpu_custom_call.1} parent=1 // loop_exit
      _
    %5287 = vsyncpa [#allocation4], 1
    %s5288 = scalar_lea.sflag [#allocation4], 1
    %5289 = vsyncpa %s5288, 1

</llo_original>
